<compile_context>
chip_gen: v7x
topology: tpu7x:2x2x1
jax: 0.10.0
libtpu: 0.0.40
codegen_flags: <defaults>
</compile_context>

<pallas_src>
import jax
import jax.numpy as jnp
import numpy as np
from jax.experimental import pallas as pl
from jax.experimental.pallas import tpu as pltpu


# ------------------------------ fused kernel --------------------------------

def _fused_tree_kernel(len_ref,                 # SMEM (B,) int32  [scalar prefetch]
                       inp_ref,                 # (B, L, Dw)
                       wwh_ref, wwc_ref,        # (Dw, H) each
                       bwh_ref, bwc_ref,        # (1, H) each
                       wcomp_ref,               # (5, 2H, H)  gate-major comp weights
                       bcomp_ref,               # (5, 1, H)
                       query_ref,               # (1, H)
                       h_out_ref, c_out_ref,    # (B, H) outputs
                       sh_ref, sc_ref):         # VMEM scratch (B, L, H) state
    i = pl.program_id(0)
    B, L, H = sh_ref.shape
    Lc = L - 1

    # --- step 0: leaf transform (word_linear); state stays resident in VMEM ---
    @pl.when(i == 0)
    def _init():
        wwh = wwh_ref[...]
        wwc = wwc_ref[...]
        bwh = bwh_ref[...]
        bwc = bwc_ref[...]
        for b in range(B):                      # B is small and static
            x = inp_ref[b]                      # (L, Dw)
            sh_ref[b] = jnp.dot(x, wwh, preferred_element_type=jnp.float32) + bwh
            sc_ref[b] = jnp.dot(x, wwc, preferred_element_type=jnp.float32) + bwc

    q = query_ref[...]                          # (1, H)
    iota_c = jax.lax.broadcasted_iota(jnp.int32, (Lc, 1), 0)
    iota_lh = jax.lax.broadcasted_iota(jnp.int32, (Lc, H), 0)

    for b in range(B):                          # static unrolled batch loop
        len_b = len_ref[b]
        h_full = sh_ref[b]                      # (L, H)
        c_full = sc_ref[b]
        hl, hr = h_full[:Lc], h_full[1:]
        cl, cr = c_full[:Lc], c_full[1:]

        # BinaryTreeLSTMLayer gates.  Per-gate weights avoid lane-unaligned
        # slicing of a (Lc, 5H) tensor; split-K (hl@W_top + hr@W_bot) avoids a
        # lane concat of (hl, hr).
        def gate(g):
            w = wcomp_ref[g]                    # (2H, H)
            return (jnp.dot(hl, w[:H], preferred_element_type=jnp.float32)
                    + jnp.dot(hr, w[H:], preferred_element_type=jnp.float32)
                    + bcomp_ref[g])
        ig, fl, fr, ug, og = gate(0), gate(1), gate(2), gate(3), gate(4)
        c_new = (cl * jax.nn.sigmoid(fl + 1.0)
                 + cr * jax.nn.sigmoid(fr + 1.0)
                 + jnp.tanh(ug) * jax.nn.sigmoid(ig))
        h_new = jax.nn.sigmoid(og) * jnp.tanh(c_new)

        # greedy_select (eval mode): first argmax of <query, h_new> over valid
        # positions; masks built with iota compares (no one_hot / cumsum).
        comp = jnp.sum(h_new * q, axis=-1, keepdims=True)          # (Lc, 1)
        valid = (iota_c + (i + 1)) < len_b
        masked = jnp.where(valid, comp, -1e9)
        m = jnp.max(masked)
        idx = jnp.min(jnp.where(masked == m, iota_c, Lc))          # first-max index

        # select_composition blend: j<idx -> old left, j==idx -> new node,
        # j>idx -> old right.  (Exactly the 0/1 mask blend of the reference.)
        blend_h = jnp.where(iota_lh < idx, hl,
                            jnp.where(iota_lh == idx, h_new, hr))
        blend_c = jnp.where(iota_lh < idx, cl,
                            jnp.where(iota_lh == idx, c_new, cr))

        # update_state: finished sentences keep the (shifted) old state.
        done = (i + 1) < len_b
        newh = jnp.where(done, blend_h, hl)
        newc = jnp.where(done, blend_c, cl)

        sh_ref[b, 0:Lc, :] = newh
        sc_ref[b, 0:Lc, :] = newc
        # Root of the tree; overwritten every step, last step's value wins.
        h_out_ref[pl.ds(b, 1), :] = newh[0:1, :]
        c_out_ref[pl.ds(b, 1), :] = newc[0:1, :]


# ------------------------------ wrapper --------------------------------------

def gumbel_treelstm_forward(params, inp, length):
    """Pallas forward.  Returns (h, c), each (B, hidden_dim)."""
    B, L, Dw = inp.shape
    H = params["hidden_dim"]

    # One-time host-side weight re-layout (outside the kernel / grid loop).
    w_word_t = params["w_word_t"]                       # (Dw, 2H)
    w_word_h, w_word_c = w_word_t[:, :H], w_word_t[:, H:]
    b_word_h = params["b_word"][:H].reshape(1, H)
    b_word_c = params["b_word"][H:].reshape(1, H)
    # (2H, 5H) -> (5, 2H, H): gate-major, so the kernel never lane-slices 5H.
    w_comp_g = params["w_comp_t"].reshape(2 * H, 5, H).transpose(1, 0, 2)
    b_comp_g = params["b_comp"].reshape(5, 1, H)
    query = params["comp_query"].reshape(1, H)
    length_i32 = length.astype(jnp.int32)

    def full(*shape):
        return pl.BlockSpec(shape, lambda i, ln, _n=len(shape): (0,) * _n)

    grid_spec = pltpu.PrefetchScalarGridSpec(
        num_scalar_prefetch=1,                  # length -> SMEM
        grid=(L - 1,),
        in_specs=[
            full(B, L, Dw),                     # inp
            full(Dw, H), full(Dw, H),           # word_linear weights (h, c)
            full(1, H), full(1, H),             # word_linear biases (h, c)
            full(5, 2 * H, H),                  # comp_linear weights per gate
            full(5, 1, H),                      # comp_linear biases per gate
            full(1, H),                         # comp_query
        ],
        out_specs=(full(B, H), full(B, H)),
        scratch_shapes=[pltpu.VMEM((B, L, H), jnp.float32),
                        pltpu.VMEM((B, L, H), jnp.float32)],
    )

    h, c = pl.pallas_call(
        _fused_tree_kernel,
        grid_spec=grid_spec,
        out_shape=(jax.ShapeDtypeStruct((B, H), jnp.float32),
                   jax.ShapeDtypeStruct((B, H), jnp.float32)),
        compiler_params=pltpu.CompilerParams(
            dimension_semantics=("arbitrary",)),    # sequential tree steps
    )(length_i32, inp, w_word_h, w_word_c, b_word_h, b_word_c,
      w_comp_g, b_comp_g, query)
    return h, c


# --------------------------- pure-JAX reference ------------------------------

def gumbel_treelstm_forward_ref(params, inp, length):
    B, L, Dw = inp.shape
    H = params["hidden_dim"]
    length_mask = (jnp.arange(L)[None, :] < length[:, None]).astype(jnp.float32)

    hc = inp @ params["w_word_t"] + params["b_word"]
    state_h, state_c = hc[..., :H], hc[..., H:]

    for i in range(L - 1):
        hl, hr = state_h[:, :-1, :], state_h[:, 1:, :]
        cl, cr = state_c[:, :-1, :], state_c[:, 1:, :]
        v = jnp.concatenate([hl, hr], axis=-1) @ params["w_comp_t"] + params["b_comp"]
        ig, fl, fr, u, og = jnp.split(v, 5, axis=-1)
        c_new = (cl * jax.nn.sigmoid(fl + 1.0) + cr * jax.nn.sigmoid(fr + 1.0)
                 + jnp.tanh(u) * jax.nn.sigmoid(ig))
        h_new = jax.nn.sigmoid(og) * jnp.tanh(c_new)

        if i < L - 2:
            lc = L - 1 - i
            mask = length_mask[:, i + 1:]
            comp_w = jnp.einsum("blh,h->bl", h_new, params["comp_query"])
            masked_logits = jnp.where(mask > 0, comp_w, -1e9)
            sel = jax.nn.one_hot(jnp.argmax(masked_logits, axis=1), lc,
                                 dtype=jnp.float32)
            csum = jnp.cumsum(sel, axis=1)
            left = 1.0 - csum
            right = jnp.concatenate(
                [jnp.zeros((B, 1), jnp.float32), csum[:, :-1]], axis=1)
            h_new = sel[..., None] * h_new + left[..., None] * hl + right[..., None] * hr
            c_new = sel[..., None] * c_new + left[..., None] * cl + right[..., None] * cr

        done = length_mask[:, i + 1][:, None, None]
        state_h = done * h_new + (1.0 - done) * state_h[:, :-1, :]
        state_c = done * c_new + (1.0 - done) * state_c[:, :-1, :]

    return state_h[:, 0, :], state_c[:, 0, :]


# ---------------------------------- main -------------------------------------

if __name__ == "__main__":
    B, L, WORD_DIM, HIDDEN = 2, 8, 16, 32
    key = jax.random.PRNGKey(0)
    kw, kc, kq, kx = jax.random.split(key, 4)

    # kaiming_normal-ish weights (stored pre-transposed as (in, out)), zero bias,
    # comp_query ~ N(0, 0.01).
    params = {
        "hidden_dim": HIDDEN,
        "w_word_t": jax.random.normal(kw, (WORD_DIM, 2 * HIDDEN), jnp.float32)
                    * np.sqrt(2.0 / WORD_DIM),
        "b_word": jnp.zeros((2 * HIDDEN,), jnp.float32),
        "w_comp_t": jax.random.normal(kc, (2 * HIDDEN, 5 * HIDDEN), jnp.float32)
                    * np.sqrt(2.0 / (2 * HIDDEN)),
        "b_comp": jnp.zeros((5 * HIDDEN,), jnp.float32),
        "comp_query": jax.random.normal(kq, (HIDDEN,), jnp.float32) * 0.01,
    }

    inp = jax.random.normal(kx, (B, L, WORD_DIM), jnp.float32)
    length = jnp.array([L, 5], dtype=jnp.int32)

    h, c = gumbel_treelstm_forward(params, inp, length)
    jax.block_until_ready((h, c))

    h_ref, c_ref = gumbel_treelstm_forward_ref(params, inp, length)
    np.testing.assert_allclose(np.asarray(h), np.asarray(h_ref), rtol=2e-2, atol=2e-2)
    np.testing.assert_allclose(np.asarray(c), np.asarray(c_ref), rtol=2e-2, atol=2e-2)
    assert h.shape == (B, HIDDEN) and c.shape == (B, HIDDEN)

    print("KERNEL_OK")
</pallas_src>

<mosaic_0001>
module attributes {stable_mosaic.version = 11 : i64} {
  func.func @_fused_tree_kernel(%arg0: i32, %arg1: memref<2xi32, #tpu.memory_space<smem>>, %arg2: memref<2x8x16xf32, #tpu.memory_space<vmem>>, %arg3: memref<16x32xf32, #tpu.memory_space<vmem>>, %arg4: memref<16x32xf32, #tpu.memory_space<vmem>>, %arg5: memref<1x32xf32, #tpu.memory_space<vmem>>, %arg6: memref<1x32xf32, #tpu.memory_space<vmem>>, %arg7: memref<5x64x32xf32, #tpu.memory_space<vmem>>, %arg8: memref<5x1x32xf32, #tpu.memory_space<vmem>>, %arg9: memref<1x32xf32, #tpu.memory_space<vmem>>, %arg10: memref<2x32xf32, #tpu.memory_space<vmem>>, %arg11: memref<2x32xf32, #tpu.memory_space<vmem>>, %arg12: memref<2x8x32xf32, #tpu.memory_space<vmem>>, %arg13: memref<2x8x32xf32, #tpu.memory_space<vmem>>) attributes {dimension_semantics = [#tpu.dimension_semantics<arbitrary>], iteration_bounds = array<i64: 7>, scalar_prefetch = 1 : i64, scratch_operands = 2 : i64, tpu.core_type = #tpu.core_type<tc>, window_params = [{pipeline_mode = #tpu.pipeline_mode<synchronous>, transform_indices = @transform_0, window_bounds = array<i64: 2, 8, 16>}, {pipeline_mode = #tpu.pipeline_mode<synchronous>, transform_indices = @transform_1, window_bounds = array<i64: 16, 32>}, {pipeline_mode = #tpu.pipeline_mode<synchronous>, transform_indices = @transform_2, window_bounds = array<i64: 16, 32>}, {pipeline_mode = #tpu.pipeline_mode<synchronous>, transform_indices = @transform_3, window_bounds = array<i64: 1, 32>}, {pipeline_mode = #tpu.pipeline_mode<synchronous>, transform_indices = @transform_4, window_bounds = array<i64: 1, 32>}, {pipeline_mode = #tpu.pipeline_mode<synchronous>, transform_indices = @transform_5, window_bounds = array<i64: 5, 64, 32>}, {pipeline_mode = #tpu.pipeline_mode<synchronous>, transform_indices = @transform_6, window_bounds = array<i64: 5, 1, 32>}, {pipeline_mode = #tpu.pipeline_mode<synchronous>, transform_indices = @transform_7, window_bounds = array<i64: 1, 32>}, {pipeline_mode = #tpu.pipeline_mode<synchronous>, transform_indices = @transform_8, window_bounds = array<i64: 2, 32>}, {pipeline_mode = #tpu.pipeline_mode<synchronous>, transform_indices = @transform_9, window_bounds = array<i64: 2, 32>}]} {
    %c0_i32 = arith.constant 0 : i32
    %0 = arith.cmpi eq, %arg0, %c0_i32 : i32
    %1 = arith.extui %0 : i1 to i32
    %c0_i32_0 = arith.constant 0 : i32
    %2 = arith.cmpi ne, %1, %c0_i32_0 : i32
    scf.if %2 {
      %c0_135 = arith.constant 0 : index
      %c0_136 = arith.constant 0 : index
      %296 = vector.load %arg3[%c0_135, %c0_136] : memref<16x32xf32, #tpu.memory_space<vmem>>, vector<16x32xf32>
      %c0_137 = arith.constant 0 : index
      %c0_138 = arith.constant 0 : index
      %297 = vector.load %arg4[%c0_137, %c0_138] : memref<16x32xf32, #tpu.memory_space<vmem>>, vector<16x32xf32>
      %c0_139 = arith.constant 0 : index
      %c0_140 = arith.constant 0 : index
      %298 = vector.load %arg5[%c0_139, %c0_140] : memref<1x32xf32, #tpu.memory_space<vmem>>, vector<1x32xf32>
      %c0_141 = arith.constant 0 : index
      %c0_142 = arith.constant 0 : index
      %299 = vector.load %arg6[%c0_141, %c0_142] : memref<1x32xf32, #tpu.memory_space<vmem>>, vector<1x32xf32>
      %c0_143 = arith.constant 0 : index
      %c0_144 = arith.constant 0 : index
      %c0_145 = arith.constant 0 : index
      %300 = vector.load %arg2[%c0_143, %c0_144, %c0_145] : memref<2x8x16xf32, #tpu.memory_space<vmem>>, vector<1x8x16xf32>
      %301 = vector.shape_cast %300 : vector<1x8x16xf32> to vector<8x16xf32>
      %cst_146 = arith.constant dense<0.000000e+00> : vector<8x32xf32>
      %302 = tpu.matmul %301, %296, %cst_146 {dimension_numbers = #tpu.dot_dimension_numbers<[1], [0], [0], [1], [0, 0, 1, 1], [], []>} : vector<8x16xf32>, vector<16x32xf32>, vector<8x32xf32> -> vector<8x32xf32>
      %303 = vector.broadcast %298 : vector<1x32xf32> to vector<8x32xf32>
      %304 = arith.addf %302, %303 : vector<8x32xf32>
      %c0_147 = arith.constant 0 : index
      %c0_148 = arith.constant 0 : index
      %c0_149 = arith.constant 0 : index
      %305 = vector.load %arg12[%c0_147, %c0_148, %c0_149] : memref<2x8x32xf32, #tpu.memory_space<vmem>>, vector<1x8x32xf32>
      %306 = vector.shape_cast %305 : vector<1x8x32xf32> to vector<8x32xf32>
      %307 = vector.shape_cast %304 : vector<8x32xf32> to vector<1x8x32xf32>
      tpu.vector_store %arg12[%c0_147, %c0_148, %c0_149], %307 {strides = array<i32>} : memref<2x8x32xf32, #tpu.memory_space<vmem>>, vector<1x8x32xf32>,
      %cst_150 = arith.constant dense<0.000000e+00> : vector<8x32xf32>
      %308 = tpu.matmul %301, %297, %cst_150 {dimension_numbers = #tpu.dot_dimension_numbers<[1], [0], [0], [1], [0, 0, 1, 1], [], []>} : vector<8x16xf32>, vector<16x32xf32>, vector<8x32xf32> -> vector<8x32xf32>
      %309 = vector.broadcast %299 : vector<1x32xf32> to vector<8x32xf32>
      %310 = arith.addf %308, %309 : vector<8x32xf32>
      %c0_151 = arith.constant 0 : index
      %c0_152 = arith.constant 0 : index
      %c0_153 = arith.constant 0 : index
      %311 = vector.load %arg13[%c0_151, %c0_152, %c0_153] : memref<2x8x32xf32, #tpu.memory_space<vmem>>, vector<1x8x32xf32>
      %312 = vector.shape_cast %311 : vector<1x8x32xf32> to vector<8x32xf32>
      %313 = vector.shape_cast %310 : vector<8x32xf32> to vector<1x8x32xf32>
      tpu.vector_store %arg13[%c0_151, %c0_152, %c0_153], %313 {strides = array<i32>} : memref<2x8x32xf32, #tpu.memory_space<vmem>>, vector<1x8x32xf32>,
      %c1_154 = arith.constant 1 : index
      %c0_155 = arith.constant 0 : index
      %c0_156 = arith.constant 0 : index
      %314 = vector.load %arg2[%c1_154, %c0_155, %c0_156] : memref<2x8x16xf32, #tpu.memory_space<vmem>>, vector<1x8x16xf32>
      %315 = vector.shape_cast %314 : vector<1x8x16xf32> to vector<8x16xf32>
      %cst_157 = arith.constant dense<0.000000e+00> : vector<8x32xf32>
      %316 = tpu.matmul %315, %296, %cst_157 {dimension_numbers = #tpu.dot_dimension_numbers<[1], [0], [0], [1], [0, 0, 1, 1], [], []>} : vector<8x16xf32>, vector<16x32xf32>, vector<8x32xf32> -> vector<8x32xf32>
      %317 = vector.broadcast %298 : vector<1x32xf32> to vector<8x32xf32>
      %318 = arith.addf %316, %317 : vector<8x32xf32>
      %c1_158 = arith.constant 1 : index
      %c0_159 = arith.constant 0 : index
      %c0_160 = arith.constant 0 : index
      %319 = vector.load %arg12[%c1_158, %c0_159, %c0_160] : memref<2x8x32xf32, #tpu.memory_space<vmem>>, vector<1x8x32xf32>
      %320 = vector.shape_cast %319 : vector<1x8x32xf32> to vector<8x32xf32>
      %321 = vector.shape_cast %318 : vector<8x32xf32> to vector<1x8x32xf32>
      tpu.vector_store %arg12[%c1_158, %c0_159, %c0_160], %321 {strides = array<i32>} : memref<2x8x32xf32, #tpu.memory_space<vmem>>, vector<1x8x32xf32>,
      %cst_161 = arith.constant dense<0.000000e+00> : vector<8x32xf32>
      %322 = tpu.matmul %315, %297, %cst_161 {dimension_numbers = #tpu.dot_dimension_numbers<[1], [0], [0], [1], [0, 0, 1, 1], [], []>} : vector<8x16xf32>, vector<16x32xf32>, vector<8x32xf32> -> vector<8x32xf32>
      %323 = vector.broadcast %299 : vector<1x32xf32> to vector<8x32xf32>
      %324 = arith.addf %322, %323 : vector<8x32xf32>
      %c1_162 = arith.constant 1 : index
      %c0_163 = arith.constant 0 : index
      %c0_164 = arith.constant 0 : index
      %325 = vector.load %arg13[%c1_162, %c0_163, %c0_164] : memref<2x8x32xf32, #tpu.memory_space<vmem>>, vector<1x8x32xf32>
      %326 = vector.shape_cast %325 : vector<1x8x32xf32> to vector<8x32xf32>
      %327 = vector.shape_cast %324 : vector<8x32xf32> to vector<1x8x32xf32>
      tpu.vector_store %arg13[%c1_162, %c0_163, %c0_164], %327 {strides = array<i32>} : memref<2x8x32xf32, #tpu.memory_space<vmem>>, vector<1x8x32xf32>,
    } else {
    }
    %c0 = arith.constant 0 : index
    %c0_1 = arith.constant 0 : index
    %3 = vector.load %arg9[%c0, %c0_1] : memref<1x32xf32, #tpu.memory_space<vmem>>, vector<1x32xf32>
    %4 = tpu.iota {dimensions = array<i32: 0>} : vector<7x1xi32>
    %5 = tpu.iota {dimensions = array<i32: 0>} : vector<7x32xi32>
    %c0_2 = arith.constant 0 : index
    %6 = memref.load %arg1[%c0_2] : memref<2xi32, #tpu.memory_space<smem>>
    %c0_3 = arith.constant 0 : index
    %c0_4 = arith.constant 0 : index
    %c0_5 = arith.constant 0 : index
    %7 = vector.load %arg12[%c0_3, %c0_4, %c0_5] : memref<2x8x32xf32, #tpu.memory_space<vmem>>, vector<1x8x32xf32>
    %8 = vector.shape_cast %7 : vector<1x8x32xf32> to vector<8x32xf32>
    %c0_6 = arith.constant 0 : index
    %c0_7 = arith.constant 0 : index
    %c0_8 = arith.constant 0 : index
    %9 = vector.load %arg13[%c0_6, %c0_7, %c0_8] : memref<2x8x32xf32, #tpu.memory_space<vmem>>, vector<1x8x32xf32>
    %10 = vector.shape_cast %9 : vector<1x8x32xf32> to vector<8x32xf32>
    %11 = vector.extract_strided_slice %8 {offsets = [0, 0], sizes = [7, 32], strides = [1, 1]} : vector<8x32xf32> to vector<7x32xf32>
    %12 = vector.extract_strided_slice %8 {offsets = [1, 0], sizes = [7, 32], strides = [1, 1]} : vector<8x32xf32> to vector<7x32xf32>
    %13 = vector.extract_strided_slice %10 {offsets = [0, 0], sizes = [7, 32], strides = [1, 1]} : vector<8x32xf32> to vector<7x32xf32>
    %14 = vector.extract_strided_slice %10 {offsets = [1, 0], sizes = [7, 32], strides = [1, 1]} : vector<8x32xf32> to vector<7x32xf32>
    %c0_9 = arith.constant 0 : index
    %c0_10 = arith.constant 0 : index
    %c0_11 = arith.constant 0 : index
    %15 = vector.load %arg7[%c0_9, %c0_10, %c0_11] : memref<5x64x32xf32, #tpu.memory_space<vmem>>, vector<1x64x32xf32>
    %16 = vector.shape_cast %15 : vector<1x64x32xf32> to vector<64x32xf32>
    %17 = vector.extract_strided_slice %16 {offsets = [0, 0], sizes = [32, 32], strides = [1, 1]} : vector<64x32xf32> to vector<32x32xf32>
    %cst = arith.constant dense<0.000000e+00> : vector<7x32xf32>
    %18 = tpu.matmul %11, %17, %cst {dimension_numbers = #tpu.dot_dimension_numbers<[1], [0], [0], [1], [0, 0, 1, 1], [], []>} : vector<7x32xf32>, vector<32x32xf32>, vector<7x32xf32> -> vector<7x32xf32>
    %19 = vector.extract_strided_slice %16 {offsets = [32, 0], sizes = [32, 32], strides = [1, 1]} : vector<64x32xf32> to vector<32x32xf32>
    %cst_12 = arith.constant dense<0.000000e+00> : vector<7x32xf32>
    %20 = tpu.matmul %12, %19, %cst_12 {dimension_numbers = #tpu.dot_dimension_numbers<[1], [0], [0], [1], [0, 0, 1, 1], [], []>} : vector<7x32xf32>, vector<32x32xf32>, vector<7x32xf32> -> vector<7x32xf32>
    %21 = arith.addf %18, %20 : vector<7x32xf32>
    %c0_13 = arith.constant 0 : index
    %c0_14 = arith.constant 0 : index
    %c0_15 = arith.constant 0 : index
    %22 = vector.load %arg8[%c0_13, %c0_14, %c0_15] : memref<5x1x32xf32, #tpu.memory_space<vmem>>, vector<1x1x32xf32>
    %23 = vector.shape_cast %22 : vector<1x1x32xf32> to vector<1x32xf32>
    %24 = vector.broadcast %23 : vector<1x32xf32> to vector<7x32xf32>
    %25 = arith.addf %21, %24 : vector<7x32xf32>
    %c1 = arith.constant 1 : index
    %c0_16 = arith.constant 0 : index
    %c0_17 = arith.constant 0 : index
    %26 = vector.load %arg7[%c1, %c0_16, %c0_17] : memref<5x64x32xf32, #tpu.memory_space<vmem>>, vector<1x64x32xf32>
    %27 = vector.shape_cast %26 : vector<1x64x32xf32> to vector<64x32xf32>
    %28 = vector.extract_strided_slice %27 {offsets = [0, 0], sizes = [32, 32], strides = [1, 1]} : vector<64x32xf32> to vector<32x32xf32>
    %cst_18 = arith.constant dense<0.000000e+00> : vector<7x32xf32>
    %29 = tpu.matmul %11, %28, %cst_18 {dimension_numbers = #tpu.dot_dimension_numbers<[1], [0], [0], [1], [0, 0, 1, 1], [], []>} : vector<7x32xf32>, vector<32x32xf32>, vector<7x32xf32> -> vector<7x32xf32>
    %30 = vector.extract_strided_slice %27 {offsets = [32, 0], sizes = [32, 32], strides = [1, 1]} : vector<64x32xf32> to vector<32x32xf32>
    %cst_19 = arith.constant dense<0.000000e+00> : vector<7x32xf32>
    %31 = tpu.matmul %12, %30, %cst_19 {dimension_numbers = #tpu.dot_dimension_numbers<[1], [0], [0], [1], [0, 0, 1, 1], [], []>} : vector<7x32xf32>, vector<32x32xf32>, vector<7x32xf32> -> vector<7x32xf32>
    %32 = arith.addf %29, %31 : vector<7x32xf32>
    %c1_20 = arith.constant 1 : index
    %c0_21 = arith.constant 0 : index
    %c0_22 = arith.constant 0 : index
    %33 = vector.load %arg8[%c1_20, %c0_21, %c0_22] : memref<5x1x32xf32, #tpu.memory_space<vmem>>, vector<1x1x32xf32>
    %34 = vector.shape_cast %33 : vector<1x1x32xf32> to vector<1x32xf32>
    %35 = vector.broadcast %34 : vector<1x32xf32> to vector<7x32xf32>
    %36 = arith.addf %32, %35 : vector<7x32xf32>
    %c2 = arith.constant 2 : index
    %c0_23 = arith.constant 0 : index
    %c0_24 = arith.constant 0 : index
    %37 = vector.load %arg7[%c2, %c0_23, %c0_24] : memref<5x64x32xf32, #tpu.memory_space<vmem>>, vector<1x64x32xf32>
    %38 = vector.shape_cast %37 : vector<1x64x32xf32> to vector<64x32xf32>
    %39 = vector.extract_strided_slice %38 {offsets = [0, 0], sizes = [32, 32], strides = [1, 1]} : vector<64x32xf32> to vector<32x32xf32>
    %cst_25 = arith.constant dense<0.000000e+00> : vector<7x32xf32>
    %40 = tpu.matmul %11, %39, %cst_25 {dimension_numbers = #tpu.dot_dimension_numbers<[1], [0], [0], [1], [0, 0, 1, 1], [], []>} : vector<7x32xf32>, vector<32x32xf32>, vector<7x32xf32> -> vector<7x32xf32>
    %41 = vector.extract_strided_slice %38 {offsets = [32, 0], sizes = [32, 32], strides = [1, 1]} : vector<64x32xf32> to vector<32x32xf32>
    %cst_26 = arith.constant dense<0.000000e+00> : vector<7x32xf32>
    %42 = tpu.matmul %12, %41, %cst_26 {dimension_numbers = #tpu.dot_dimension_numbers<[1], [0], [0], [1], [0, 0, 1, 1], [], []>} : vector<7x32xf32>, vector<32x32xf32>, vector<7x32xf32> -> vector<7x32xf32>
    %43 = arith.addf %40, %42 : vector<7x32xf32>
    %c2_27 = arith.constant 2 : index
    %c0_28 = arith.constant 0 : index
    %c0_29 = arith.constant 0 : index
    %44 = vector.load %arg8[%c2_27, %c0_28, %c0_29] : memref<5x1x32xf32, #tpu.memory_space<vmem>>, vector<1x1x32xf32>
    %45 = vector.shape_cast %44 : vector<1x1x32xf32> to vector<1x32xf32>
    %46 = vector.broadcast %45 : vector<1x32xf32> to vector<7x32xf32>
    %47 = arith.addf %43, %46 : vector<7x32xf32>
    %c3 = arith.constant 3 : index
    %c0_30 = arith.constant 0 : index
    %c0_31 = arith.constant 0 : index
    %48 = vector.load %arg7[%c3, %c0_30, %c0_31] : memref<5x64x32xf32, #tpu.memory_space<vmem>>, vector<1x64x32xf32>
    %49 = vector.shape_cast %48 : vector<1x64x32xf32> to vector<64x32xf32>
    %50 = vector.extract_strided_slice %49 {offsets = [0, 0], sizes = [32, 32], strides = [1, 1]} : vector<64x32xf32> to vector<32x32xf32>
    %cst_32 = arith.constant dense<0.000000e+00> : vector<7x32xf32>
    %51 = tpu.matmul %11, %50, %cst_32 {dimension_numbers = #tpu.dot_dimension_numbers<[1], [0], [0], [1], [0, 0, 1, 1], [], []>} : vector<7x32xf32>, vector<32x32xf32>, vector<7x32xf32> -> vector<7x32xf32>
    %52 = vector.extract_strided_slice %49 {offsets = [32, 0], sizes = [32, 32], strides = [1, 1]} : vector<64x32xf32> to vector<32x32xf32>
    %cst_33 = arith.constant dense<0.000000e+00> : vector<7x32xf32>
    %53 = tpu.matmul %12, %52, %cst_33 {dimension_numbers = #tpu.dot_dimension_numbers<[1], [0], [0], [1], [0, 0, 1, 1], [], []>} : vector<7x32xf32>, vector<32x32xf32>, vector<7x32xf32> -> vector<7x32xf32>
    %54 = arith.addf %51, %53 : vector<7x32xf32>
    %c3_34 = arith.constant 3 : index
    %c0_35 = arith.constant 0 : index
    %c0_36 = arith.constant 0 : index
    %55 = vector.load %arg8[%c3_34, %c0_35, %c0_36] : memref<5x1x32xf32, #tpu.memory_space<vmem>>, vector<1x1x32xf32>
    %56 = vector.shape_cast %55 : vector<1x1x32xf32> to vector<1x32xf32>
    %57 = vector.broadcast %56 : vector<1x32xf32> to vector<7x32xf32>
    %58 = arith.addf %54, %57 : vector<7x32xf32>
    %c4 = arith.constant 4 : index
    %c0_37 = arith.constant 0 : index
    %c0_38 = arith.constant 0 : index
    %59 = vector.load %arg7[%c4, %c0_37, %c0_38] : memref<5x64x32xf32, #tpu.memory_space<vmem>>, vector<1x64x32xf32>
    %60 = vector.shape_cast %59 : vector<1x64x32xf32> to vector<64x32xf32>
    %61 = vector.extract_strided_slice %60 {offsets = [0, 0], sizes = [32, 32], strides = [1, 1]} : vector<64x32xf32> to vector<32x32xf32>
    %cst_39 = arith.constant dense<0.000000e+00> : vector<7x32xf32>
    %62 = tpu.matmul %11, %61, %cst_39 {dimension_numbers = #tpu.dot_dimension_numbers<[1], [0], [0], [1], [0, 0, 1, 1], [], []>} : vector<7x32xf32>, vector<32x32xf32>, vector<7x32xf32> -> vector<7x32xf32>
    %63 = vector.extract_strided_slice %60 {offsets = [32, 0], sizes = [32, 32], strides = [1, 1]} : vector<64x32xf32> to vector<32x32xf32>
    %cst_40 = arith.constant dense<0.000000e+00> : vector<7x32xf32>
    %64 = tpu.matmul %12, %63, %cst_40 {dimension_numbers = #tpu.dot_dimension_numbers<[1], [0], [0], [1], [0, 0, 1, 1], [], []>} : vector<7x32xf32>, vector<32x32xf32>, vector<7x32xf32> -> vector<7x32xf32>
    %65 = arith.addf %62, %64 : vector<7x32xf32>
    %c4_41 = arith.constant 4 : index
    %c0_42 = arith.constant 0 : index
    %c0_43 = arith.constant 0 : index
    %66 = vector.load %arg8[%c4_41, %c0_42, %c0_43] : memref<5x1x32xf32, #tpu.memory_space<vmem>>, vector<1x1x32xf32>
    %67 = vector.shape_cast %66 : vector<1x1x32xf32> to vector<1x32xf32>
    %68 = vector.broadcast %67 : vector<1x32xf32> to vector<7x32xf32>
    %69 = arith.addf %65, %68 : vector<7x32xf32>
    %cst_44 = arith.constant 1.000000e+00 : f32
    %70 = vector.broadcast %cst_44 : f32 to vector<7x32xf32>
    %71 = arith.addf %36, %70 : vector<7x32xf32>
    %72 = arith.negf %71 : vector<7x32xf32>
    %73 = math.exp %72 : vector<7x32xf32>
    %cst_45 = arith.constant 1.000000e+00 : f32
    %74 = vector.broadcast %cst_45 : f32 to vector<7x32xf32>
    %75 = arith.addf %74, %73 : vector<7x32xf32>
    %76 = arith.divf %74, %75 : vector<7x32xf32>
    %77 = arith.mulf %13, %76 : vector<7x32xf32>
    %cst_46 = arith.constant 1.000000e+00 : f32
    %78 = vector.broadcast %cst_46 : f32 to vector<7x32xf32>
    %79 = arith.addf %47, %78 : vector<7x32xf32>
    %80 = arith.negf %79 : vector<7x32xf32>
    %81 = math.exp %80 : vector<7x32xf32>
    %cst_47 = arith.constant 1.000000e+00 : f32
    %82 = vector.broadcast %cst_47 : f32 to vector<7x32xf32>
    %83 = arith.addf %82, %81 : vector<7x32xf32>
    %84 = arith.divf %82, %83 : vector<7x32xf32>
    %85 = arith.mulf %14, %84 : vector<7x32xf32>
    %86 = arith.addf %77, %85 : vector<7x32xf32>
    %87 = math.tanh %58 : vector<7x32xf32>
    %88 = arith.negf %25 : vector<7x32xf32>
    %89 = math.exp %88 : vector<7x32xf32>
    %cst_48 = arith.constant 1.000000e+00 : f32
    %90 = vector.broadcast %cst_48 : f32 to vector<7x32xf32>
    %91 = arith.addf %90, %89 : vector<7x32xf32>
    %92 = arith.divf %90, %91 : vector<7x32xf32>
    %93 = arith.mulf %87, %92 : vector<7x32xf32>
    %94 = arith.addf %86, %93 : vector<7x32xf32>
    %95 = arith.negf %69 : vector<7x32xf32>
    %96 = math.exp %95 : vector<7x32xf32>
    %cst_49 = arith.constant 1.000000e+00 : f32
    %97 = vector.broadcast %cst_49 : f32 to vector<7x32xf32>
    %98 = arith.addf %97, %96 : vector<7x32xf32>
    %99 = arith.divf %97, %98 : vector<7x32xf32>
    %100 = math.tanh %94 : vector<7x32xf32>
    %101 = arith.mulf %99, %100 : vector<7x32xf32>
    %102 = vector.broadcast %3 : vector<1x32xf32> to vector<7x32xf32>
    %103 = arith.mulf %101, %102 : vector<7x32xf32>
    %cst_50 = arith.constant dense<0.000000e+00> : vector<7xf32>
    %104 = vector.multi_reduction <add>, %103, %cst_50 [1] : vector<7x32xf32> to vector<7xf32>
    %105 = vector.shape_cast %104 : vector<7xf32> to vector<7x1xf32>
    %c1_i32 = arith.constant 1 : i32
    %106 = arith.addi %arg0, %c1_i32 : i32
    %107 = vector.broadcast %106 : i32 to vector<7x1xi32>
    %108 = arith.addi %4, %107 : vector<7x1xi32>
    %109 = vector.broadcast %6 : i32 to vector<7x1xi32>
    %110 = arith.cmpi slt, %108, %109 : vector<7x1xi32>
    %cst_51 = arith.constant -1.000000e+09 : f32
    %111 = vector.broadcast %cst_51 : f32 to vector<7x1xf32>
    %112 = arith.select %110, %105, %111 : vector<7x1xi1>, vector<7x1xf32>
    %113 = vector.shape_cast %112 : vector<7x1xf32> to vector<1x7x1xf32>
    %cst_52 = arith.constant dense<0xFF800000> : vector<1xf32>
    %114 = vector.multi_reduction <maximumf>, %113, %cst_52 [1, 2] : vector<1x7x1xf32> to vector<1xf32>
    %115 = vector.shape_cast %114 : vector<1xf32> to vector<1x1x1xf32>
    %116 = vector.extract %115[0, 0, 0] : f32 from vector<1x1x1xf32>
    %117 = vector.broadcast %116 : f32 to vector<7x1xf32>
    %118 = arith.cmpf oeq, %112, %117 : vector<7x1xf32>
    %c7_i32 = arith.constant 7 : i32
    %119 = vector.broadcast %c7_i32 : i32 to vector<7x1xi32>
    %120 = arith.select %118, %4, %119 : vector<7x1xi1>, vector<7x1xi32>
    %121 = vector.shape_cast %120 : vector<7x1xi32> to vector<1x7x1xi32>
    %cst_53 = arith.constant dense<2147483647> : vector<1xi32>
    %122 = vector.multi_reduction <minsi>, %121, %cst_53 [1, 2] : vector<1x7x1xi32> to vector<1xi32>
    %123 = vector.shape_cast %122 : vector<1xi32> to vector<1x1x1xi32>
    %124 = vector.extract %123[0, 0, 0] : i32 from vector<1x1x1xi32>
    %125 = vector.broadcast %124 : i32 to vector<7x32xi32>
    %126 = arith.cmpi slt, %5, %125 : vector<7x32xi32>
    %127 = vector.broadcast %124 : i32 to vector<7x32xi32>
    %128 = arith.cmpi eq, %5, %127 : vector<7x32xi32>
    %129 = arith.select %128, %101, %12 : vector<7x32xi1>, vector<7x32xf32>
    %130 = arith.select %126, %11, %129 : vector<7x32xi1>, vector<7x32xf32>
    %131 = vector.broadcast %124 : i32 to vector<7x32xi32>
    %132 = arith.cmpi slt, %5, %131 : vector<7x32xi32>
    %133 = vector.broadcast %124 : i32 to vector<7x32xi32>
    %134 = arith.cmpi eq, %5, %133 : vector<7x32xi32>
    %135 = arith.select %134, %94, %14 : vector<7x32xi1>, vector<7x32xf32>
    %136 = arith.select %132, %13, %135 : vector<7x32xi1>, vector<7x32xf32>
    %c1_i32_54 = arith.constant 1 : i32
    %137 = arith.addi %arg0, %c1_i32_54 : i32
    %138 = arith.cmpi slt, %137, %6 : i32
    %139 = arith.select %138, %130, %11 : vector<7x32xf32>
    %140 = arith.select %138, %136, %13 : vector<7x32xf32>
    %c0_55 = arith.constant 0 : index
    %c0_56 = arith.constant 0 : index
    %c0_57 = arith.constant 0 : index
    %141 = vector.load %arg12[%c0_55, %c0_56, %c0_57] : memref<2x8x32xf32, #tpu.memory_space<vmem>>, vector<1x7x32xf32>
    %142 = vector.shape_cast %141 : vector<1x7x32xf32> to vector<7x32xf32>
    %143 = vector.shape_cast %139 : vector<7x32xf32> to vector<1x7x32xf32>
    tpu.vector_store %arg12[%c0_55, %c0_56, %c0_57], %143 {strides = array<i32>} : memref<2x8x32xf32, #tpu.memory_space<vmem>>, vector<1x7x32xf32>,
    %c0_58 = arith.constant 0 : index
    %c0_59 = arith.constant 0 : index
    %c0_60 = arith.constant 0 : index
    %144 = vector.load %arg13[%c0_58, %c0_59, %c0_60] : memref<2x8x32xf32, #tpu.memory_space<vmem>>, vector<1x7x32xf32>
    %145 = vector.shape_cast %144 : vector<1x7x32xf32> to vector<7x32xf32>
    %146 = vector.shape_cast %140 : vector<7x32xf32> to vector<1x7x32xf32>
    tpu.vector_store %arg13[%c0_58, %c0_59, %c0_60], %146 {strides = array<i32>} : memref<2x8x32xf32, #tpu.memory_space<vmem>>, vector<1x7x32xf32>,
    %147 = vector.extract_strided_slice %139 {offsets = [0, 0], sizes = [1, 32], strides = [1, 1]} : vector<7x32xf32> to vector<1x32xf32>
    %c0_61 = arith.constant 0 : index
    %c0_62 = arith.constant 0 : index
    %148 = vector.load %arg10[%c0_61, %c0_62] : memref<2x32xf32, #tpu.memory_space<vmem>>, vector<1x32xf32>
    tpu.vector_store %arg10[%c0_61, %c0_62], %147 {strides = array<i32>} : memref<2x32xf32, #tpu.memory_space<vmem>>, vector<1x32xf32>,
    %149 = vector.extract_strided_slice %140 {offsets = [0, 0], sizes = [1, 32], strides = [1, 1]} : vector<7x32xf32> to vector<1x32xf32>
    %c0_63 = arith.constant 0 : index
    %c0_64 = arith.constant 0 : index
    %150 = vector.load %arg11[%c0_63, %c0_64] : memref<2x32xf32, #tpu.memory_space<vmem>>, vector<1x32xf32>
    tpu.vector_store %arg11[%c0_63, %c0_64], %149 {strides = array<i32>} : memref<2x32xf32, #tpu.memory_space<vmem>>, vector<1x32xf32>,
    %c1_65 = arith.constant 1 : index
    %151 = memref.load %arg1[%c1_65] : memref<2xi32, #tpu.memory_space<smem>>
    %c1_66 = arith.constant 1 : index
    %c0_67 = arith.constant 0 : index
    %c0_68 = arith.constant 0 : index
    %152 = vector.load %arg12[%c1_66, %c0_67, %c0_68] : memref<2x8x32xf32, #tpu.memory_space<vmem>>, vector<1x8x32xf32>
    %153 = vector.shape_cast %152 : vector<1x8x32xf32> to vector<8x32xf32>
    %c1_69 = arith.constant 1 : index
    %c0_70 = arith.constant 0 : index
    %c0_71 = arith.constant 0 : index
    %154 = vector.load %arg13[%c1_69, %c0_70, %c0_71] : memref<2x8x32xf32, #tpu.memory_space<vmem>>, vector<1x8x32xf32>
    %155 = vector.shape_cast %154 : vector<1x8x32xf32> to vector<8x32xf32>
    %156 = vector.extract_strided_slice %153 {offsets = [0, 0], sizes = [7, 32], strides = [1, 1]} : vector<8x32xf32> to vector<7x32xf32>
    %157 = vector.extract_strided_slice %153 {offsets = [1, 0], sizes = [7, 32], strides = [1, 1]} : vector<8x32xf32> to vector<7x32xf32>
    %158 = vector.extract_strided_slice %155 {offsets = [0, 0], sizes = [7, 32], strides = [1, 1]} : vector<8x32xf32> to vector<7x32xf32>
    %159 = vector.extract_strided_slice %155 {offsets = [1, 0], sizes = [7, 32], strides = [1, 1]} : vector<8x32xf32> to vector<7x32xf32>
    %c0_72 = arith.constant 0 : index
    %c0_73 = arith.constant 0 : index
    %c0_74 = arith.constant 0 : index
    %160 = vector.load %arg7[%c0_72, %c0_73, %c0_74] : memref<5x64x32xf32, #tpu.memory_space<vmem>>, vector<1x64x32xf32>
    %161 = vector.shape_cast %160 : vector<1x64x32xf32> to vector<64x32xf32>
    %162 = vector.extract_strided_slice %161 {offsets = [0, 0], sizes = [32, 32], strides = [1, 1]} : vector<64x32xf32> to vector<32x32xf32>
    %cst_75 = arith.constant dense<0.000000e+00> : vector<7x32xf32>
    %163 = tpu.matmul %156, %162, %cst_75 {dimension_numbers = #tpu.dot_dimension_numbers<[1], [0], [0], [1], [0, 0, 1, 1], [], []>} : vector<7x32xf32>, vector<32x32xf32>, vector<7x32xf32> -> vector<7x32xf32>
    %164 = vector.extract_strided_slice %161 {offsets = [32, 0], sizes = [32, 32], strides = [1, 1]} : vector<64x32xf32> to vector<32x32xf32>
    %cst_76 = arith.constant dense<0.000000e+00> : vector<7x32xf32>
    %165 = tpu.matmul %157, %164, %cst_76 {dimension_numbers = #tpu.dot_dimension_numbers<[1], [0], [0], [1], [0, 0, 1, 1], [], []>} : vector<7x32xf32>, vector<32x32xf32>, vector<7x32xf32> -> vector<7x32xf32>
    %166 = arith.addf %163, %165 : vector<7x32xf32>
    %c0_77 = arith.constant 0 : index
    %c0_78 = arith.constant 0 : index
    %c0_79 = arith.constant 0 : index
    %167 = vector.load %arg8[%c0_77, %c0_78, %c0_79] : memref<5x1x32xf32, #tpu.memory_space<vmem>>, vector<1x1x32xf32>
    %168 = vector.shape_cast %167 : vector<1x1x32xf32> to vector<1x32xf32>
    %169 = vector.broadcast %168 : vector<1x32xf32> to vector<7x32xf32>
    %170 = arith.addf %166, %169 : vector<7x32xf32>
    %c1_80 = arith.constant 1 : index
    %c0_81 = arith.constant 0 : index
    %c0_82 = arith.constant 0 : index
    %171 = vector.load %arg7[%c1_80, %c0_81, %c0_82] : memref<5x64x32xf32, #tpu.memory_space<vmem>>, vector<1x64x32xf32>
    %172 = vector.shape_cast %171 : vector<1x64x32xf32> to vector<64x32xf32>
    %173 = vector.extract_strided_slice %172 {offsets = [0, 0], sizes = [32, 32], strides = [1, 1]} : vector<64x32xf32> to vector<32x32xf32>
    %cst_83 = arith.constant dense<0.000000e+00> : vector<7x32xf32>
    %174 = tpu.matmul %156, %173, %cst_83 {dimension_numbers = #tpu.dot_dimension_numbers<[1], [0], [0], [1], [0, 0, 1, 1], [], []>} : vector<7x32xf32>, vector<32x32xf32>, vector<7x32xf32> -> vector<7x32xf32>
    %175 = vector.extract_strided_slice %172 {offsets = [32, 0], sizes = [32, 32], strides = [1, 1]} : vector<64x32xf32> to vector<32x32xf32>
    %cst_84 = arith.constant dense<0.000000e+00> : vector<7x32xf32>
    %176 = tpu.matmul %157, %175, %cst_84 {dimension_numbers = #tpu.dot_dimension_numbers<[1], [0], [0], [1], [0, 0, 1, 1], [], []>} : vector<7x32xf32>, vector<32x32xf32>, vector<7x32xf32> -> vector<7x32xf32>
    %177 = arith.addf %174, %176 : vector<7x32xf32>
    %c1_85 = arith.constant 1 : index
    %c0_86 = arith.constant 0 : index
    %c0_87 = arith.constant 0 : index
    %178 = vector.load %arg8[%c1_85, %c0_86, %c0_87] : memref<5x1x32xf32, #tpu.memory_space<vmem>>, vector<1x1x32xf32>
    %179 = vector.shape_cast %178 : vector<1x1x32xf32> to vector<1x32xf32>
    %180 = vector.broadcast %179 : vector<1x32xf32> to vector<7x32xf32>
    %181 = arith.addf %177, %180 : vector<7x32xf32>
    %c2_88 = arith.constant 2 : index
    %c0_89 = arith.constant 0 : index
    %c0_90 = arith.constant 0 : index
    %182 = vector.load %arg7[%c2_88, %c0_89, %c0_90] : memref<5x64x32xf32, #tpu.memory_space<vmem>>, vector<1x64x32xf32>
    %183 = vector.shape_cast %182 : vector<1x64x32xf32> to vector<64x32xf32>
    %184 = vector.extract_strided_slice %183 {offsets = [0, 0], sizes = [32, 32], strides = [1, 1]} : vector<64x32xf32> to vector<32x32xf32>
    %cst_91 = arith.constant dense<0.000000e+00> : vector<7x32xf32>
    %185 = tpu.matmul %156, %184, %cst_91 {dimension_numbers = #tpu.dot_dimension_numbers<[1], [0], [0], [1], [0, 0, 1, 1], [], []>} : vector<7x32xf32>, vector<32x32xf32>, vector<7x32xf32> -> vector<7x32xf32>
    %186 = vector.extract_strided_slice %183 {offsets = [32, 0], sizes = [32, 32], strides = [1, 1]} : vector<64x32xf32> to vector<32x32xf32>
    %cst_92 = arith.constant dense<0.000000e+00> : vector<7x32xf32>
    %187 = tpu.matmul %157, %186, %cst_92 {dimension_numbers = #tpu.dot_dimension_numbers<[1], [0], [0], [1], [0, 0, 1, 1], [], []>} : vector<7x32xf32>, vector<32x32xf32>, vector<7x32xf32> -> vector<7x32xf32>
    %188 = arith.addf %185, %187 : vector<7x32xf32>
    %c2_93 = arith.constant 2 : index
    %c0_94 = arith.constant 0 : index
    %c0_95 = arith.constant 0 : index
    %189 = vector.load %arg8[%c2_93, %c0_94, %c0_95] : memref<5x1x32xf32, #tpu.memory_space<vmem>>, vector<1x1x32xf32>
    %190 = vector.shape_cast %189 : vector<1x1x32xf32> to vector<1x32xf32>
    %191 = vector.broadcast %190 : vector<1x32xf32> to vector<7x32xf32>
    %192 = arith.addf %188, %191 : vector<7x32xf32>
    %c3_96 = arith.constant 3 : index
    %c0_97 = arith.constant 0 : index
    %c0_98 = arith.constant 0 : index
    %193 = vector.load %arg7[%c3_96, %c0_97, %c0_98] : memref<5x64x32xf32, #tpu.memory_space<vmem>>, vector<1x64x32xf32>
    %194 = vector.shape_cast %193 : vector<1x64x32xf32> to vector<64x32xf32>
    %195 = vector.extract_strided_slice %194 {offsets = [0, 0], sizes = [32, 32], strides = [1, 1]} : vector<64x32xf32> to vector<32x32xf32>
    %cst_99 = arith.constant dense<0.000000e+00> : vector<7x32xf32>
    %196 = tpu.matmul %156, %195, %cst_99 {dimension_numbers = #tpu.dot_dimension_numbers<[1], [0], [0], [1], [0, 0, 1, 1], [], []>} : vector<7x32xf32>, vector<32x32xf32>, vector<7x32xf32> -> vector<7x32xf32>
    %197 = vector.extract_strided_slice %194 {offsets = [32, 0], sizes = [32, 32], strides = [1, 1]} : vector<64x32xf32> to vector<32x32xf32>
    %cst_100 = arith.constant dense<0.000000e+00> : vector<7x32xf32>
    %198 = tpu.matmul %157, %197, %cst_100 {dimension_numbers = #tpu.dot_dimension_numbers<[1], [0], [0], [1], [0, 0, 1, 1], [], []>} : vector<7x32xf32>, vector<32x32xf32>, vector<7x32xf32> -> vector<7x32xf32>
    %199 = arith.addf %196, %198 : vector<7x32xf32>
    %c3_101 = arith.constant 3 : index
    %c0_102 = arith.constant 0 : index
    %c0_103 = arith.constant 0 : index
    %200 = vector.load %arg8[%c3_101, %c0_102, %c0_103] : memref<5x1x32xf32, #tpu.memory_space<vmem>>, vector<1x1x32xf32>
    %201 = vector.shape_cast %200 : vector<1x1x32xf32> to vector<1x32xf32>
    %202 = vector.broadcast %201 : vector<1x32xf32> to vector<7x32xf32>
    %203 = arith.addf %199, %202 : vector<7x32xf32>
    %c4_104 = arith.constant 4 : index
    %c0_105 = arith.constant 0 : index
    %c0_106 = arith.constant 0 : index
    %204 = vector.load %arg7[%c4_104, %c0_105, %c0_106] : memref<5x64x32xf32, #tpu.memory_space<vmem>>, vector<1x64x32xf32>
    %205 = vector.shape_cast %204 : vector<1x64x32xf32> to vector<64x32xf32>
    %206 = vector.extract_strided_slice %205 {offsets = [0, 0], sizes = [32, 32], strides = [1, 1]} : vector<64x32xf32> to vector<32x32xf32>
    %cst_107 = arith.constant dense<0.000000e+00> : vector<7x32xf32>
    %207 = tpu.matmul %156, %206, %cst_107 {dimension_numbers = #tpu.dot_dimension_numbers<[1], [0], [0], [1], [0, 0, 1, 1], [], []>} : vector<7x32xf32>, vector<32x32xf32>, vector<7x32xf32> -> vector<7x32xf32>
    %208 = vector.extract_strided_slice %205 {offsets = [32, 0], sizes = [32, 32], strides = [1, 1]} : vector<64x32xf32> to vector<32x32xf32>
    %cst_108 = arith.constant dense<0.000000e+00> : vector<7x32xf32>
    %209 = tpu.matmul %157, %208, %cst_108 {dimension_numbers = #tpu.dot_dimension_numbers<[1], [0], [0], [1], [0, 0, 1, 1], [], []>} : vector<7x32xf32>, vector<32x32xf32>, vector<7x32xf32> -> vector<7x32xf32>
    %210 = arith.addf %207, %209 : vector<7x32xf32>
    %c4_109 = arith.constant 4 : index
    %c0_110 = arith.constant 0 : index
    %c0_111 = arith.constant 0 : index
    %211 = vector.load %arg8[%c4_109, %c0_110, %c0_111] : memref<5x1x32xf32, #tpu.memory_space<vmem>>, vector<1x1x32xf32>
    %212 = vector.shape_cast %211 : vector<1x1x32xf32> to vector<1x32xf32>
    %213 = vector.broadcast %212 : vector<1x32xf32> to vector<7x32xf32>
    %214 = arith.addf %210, %213 : vector<7x32xf32>
    %cst_112 = arith.constant 1.000000e+00 : f32
    %215 = vector.broadcast %cst_112 : f32 to vector<7x32xf32>
    %216 = arith.addf %181, %215 : vector<7x32xf32>
    %217 = arith.negf %216 : vector<7x32xf32>
    %218 = math.exp %217 : vector<7x32xf32>
    %cst_113 = arith.constant 1.000000e+00 : f32
    %219 = vector.broadcast %cst_113 : f32 to vector<7x32xf32>
    %220 = arith.addf %219, %218 : vector<7x32xf32>
    %221 = arith.divf %219, %220 : vector<7x32xf32>
    %222 = arith.mulf %158, %221 : vector<7x32xf32>
    %cst_114 = arith.constant 1.000000e+00 : f32
    %223 = vector.broadcast %cst_114 : f32 to vector<7x32xf32>
    %224 = arith.addf %192, %223 : vector<7x32xf32>
    %225 = arith.negf %224 : vector<7x32xf32>
    %226 = math.exp %225 : vector<7x32xf32>
    %cst_115 = arith.constant 1.000000e+00 : f32
    %227 = vector.broadcast %cst_115 : f32 to vector<7x32xf32>
    %228 = arith.addf %227, %226 : vector<7x32xf32>
    %229 = arith.divf %227, %228 : vector<7x32xf32>
    %230 = arith.mulf %159, %229 : vector<7x32xf32>
    %231 = arith.addf %222, %230 : vector<7x32xf32>
    %232 = math.tanh %203 : vector<7x32xf32>
    %233 = arith.negf %170 : vector<7x32xf32>
    %234 = math.exp %233 : vector<7x32xf32>
    %cst_116 = arith.constant 1.000000e+00 : f32
    %235 = vector.broadcast %cst_116 : f32 to vector<7x32xf32>
    %236 = arith.addf %235, %234 : vector<7x32xf32>
    %237 = arith.divf %235, %236 : vector<7x32xf32>
    %238 = arith.mulf %232, %237 : vector<7x32xf32>
    %239 = arith.addf %231, %238 : vector<7x32xf32>
    %240 = arith.negf %214 : vector<7x32xf32>
    %241 = math.exp %240 : vector<7x32xf32>
    %cst_117 = arith.constant 1.000000e+00 : f32
    %242 = vector.broadcast %cst_117 : f32 to vector<7x32xf32>
    %243 = arith.addf %242, %241 : vector<7x32xf32>
    %244 = arith.divf %242, %243 : vector<7x32xf32>
    %245 = math.tanh %239 : vector<7x32xf32>
    %246 = arith.mulf %244, %245 : vector<7x32xf32>
    %247 = vector.broadcast %3 : vector<1x32xf32> to vector<7x32xf32>
    %248 = arith.mulf %246, %247 : vector<7x32xf32>
    %cst_118 = arith.constant dense<0.000000e+00> : vector<7xf32>
    %249 = vector.multi_reduction <add>, %248, %cst_118 [1] : vector<7x32xf32> to vector<7xf32>
    %250 = vector.shape_cast %249 : vector<7xf32> to vector<7x1xf32>
    %c1_i32_119 = arith.constant 1 : i32
    %251 = arith.addi %arg0, %c1_i32_119 : i32
    %252 = vector.broadcast %251 : i32 to vector<7x1xi32>
    %253 = arith.addi %4, %252 : vector<7x1xi32>
    %254 = vector.broadcast %151 : i32 to vector<7x1xi32>
    %255 = arith.cmpi slt, %253, %254 : vector<7x1xi32>
    %cst_120 = arith.constant -1.000000e+09 : f32
    %256 = vector.broadcast %cst_120 : f32 to vector<7x1xf32>
    %257 = arith.select %255, %250, %256 : vector<7x1xi1>, vector<7x1xf32>
    %258 = vector.shape_cast %257 : vector<7x1xf32> to vector<1x7x1xf32>
    %cst_121 = arith.constant dense<0xFF800000> : vector<1xf32>
    %259 = vector.multi_reduction <maximumf>, %258, %cst_121 [1, 2] : vector<1x7x1xf32> to vector<1xf32>
    %260 = vector.shape_cast %259 : vector<1xf32> to vector<1x1x1xf32>
    %261 = vector.extract %260[0, 0, 0] : f32 from vector<1x1x1xf32>
    %262 = vector.broadcast %261 : f32 to vector<7x1xf32>
    %263 = arith.cmpf oeq, %257, %262 : vector<7x1xf32>
    %c7_i32_122 = arith.constant 7 : i32
    %264 = vector.broadcast %c7_i32_122 : i32 to vector<7x1xi32>
    %265 = arith.select %263, %4, %264 : vector<7x1xi1>, vector<7x1xi32>
    %266 = vector.shape_cast %265 : vector<7x1xi32> to vector<1x7x1xi32>
    %cst_123 = arith.constant dense<2147483647> : vector<1xi32>
    %267 = vector.multi_reduction <minsi>, %266, %cst_123 [1, 2] : vector<1x7x1xi32> to vector<1xi32>
    %268 = vector.shape_cast %267 : vector<1xi32> to vector<1x1x1xi32>
    %269 = vector.extract %268[0, 0, 0] : i32 from vector<1x1x1xi32>
    %270 = vector.broadcast %269 : i32 to vector<7x32xi32>
    %271 = arith.cmpi slt, %5, %270 : vector<7x32xi32>
    %272 = vector.broadcast %269 : i32 to vector<7x32xi32>
    %273 = arith.cmpi eq, %5, %272 : vector<7x32xi32>
    %274 = arith.select %273, %246, %157 : vector<7x32xi1>, vector<7x32xf32>
    %275 = arith.select %271, %156, %274 : vector<7x32xi1>, vector<7x32xf32>
    %276 = vector.broadcast %269 : i32 to vector<7x32xi32>
    %277 = arith.cmpi slt, %5, %276 : vector<7x32xi32>
    %278 = vector.broadcast %269 : i32 to vector<7x32xi32>
    %279 = arith.cmpi eq, %5, %278 : vector<7x32xi32>
    %280 = arith.select %279, %239, %159 : vector<7x32xi1>, vector<7x32xf32>
    %281 = arith.select %277, %158, %280 : vector<7x32xi1>, vector<7x32xf32>
    %c1_i32_124 = arith.constant 1 : i32
    %282 = arith.addi %arg0, %c1_i32_124 : i32
    %283 = arith.cmpi slt, %282, %151 : i32
    %284 = arith.select %283, %275, %156 : vector<7x32xf32>
    %285 = arith.select %283, %281, %158 : vector<7x32xf32>
    %c1_125 = arith.constant 1 : index
    %c0_126 = arith.constant 0 : index
    %c0_127 = arith.constant 0 : index
    %286 = vector.load %arg12[%c1_125, %c0_126, %c0_127] : memref<2x8x32xf32, #tpu.memory_space<vmem>>, vector<1x7x32xf32>
    %287 = vector.shape_cast %286 : vector<1x7x32xf32> to vector<7x32xf32>
    %288 = vector.shape_cast %284 : vector<7x32xf32> to vector<1x7x32xf32>
    tpu.vector_store %arg12[%c1_125, %c0_126, %c0_127], %288 {strides = array<i32>} : memref<2x8x32xf32, #tpu.memory_space<vmem>>, vector<1x7x32xf32>,
    %c1_128 = arith.constant 1 : index
    %c0_129 = arith.constant 0 : index
    %c0_130 = arith.constant 0 : index
    %289 = vector.load %arg13[%c1_128, %c0_129, %c0_130] : memref<2x8x32xf32, #tpu.memory_space<vmem>>, vector<1x7x32xf32>
    %290 = vector.shape_cast %289 : vector<1x7x32xf32> to vector<7x32xf32>
    %291 = vector.shape_cast %285 : vector<7x32xf32> to vector<1x7x32xf32>
    tpu.vector_store %arg13[%c1_128, %c0_129, %c0_130], %291 {strides = array<i32>} : memref<2x8x32xf32, #tpu.memory_space<vmem>>, vector<1x7x32xf32>,
    %292 = vector.extract_strided_slice %284 {offsets = [0, 0], sizes = [1, 32], strides = [1, 1]} : vector<7x32xf32> to vector<1x32xf32>
    %c1_131 = arith.constant 1 : index
    %c0_132 = arith.constant 0 : index
    %293 = vector.load %arg10[%c1_131, %c0_132] : memref<2x32xf32, #tpu.memory_space<vmem>>, vector<1x32xf32>
    tpu.vector_store %arg10[%c1_131, %c0_132], %292 {strides = array<i32>} : memref<2x32xf32, #tpu.memory_space<vmem>>, vector<1x32xf32>,
    %294 = vector.extract_strided_slice %285 {offsets = [0, 0], sizes = [1, 32], strides = [1, 1]} : vector<7x32xf32> to vector<1x32xf32>
    %c1_133 = arith.constant 1 : index
    %c0_134 = arith.constant 0 : index
    %295 = vector.load %arg11[%c1_133, %c0_134] : memref<2x32xf32, #tpu.memory_space<vmem>>, vector<1x32xf32>
    tpu.vector_store %arg11[%c1_133, %c0_134], %294 {strides = array<i32>} : memref<2x32xf32, #tpu.memory_space<vmem>>, vector<1x32xf32>,
    return
  }
  func.func @transform_0(%arg0: i32, %arg1: memref<2xi32, #tpu.memory_space<smem>>) -> (i32, i32, i32) {
    %c0_i32 = arith.constant 0 : i32
    %c0_i32_0 = arith.constant 0 : i32
    %c0_i32_1 = arith.constant 0 : i32
    %c0_i32_2 = arith.constant 0 : i32
    return %c0_i32, %c0_i32_0, %c0_i32_1 : i32, i32, i32
  }
  func.func @transform_1(%arg0: i32, %arg1: memref<2xi32, #tpu.memory_space<smem>>) -> (i32, i32) {
    %c0_i32 = arith.constant 0 : i32
    %c0_i32_0 = arith.constant 0 : i32
    %c0_i32_1 = arith.constant 0 : i32
    return %c0_i32, %c0_i32_0 : i32, i32
  }
  func.func @transform_2(%arg0: i32, %arg1: memref<2xi32, #tpu.memory_space<smem>>) -> (i32, i32) {
    %c0_i32 = arith.constant 0 : i32
    %c0_i32_0 = arith.constant 0 : i32
    %c0_i32_1 = arith.constant 0 : i32
    return %c0_i32, %c0_i32_0 : i32, i32
  }
  func.func @transform_3(%arg0: i32, %arg1: memref<2xi32, #tpu.memory_space<smem>>) -> (i32, i32) {
    %c0_i32 = arith.constant 0 : i32
    %c0_i32_0 = arith.constant 0 : i32
    %c0_i32_1 = arith.constant 0 : i32
    return %c0_i32, %c0_i32_0 : i32, i32
  }
  func.func @transform_4(%arg0: i32, %arg1: memref<2xi32, #tpu.memory_space<smem>>) -> (i32, i32) {
    %c0_i32 = arith.constant 0 : i32
    %c0_i32_0 = arith.constant 0 : i32
    %c0_i32_1 = arith.constant 0 : i32
    return %c0_i32, %c0_i32_0 : i32, i32
  }
  func.func @transform_5(%arg0: i32, %arg1: memref<2xi32, #tpu.memory_space<smem>>) -> (i32, i32, i32) {
    %c0_i32 = arith.constant 0 : i32
    %c0_i32_0 = arith.constant 0 : i32
    %c0_i32_1 = arith.constant 0 : i32
    %c0_i32_2 = arith.constant 0 : i32
    return %c0_i32, %c0_i32_0, %c0_i32_1 : i32, i32, i32
  }
  func.func @transform_6(%arg0: i32, %arg1: memref<2xi32, #tpu.memory_space<smem>>) -> (i32, i32, i32) {
    %c0_i32 = arith.constant 0 : i32
    %c0_i32_0 = arith.constant 0 : i32
    %c0_i32_1 = arith.constant 0 : i32
    %c0_i32_2 = arith.constant 0 : i32
    return %c0_i32, %c0_i32_0, %c0_i32_1 : i32, i32, i32
  }
  func.func @transform_7(%arg0: i32, %arg1: memref<2xi32, #tpu.memory_space<smem>>) -> (i32, i32) {
    %c0_i32 = arith.constant 0 : i32
    %c0_i32_0 = arith.constant 0 : i32
    %c0_i32_1 = arith.constant 0 : i32
    return %c0_i32, %c0_i32_0 : i32, i32
  }
  func.func @transform_8(%arg0: i32, %arg1: memref<2xi32, #tpu.memory_space<smem>>) -> (i32, i32) {
    %c0_i32 = arith.constant 0 : i32
    %c0_i32_0 = arith.constant 0 : i32
    %c0_i32_1 = arith.constant 0 : i32
    return %c0_i32, %c0_i32_0 : i32, i32
  }
  func.func @transform_9(%arg0: i32, %arg1: memref<2xi32, #tpu.memory_space<smem>>) -> (i32, i32) {
    %c0_i32 = arith.constant 0 : i32
    %c0_i32_0 = arith.constant 0 : i32
    %c0_i32_1 = arith.constant 0 : i32
    return %c0_i32, %c0_i32_0 : i32, i32
  }
}

</mosaic_0001>

<llo_original>
// kernel: tpu_custom_call.1
$region0: #{tpu_custom_call.1}
  #allocation0 [shape = 'u32[]', space=smem, size = 0x4, offset = 0x4, fixed_abs, tag = 'smem constant byte address 0x4 - core index']
  #allocation1 [shape = 'u32[144,128]{1,0:T(1,128)}', space=vmem, size = 0x12000, scoped, tag = 'internal scratch']
  #allocation2 [shape = 'f32[2,8,32]{2,1,0:T(8,128)}', space=vmem, size = 0x2000, scoped, tag = 'scratch operand']
  #allocation3 [shape = 'f32[2,8,32]{2,1,0:T(8,128)}', space=vmem, size = 0x2000, scoped, tag = 'scratch operand']
  #allocation4 [shape = 's32[1]{0}', space=sflag, size = 0x4, scoped, tag = 'scoped memory for tpu_custom_call.1']
  #allocation5 [shape = 'u8[512]{0}', space=smem, size = 0x200, scoped, tag = 'prefetched SMEM operand 0']
  %s0 = inlined_call_operand.vmem [shape: s32[2], index: 0, kind: input, shape index: {}]
  %s1 = inlined_call_operand.vmem [shape: f32[2,8,16], index: 1, kind: input, shape index: {}]
  %s2 = inlined_call_operand.vmem [shape: f32[16,32], index: 2, kind: input, shape index: {}]
  %s3 = inlined_call_operand.vmem [shape: f32[16,32], index: 3, kind: input, shape index: {}]
  %s4 = inlined_call_operand.vmem [shape: f32[1,32], index: 4, kind: input, shape index: {}]
  %s5 = inlined_call_operand.vmem [shape: f32[1,32], index: 5, kind: input, shape index: {}]
  %s6 = inlined_call_operand.vmem [shape: f32[5,64,32], index: 6, kind: input, shape index: {}]
  %s7 = inlined_call_operand.vmem [shape: f32[5,1,32], index: 7, kind: input, shape index: {}]
  %s8 = inlined_call_operand.vmem [shape: f32[1,32], index: 8, kind: input, shape index: {}]
  %s9 = inlined_call_operand.hbm [shape: f32[2,32], index: 9, kind: output, shape index: {0}]
  %s10 = inlined_call_operand.hbm [shape: f32[2,32], index: 10, kind: output, shape index: {1}]
  %11 = xla_tuple %s9, %s10
  %s12 = sld [smem:[#allocation0]]
  $region77: #{tpu_custom_call.1} parent=0
    _
  %s14 = ssub.s32 1, %s12
  %s15 = scalar_select 0, %s14, %s12
  %s16 = sshll.u32 %s0, 4
  %s17 = int_to_ptr.vmem [resolvable:$true] %s16
  %19 = dma.vmem_to_smem %s17, 16, [#allocation5], [#allocation4]
  %20 = dma.done [#allocation4], 16
  %21 = sfence
  $region1: #{tpu_custom_call.1} parent=0
    #allocation6 [shape = 'u8[1024]{0}', space=vmem, size = 0x400, scoped, tag = 'output window, operand 0, single buffered']
    #allocation7 [shape = 's32[2]{0}', space=sflag, size = 0x8, scoped, tag = 'scoped memory for tpu_custom_call.1']
    #allocation8 [shape = 'u8[1024]{0}', space=vmem, size = 0x400, scoped, tag = 'output window, operand 1, single buffered']
    #allocation9 [shape = 's32[1]{0}', space=sflag, size = 0x4, scoped, tag = 'scoped memory for tpu_custom_call.1']
    %22 = vsyncpa [#allocation7], 0
    %23 = vsyncpa [#allocation9], 0
    loop: start=0, step=1, limit=9
    $region2: #{tpu_custom_call.1} parent=1 // loop_pre_header
      _
    $region3: #{tpu_custom_call.1} parent=1 // loop_header
      %s25 = sphi 0, %s29
      %p26 = scmp.ge.s32.totalorder %s25, 9
      %s33 = sphi 0, %s33
      %s35 = sphi 0, %s33
      %s36 = sphi 0, %s35
      %s50 = sphi 0, %s36
      %s54 = sphi 0, %s54
      %s56 = sphi 0, %s54
      %s57 = sphi 0, %s56
      %s71 = sphi 0, %s57
      %s75 = sphi 0, %s75
      %s77 = sphi 0, %s75
      %s78 = sphi 0, %s77
      %s92 = sphi 0, %s78
      %s96 = sphi 0, %s96
      %s98 = sphi 0, %s96
      %s99 = sphi 0, %s98
      %s113 = sphi 0, %s99
      %s117 = sphi 0, %s117
      %s119 = sphi 0, %s117
      %s120 = sphi 0, %s119
      %s134 = sphi 0, %s120
      %s138 = sphi 0, %s138
      %s140 = sphi 0, %s138
      %s141 = sphi 0, %s140
      %s155 = sphi 0, %s141
      %s159 = sphi 0, %s159
      %s161 = sphi 0, %s159
      %s162 = sphi 0, %s161
      %s176 = sphi 0, %s162
      %s180 = sphi 0, %s180
      %s182 = sphi 0, %s180
      %s183 = sphi 0, %s182
      %s197 = sphi 0, %s183
      %s201 = sphi 0, %s201
      %s203 = sphi 0, %s201
      %s204 = sphi 0, %s203
      %s218 = sphi 0, %s204
      %s222 = sphi 0, %s222
      %s224 = sphi 0, %s222
      %s225 = sphi 0, %s224
      %s239 = sphi 0, %s225
    $region4: #{tpu_custom_call.1} parent=1 // loop_header_branch
      %28 = sbr.rel (%p26) target = $region8
    $region5: #{tpu_custom_call.1} parent=1 // loop_body
      %s30 = ssub.s32 %s25, 1
      %s31 = ssub.s32 %s25, 2
      %s32 = sadd.s32 %s25, 1
      %s34 = sadd.s32 %s33, 1
      %p37 = scmp.eq.s32.totalorder %s25, 6
      %p38 = scmp.ne.s32.totalorder %s33, %s35
      %p39 = scmp.eq.s32.totalorder %s25, 0
      %p40 = por %p38, %p39
      %p41 = scmp.ne.s32.totalorder %s33, %s35
      %p42 = scmp.eq.s32.totalorder %s30, 6
      %p43 = por %p41, %p42
      %p44 = scmp.ne.s32.totalorder %s35, %s36
      %p45 = scmp.eq.s32.totalorder %s30, 0
      %p46 = por %p44, %p45
      %p47 = scmp.ne.s32.totalorder %s35, %s36
      %p48 = scmp.eq.s32.totalorder %s31, 6
      %p49 = por %p47, %p48
      %p51 = scmp.ne.s32.totalorder %s36, %s50
      %p52 = scmp.eq.s32.totalorder %s31, 0
      %p53 = por %p51, %p52
      %s55 = sadd.s32 %s54, 1
      %p58 = scmp.eq.s32.totalorder %s25, 6
      %p59 = scmp.ne.s32.totalorder %s54, %s56
      %p60 = scmp.eq.s32.totalorder %s25, 0
      %p61 = por %p59, %p60
      %p62 = scmp.ne.s32.totalorder %s54, %s56
      %p63 = scmp.eq.s32.totalorder %s30, 6
      %p64 = por %p62, %p63
      %p65 = scmp.ne.s32.totalorder %s56, %s57
      %p66 = scmp.eq.s32.totalorder %s30, 0
      %p67 = por %p65, %p66
      %p68 = scmp.ne.s32.totalorder %s56, %s57
      %p69 = scmp.eq.s32.totalorder %s31, 6
      %p70 = por %p68, %p69
      %p72 = scmp.ne.s32.totalorder %s57, %s71
      %p73 = scmp.eq.s32.totalorder %s31, 0
      %p74 = por %p72, %p73
      %s76 = sadd.s32 %s75, 1
      %p79 = scmp.eq.s32.totalorder %s25, 6
      %p80 = scmp.ne.s32.totalorder %s75, %s77
      %p81 = scmp.eq.s32.totalorder %s25, 0
      %p82 = por %p80, %p81
      %p83 = scmp.ne.s32.totalorder %s75, %s77
      %p84 = scmp.eq.s32.totalorder %s30, 6
      %p85 = por %p83, %p84
      %p86 = scmp.ne.s32.totalorder %s77, %s78
      %p87 = scmp.eq.s32.totalorder %s30, 0
      %p88 = por %p86, %p87
      %p89 = scmp.ne.s32.totalorder %s77, %s78
      %p90 = scmp.eq.s32.totalorder %s31, 6
      %p91 = por %p89, %p90
      %p93 = scmp.ne.s32.totalorder %s78, %s92
      %p94 = scmp.eq.s32.totalorder %s31, 0
      %p95 = por %p93, %p94
      %s97 = sadd.s32 %s96, 1
      %p100 = scmp.eq.s32.totalorder %s25, 6
      %p101 = scmp.ne.s32.totalorder %s96, %s98
      %p102 = scmp.eq.s32.totalorder %s25, 0
      %p103 = por %p101, %p102
      %p104 = scmp.ne.s32.totalorder %s96, %s98
      %p105 = scmp.eq.s32.totalorder %s30, 6
      %p106 = por %p104, %p105
      %p107 = scmp.ne.s32.totalorder %s98, %s99
      %p108 = scmp.eq.s32.totalorder %s30, 0
      %p109 = por %p107, %p108
      %p110 = scmp.ne.s32.totalorder %s98, %s99
      %p111 = scmp.eq.s32.totalorder %s31, 6
      %p112 = por %p110, %p111
      %p114 = scmp.ne.s32.totalorder %s99, %s113
      %p115 = scmp.eq.s32.totalorder %s31, 0
      %p116 = por %p114, %p115
      %s118 = sadd.s32 %s117, 1
      %p121 = scmp.eq.s32.totalorder %s25, 6
      %p122 = scmp.ne.s32.totalorder %s117, %s119
      %p123 = scmp.eq.s32.totalorder %s25, 0
      %p124 = por %p122, %p123
      %p125 = scmp.ne.s32.totalorder %s117, %s119
      %p126 = scmp.eq.s32.totalorder %s30, 6
      %p127 = por %p125, %p126
      %p128 = scmp.ne.s32.totalorder %s119, %s120
      %p129 = scmp.eq.s32.totalorder %s30, 0
      %p130 = por %p128, %p129
      %p131 = scmp.ne.s32.totalorder %s119, %s120
      %p132 = scmp.eq.s32.totalorder %s31, 6
      %p133 = por %p131, %p132
      %p135 = scmp.ne.s32.totalorder %s120, %s134
      %p136 = scmp.eq.s32.totalorder %s31, 0
      %p137 = por %p135, %p136
      %s139 = sadd.s32 %s138, 1
      %p142 = scmp.eq.s32.totalorder %s25, 6
      %p143 = scmp.ne.s32.totalorder %s138, %s140
      %p144 = scmp.eq.s32.totalorder %s25, 0
      %p145 = por %p143, %p144
      %p146 = scmp.ne.s32.totalorder %s138, %s140
      %p147 = scmp.eq.s32.totalorder %s30, 6
      %p148 = por %p146, %p147
      %p149 = scmp.ne.s32.totalorder %s140, %s141
      %p150 = scmp.eq.s32.totalorder %s30, 0
      %p151 = por %p149, %p150
      %p152 = scmp.ne.s32.totalorder %s140, %s141
      %p153 = scmp.eq.s32.totalorder %s31, 6
      %p154 = por %p152, %p153
      %p156 = scmp.ne.s32.totalorder %s141, %s155
      %p157 = scmp.eq.s32.totalorder %s31, 0
      %p158 = por %p156, %p157
      %s160 = sadd.s32 %s159, 1
      %p163 = scmp.eq.s32.totalorder %s25, 6
      %p164 = scmp.ne.s32.totalorder %s159, %s161
      %p165 = scmp.eq.s32.totalorder %s25, 0
      %p166 = por %p164, %p165
      %p167 = scmp.ne.s32.totalorder %s159, %s161
      %p168 = scmp.eq.s32.totalorder %s30, 6
      %p169 = por %p167, %p168
      %p170 = scmp.ne.s32.totalorder %s161, %s162
      %p171 = scmp.eq.s32.totalorder %s30, 0
      %p172 = por %p170, %p171
      %p173 = scmp.ne.s32.totalorder %s161, %s162
      %p174 = scmp.eq.s32.totalorder %s31, 6
      %p175 = por %p173, %p174
      %p177 = scmp.ne.s32.totalorder %s162, %s176
      %p178 = scmp.eq.s32.totalorder %s31, 0
      %p179 = por %p177, %p178
      %s181 = sadd.s32 %s180, 1
      %p184 = scmp.eq.s32.totalorder %s25, 6
      %p185 = scmp.ne.s32.totalorder %s180, %s182
      %p186 = scmp.eq.s32.totalorder %s25, 0
      %p187 = por %p185, %p186
      %p188 = scmp.ne.s32.totalorder %s180, %s182
      %p189 = scmp.eq.s32.totalorder %s30, 6
      %p190 = por %p188, %p189
      %p191 = scmp.ne.s32.totalorder %s182, %s183
      %p192 = scmp.eq.s32.totalorder %s30, 0
      %p193 = por %p191, %p192
      %p194 = scmp.ne.s32.totalorder %s182, %s183
      %p195 = scmp.eq.s32.totalorder %s31, 6
      %p196 = por %p194, %p195
      %p198 = scmp.ne.s32.totalorder %s183, %s197
      %p199 = scmp.eq.s32.totalorder %s31, 0
      %p200 = por %p198, %p199
      %s202 = sadd.s32 %s201, 1
      %p205 = scmp.eq.s32.totalorder %s25, 6
      %p206 = scmp.ne.s32.totalorder %s201, %s203
      %p207 = scmp.eq.s32.totalorder %s25, 0
      %p208 = por %p206, %p207
      %p209 = scmp.ne.s32.totalorder %s201, %s203
      %p210 = scmp.eq.s32.totalorder %s30, 6
      %p211 = por %p209, %p210
      %p212 = scmp.ne.s32.totalorder %s203, %s204
      %p213 = scmp.eq.s32.totalorder %s30, 0
      %p214 = por %p212, %p213
      %p215 = scmp.ne.s32.totalorder %s203, %s204
      %p216 = scmp.eq.s32.totalorder %s31, 6
      %p217 = por %p215, %p216
      %p219 = scmp.ne.s32.totalorder %s204, %s218
      %p220 = scmp.eq.s32.totalorder %s31, 0
      %p221 = por %p219, %p220
      %s223 = sadd.s32 %s222, 1
      %p226 = scmp.eq.s32.totalorder %s25, 6
      %p227 = scmp.ne.s32.totalorder %s222, %s224
      %p228 = scmp.eq.s32.totalorder %s25, 0
      %p229 = por %p227, %p228
      %p230 = scmp.ne.s32.totalorder %s222, %s224
      %p231 = scmp.eq.s32.totalorder %s30, 6
      %p232 = por %p230, %p231
      %p233 = scmp.ne.s32.totalorder %s224, %s225
      %p234 = scmp.eq.s32.totalorder %s30, 0
      %p235 = por %p233, %p234
      %p236 = scmp.ne.s32.totalorder %s224, %s225
      %p237 = scmp.eq.s32.totalorder %s31, 6
      %p238 = por %p236, %p237
      %p240 = scmp.ne.s32.totalorder %s225, %s239
      %p241 = scmp.eq.s32.totalorder %s31, 0
      %p242 = por %p240, %p241
      %p243 = scmp.le.s32.totalorder 1, %s25
      %p244 = scmp.lt.s32.totalorder %s25, 8
      %p245 = pnand %p243, %p244
      %p246 = pneg %p245
      // Predicated region
      $region9: #{tpu_custom_call.1} parent=5 // pred_check
        _
      $region10: #{tpu_custom_call.1} parent=5 // pred_check_branch
        %248 = sbr.rel (%p245) target = $region12
      $region11: #{tpu_custom_call.1} parent=5 // pred_region
        %s249 = ssub.s32 %s25, 1
        // Predicated region
        $region13: #{tpu_custom_call.1} parent=11 // pred_check
          %p250 = pneg %p46
        $region14: #{tpu_custom_call.1} parent=11 // pred_check_branch
          %252 = sbr.rel (%p250) target = $region16
        $region15: #{tpu_custom_call.1} parent=11 // pred_region
          _
        $region16: #{tpu_custom_call.1} parent=11 // pred_fallthru
          _
        // Predicated region
        $region17: #{tpu_custom_call.1} parent=11 // pred_check
          %p253 = pneg %p67
        $region18: #{tpu_custom_call.1} parent=11 // pred_check_branch
          %255 = sbr.rel (%p253) target = $region20
        $region19: #{tpu_custom_call.1} parent=11 // pred_region
          _
        $region20: #{tpu_custom_call.1} parent=11 // pred_fallthru
          _
        // Predicated region
        $region21: #{tpu_custom_call.1} parent=11 // pred_check
          %p256 = pneg %p88
        $region22: #{tpu_custom_call.1} parent=11 // pred_check_branch
          %258 = sbr.rel (%p256) target = $region24
        $region23: #{tpu_custom_call.1} parent=11 // pred_region
          _
        $region24: #{tpu_custom_call.1} parent=11 // pred_fallthru
          _
        // Predicated region
        $region25: #{tpu_custom_call.1} parent=11 // pred_check
          %p259 = pneg %p109
        $region26: #{tpu_custom_call.1} parent=11 // pred_check_branch
          %261 = sbr.rel (%p259) target = $region28
        $region27: #{tpu_custom_call.1} parent=11 // pred_region
          _
        $region28: #{tpu_custom_call.1} parent=11 // pred_fallthru
          _
        // Predicated region
        $region29: #{tpu_custom_call.1} parent=11 // pred_check
          %p262 = pneg %p130
        $region30: #{tpu_custom_call.1} parent=11 // pred_check_branch
          %264 = sbr.rel (%p262) target = $region32
        $region31: #{tpu_custom_call.1} parent=11 // pred_region
          _
        $region32: #{tpu_custom_call.1} parent=11 // pred_fallthru
          _
        // Predicated region
        $region33: #{tpu_custom_call.1} parent=11 // pred_check
          %p265 = pneg %p151
        $region34: #{tpu_custom_call.1} parent=11 // pred_check_branch
          %267 = sbr.rel (%p265) target = $region36
        $region35: #{tpu_custom_call.1} parent=11 // pred_region
          _
        $region36: #{tpu_custom_call.1} parent=11 // pred_fallthru
          _
        // Predicated region
        $region37: #{tpu_custom_call.1} parent=11 // pred_check
          %p268 = pneg %p172
        $region38: #{tpu_custom_call.1} parent=11 // pred_check_branch
          %270 = sbr.rel (%p268) target = $region40
        $region39: #{tpu_custom_call.1} parent=11 // pred_region
          _
        $region40: #{tpu_custom_call.1} parent=11 // pred_fallthru
          _
        // Predicated region
        $region41: #{tpu_custom_call.1} parent=11 // pred_check
          %p271 = pneg %p193
        $region42: #{tpu_custom_call.1} parent=11 // pred_check_branch
          %273 = sbr.rel (%p271) target = $region44
        $region43: #{tpu_custom_call.1} parent=11 // pred_region
          _
        $region44: #{tpu_custom_call.1} parent=11 // pred_fallthru
          _
      $region12: #{tpu_custom_call.1} parent=5 // pred_fallthru
        _
      %p274 = scmp.lt.s32.totalorder %s25, 7
      // Predicated region
      $region45: #{tpu_custom_call.1} parent=5 // pred_check
        %p275 = pneg %p274
      $region46: #{tpu_custom_call.1} parent=5 // pred_check_branch
        %277 = sbr.rel (%p275) target = $region48
      $region47: #{tpu_custom_call.1} parent=5 // pred_region
        _
      $region48: #{tpu_custom_call.1} parent=5 // pred_fallthru
        _
      %p278 = scmp.le.s32.totalorder 1, %s25
      %p279 = scmp.lt.s32.totalorder %s25, 8
      %p280 = pnand %p278, %p279
      %p281 = pneg %p280
      // Predicated region
      $region49: #{tpu_custom_call.1} parent=5 // pred_check
        _
      $region50: #{tpu_custom_call.1} parent=5 // pred_check_branch
        %283 = sbr.rel (%p280) target = $region52
      $region51: #{tpu_custom_call.1} parent=5 // pred_region
        %s284 = ssub.s32 %s25, 1
        %p285 = pneg %p46
        %p286 = pneg %p43
        %p287 = pneg %p67
        %p288 = pneg %p64
        %p289 = pneg %p88
        %p290 = pneg %p85
        %p291 = pneg %p109
        %p292 = pneg %p106
        %p293 = pneg %p130
        %p294 = pneg %p127
        %p295 = pneg %p151
        %p296 = pneg %p148
        %p297 = pneg %p172
        %p298 = pneg %p169
        %p299 = pneg %p193
        %p300 = pneg %p190
        %p301 = pneg %p214
        %p302 = pneg %p211
        %p303 = pneg %p235
        %p304 = pneg %p232
        %p305 = scmp.eq.s32.totalorder %s30, 0
        // Predicated region
        $region53: #{tpu_custom_call.1} parent=51 // pred_check
          %p306 = pneg %p305
        $region54: #{tpu_custom_call.1} parent=51 // pred_check_branch
          %308 = sbr.rel (%p306) target = $region56
        $region55: #{tpu_custom_call.1} parent=51 // pred_region
          %v309 = vld [vmem:[%s2] sm:$0xff]
          %v310 = vld [vmem:[%s2 + $0x8] sm:$0xff]
          %v311 = vld [vmem:[%s3] sm:$0xff]
          %v312 = vld [vmem:[%s3 + $0x8] sm:$0xff]
          %v313 = vld [vmem:[%s4] sm:$0x1]
          %v314 = vld [vmem:[%s5] sm:$0x1]
          %v315 = vld [vmem:[%s1] sm:$0xff]
          %v317 = vlaneseq
          %v318 = vshrl.u32 %v317, 7
          %v319 = vsub.s32 0, %v318
          %v320 = vrot.slane %v313, %v319
          %vm322 = vcmask 130048
          %v324 = vsel %vm322, %v315, 0
          %326 = vmatprep.subr.mxu0 0.0
          %327 = vmatpush1.msra.mxu0 %v309
          %328 = vmatprep.subr.mxu0 0.0
          %329 = vmatpush1.msra.mxu0 %v310
          %330 = vmatprep.subr.mxu0 0.0
          %331 = vmatpush1.msra.mxu0 0.0
          %332 = vmatprep.subr.mxu0 0.0
          %333 = vmatpush1.msra.mxu0 0.0
          %334 = vmatprep.subr.mxu0 0.0
          %335 = vmatpush1.msra.mxu0 0.0
          %336 = vmatprep.subr.mxu0 0.0
          %337 = vmatpush1.msra.mxu0 0.0
          %338 = vmatprep.subr.mxu0 0.0
          %339 = vmatpush1.msra.mxu0 0.0
          %340 = vmatprep.subr.mxu0 0.0
          %341 = vmatpush1.msra.mxu0 0.0
          %342 = vmatprep.subr.mxu0 0.0
          %343 = vmatpush1.msra.mxu0 0.0
          %344 = vmatprep.subr.mxu0 0.0
          %345 = vmatpush1.msra.mxu0 0.0
          %346 = vmatprep.subr.mxu0 0.0
          %347 = vmatpush1.msra.mxu0 0.0
          %348 = vmatprep.subr.mxu0 0.0
          %349 = vmatpush1.msra.mxu0 0.0
          %350 = vmatprep.subr.mxu0 0.0
          %351 = vmatpush1.msra.mxu0 0.0
          %352 = vmatprep.subr.mxu0 0.0
          %353 = vmatpush1.msra.mxu0 0.0
          %354 = vmatprep.subr.mxu0 0.0
          %355 = vmatpush1.msra.mxu0 0.0
          %356 = vmatprep.subr.mxu0 0.0
          %357 = vmatpush1.msra.mxu0 0.0
          %358 = vmatprep.subr.mxu0 0.0
          %359 = vmatpush1.msra.mxu0 0.0
          %360 = vmatprep.subr.mxu0 0.0
          %361 = vmatpush1.msra.mxu0 0.0
          %362 = vmatprep.subr.mxu0 0.0
          %363 = vmatpush1.msra.mxu0 0.0
          %364 = vmatprep.subr.mxu0 0.0
          %365 = vmatpush1.msra.mxu0 0.0
          %366 = vmatprep.subr.mxu0 0.0
          %367 = vmatpush1.msra.mxu0 0.0
          %368 = vmatprep.subr.mxu0 0.0
          %369 = vmatpush1.msra.mxu0 0.0
          %370 = vmatprep.subr.mxu0 0.0
          %371 = vmatpush1.msra.mxu0 0.0
          %372 = vmatprep.subr.mxu0 0.0
          %373 = vmatpush1.msra.mxu0 0.0
          %374 = vmatprep.subr.mxu0 0.0
          %375 = vmatpush1.msra.mxu0 0.0
          %376 = vmatprep.subr.mxu0 0.0
          %377 = vmatpush1.msra.mxu0 0.0
          %378 = vmatprep.subr.mxu0 0.0
          %379 = vmatpush1.msra.mxu0 0.0
          %380 = vmatprep.subr.mxu0 0.0
          %381 = vmatpush1.msra.mxu0 0.0
          %382 = vmatprep.subr.mxu0 0.0
          %383 = vmatpush1.msra.mxu0 0.0
          %384 = vmatprep.subr.mxu0 0.0
          %385 = vmatpush1.msra.mxu0 0.0
          %386 = vmatprep.subr.mxu0 0.0
          %387 = vmatpush1.msra.mxu0 0.0
          %388 = vmatprep.subr.mxu0 0.0
          %389 = vmatpush1.msra.mxu0 0.0
          %390 = vmatprep.mubr.f32.mxu0 0.0
          %391 = vmatmul.mubr.f32.gmra.mrb[0].mxu0 %v324
          %v392 = vpop.f32.mrb[0].mxu0
          %v393 = vadd.f32 %v320, %v392
          %v394 = vpop.f32.mrb[0].mxu0
          %395 = vdwg.mxu0
          %vm396 = vcmask 261120
          %397 = vst.msk [vmem:[#allocation2] sm:$0xff] %vm396, %v393
          %v399 = vlaneseq
          %v400 = vshrl.u32 %v399, 7
          %v401 = vsub.s32 0, %v400
          %v402 = vrot.slane %v314, %v401
          %404 = vmatprep.subr.mxu0 0.0
          %405 = vmatpush1.msra.mxu0 %v311
          %406 = vmatprep.subr.mxu0 0.0
          %407 = vmatpush1.msra.mxu0 %v312
          %408 = vmatprep.subr.mxu0 0.0
          %409 = vmatpush1.msra.mxu0 0.0
          %410 = vmatprep.subr.mxu0 0.0
          %411 = vmatpush1.msra.mxu0 0.0
          %412 = vmatprep.subr.mxu0 0.0
          %413 = vmatpush1.msra.mxu0 0.0
          %414 = vmatprep.subr.mxu0 0.0
          %415 = vmatpush1.msra.mxu0 0.0
          %416 = vmatprep.subr.mxu0 0.0
          %417 = vmatpush1.msra.mxu0 0.0
          %418 = vmatprep.subr.mxu0 0.0
          %419 = vmatpush1.msra.mxu0 0.0
          %420 = vmatprep.subr.mxu0 0.0
          %421 = vmatpush1.msra.mxu0 0.0
          %422 = vmatprep.subr.mxu0 0.0
          %423 = vmatpush1.msra.mxu0 0.0
          %424 = vmatprep.subr.mxu0 0.0
          %425 = vmatpush1.msra.mxu0 0.0
          %426 = vmatprep.subr.mxu0 0.0
          %427 = vmatpush1.msra.mxu0 0.0
          %428 = vmatprep.subr.mxu0 0.0
          %429 = vmatpush1.msra.mxu0 0.0
          %430 = vmatprep.subr.mxu0 0.0
          %431 = vmatpush1.msra.mxu0 0.0
          %432 = vmatprep.subr.mxu0 0.0
          %433 = vmatpush1.msra.mxu0 0.0
          %434 = vmatprep.subr.mxu0 0.0
          %435 = vmatpush1.msra.mxu0 0.0
          %436 = vmatprep.subr.mxu0 0.0
          %437 = vmatpush1.msra.mxu0 0.0
          %438 = vmatprep.subr.mxu0 0.0
          %439 = vmatpush1.msra.mxu0 0.0
          %440 = vmatprep.subr.mxu0 0.0
          %441 = vmatpush1.msra.mxu0 0.0
          %442 = vmatprep.subr.mxu0 0.0
          %443 = vmatpush1.msra.mxu0 0.0
          %444 = vmatprep.subr.mxu0 0.0
          %445 = vmatpush1.msra.mxu0 0.0
          %446 = vmatprep.subr.mxu0 0.0
          %447 = vmatpush1.msra.mxu0 0.0
          %448 = vmatprep.subr.mxu0 0.0
          %449 = vmatpush1.msra.mxu0 0.0
          %450 = vmatprep.subr.mxu0 0.0
          %451 = vmatpush1.msra.mxu0 0.0
          %452 = vmatprep.subr.mxu0 0.0
          %453 = vmatpush1.msra.mxu0 0.0
          %454 = vmatprep.subr.mxu0 0.0
          %455 = vmatpush1.msra.mxu0 0.0
          %456 = vmatprep.subr.mxu0 0.0
          %457 = vmatpush1.msra.mxu0 0.0
          %458 = vmatprep.subr.mxu0 0.0
          %459 = vmatpush1.msra.mxu0 0.0
          %460 = vmatprep.subr.mxu0 0.0
          %461 = vmatpush1.msra.mxu0 0.0
          %462 = vmatprep.subr.mxu0 0.0
          %463 = vmatpush1.msra.mxu0 0.0
          %464 = vmatprep.subr.mxu0 0.0
          %465 = vmatpush1.msra.mxu0 0.0
          %466 = vmatprep.subr.mxu0 0.0
          %467 = vmatpush1.msra.mxu0 0.0
          %468 = vmatprep.mubr.f32.mxu0 0.0
          %469 = vmatmul.mubr.f32.gmra.mrb[0].mxu0 %v324
          %v470 = vpop.f32.mrb[0].mxu0
          %v471 = vadd.f32 %v402, %v470
          %v472 = vpop.f32.mrb[0].mxu0
          %473 = vdwg.mxu0
          %474 = vst.msk [vmem:[#allocation3] sm:$0xff] %vm396, %v471
          %s475 = scalar_lea.vmem %s1, 8
          %v476 = vld [vmem:[%s475] sm:$0xff]
          %v478 = vsel %vm322, %v476, 0
          %480 = vmatprep.subr.mxu0 0.0
          %481 = vmatpush1.msra.mxu0 %v309
          %482 = vmatprep.subr.mxu0 0.0
          %483 = vmatpush1.msra.mxu0 %v310
          %484 = vmatprep.subr.mxu0 0.0
          %485 = vmatpush1.msra.mxu0 0.0
          %486 = vmatprep.subr.mxu0 0.0
          %487 = vmatpush1.msra.mxu0 0.0
          %488 = vmatprep.subr.mxu0 0.0
          %489 = vmatpush1.msra.mxu0 0.0
          %490 = vmatprep.subr.mxu0 0.0
          %491 = vmatpush1.msra.mxu0 0.0
          %492 = vmatprep.subr.mxu0 0.0
          %493 = vmatpush1.msra.mxu0 0.0
          %494 = vmatprep.subr.mxu0 0.0
          %495 = vmatpush1.msra.mxu0 0.0
          %496 = vmatprep.subr.mxu0 0.0
          %497 = vmatpush1.msra.mxu0 0.0
          %498 = vmatprep.subr.mxu0 0.0
          %499 = vmatpush1.msra.mxu0 0.0
          %500 = vmatprep.subr.mxu0 0.0
          %501 = vmatpush1.msra.mxu0 0.0
          %502 = vmatprep.subr.mxu0 0.0
          %503 = vmatpush1.msra.mxu0 0.0
          %504 = vmatprep.subr.mxu0 0.0
          %505 = vmatpush1.msra.mxu0 0.0
          %506 = vmatprep.subr.mxu0 0.0
          %507 = vmatpush1.msra.mxu0 0.0
          %508 = vmatprep.subr.mxu0 0.0
          %509 = vmatpush1.msra.mxu0 0.0
          %510 = vmatprep.subr.mxu0 0.0
          %511 = vmatpush1.msra.mxu0 0.0
          %512 = vmatprep.subr.mxu0 0.0
          %513 = vmatpush1.msra.mxu0 0.0
          %514 = vmatprep.subr.mxu0 0.0
          %515 = vmatpush1.msra.mxu0 0.0
          %516 = vmatprep.subr.mxu0 0.0
          %517 = vmatpush1.msra.mxu0 0.0
          %518 = vmatprep.subr.mxu0 0.0
          %519 = vmatpush1.msra.mxu0 0.0
          %520 = vmatprep.subr.mxu0 0.0
          %521 = vmatpush1.msra.mxu0 0.0
          %522 = vmatprep.subr.mxu0 0.0
          %523 = vmatpush1.msra.mxu0 0.0
          %524 = vmatprep.subr.mxu0 0.0
          %525 = vmatpush1.msra.mxu0 0.0
          %526 = vmatprep.subr.mxu0 0.0
          %527 = vmatpush1.msra.mxu0 0.0
          %528 = vmatprep.subr.mxu0 0.0
          %529 = vmatpush1.msra.mxu0 0.0
          %530 = vmatprep.subr.mxu0 0.0
          %531 = vmatpush1.msra.mxu0 0.0
          %532 = vmatprep.subr.mxu0 0.0
          %533 = vmatpush1.msra.mxu0 0.0
          %534 = vmatprep.subr.mxu0 0.0
          %535 = vmatpush1.msra.mxu0 0.0
          %536 = vmatprep.subr.mxu0 0.0
          %537 = vmatpush1.msra.mxu0 0.0
          %538 = vmatprep.subr.mxu0 0.0
          %539 = vmatpush1.msra.mxu0 0.0
          %540 = vmatprep.subr.mxu0 0.0
          %541 = vmatpush1.msra.mxu0 0.0
          %542 = vmatprep.subr.mxu0 0.0
          %543 = vmatpush1.msra.mxu0 0.0
          %544 = vmatprep.mubr.f32.mxu0 0.0
          %545 = vmatmul.mubr.f32.gmra.mrb[0].mxu0 %v478
          %v546 = vpop.f32.mrb[0].mxu0
          %v547 = vadd.f32 %v320, %v546
          %v548 = vpop.f32.mrb[0].mxu0
          %549 = vdwg.mxu0
          %s550 = scalar_lea.vmem [#allocation2], 8
          %551 = vst.msk [vmem:[%s550] sm:$0xff] %vm396, %v547
          %552 = vmatprep.subr.mxu0 0.0
          %553 = vmatpush1.msra.mxu0 %v311
          %554 = vmatprep.subr.mxu0 0.0
          %555 = vmatpush1.msra.mxu0 %v312
          %556 = vmatprep.subr.mxu0 0.0
          %557 = vmatpush1.msra.mxu0 0.0
          %558 = vmatprep.subr.mxu0 0.0
          %559 = vmatpush1.msra.mxu0 0.0
          %560 = vmatprep.subr.mxu0 0.0
          %561 = vmatpush1.msra.mxu0 0.0
          %562 = vmatprep.subr.mxu0 0.0
          %563 = vmatpush1.msra.mxu0 0.0
          %564 = vmatprep.subr.mxu0 0.0
          %565 = vmatpush1.msra.mxu0 0.0
          %566 = vmatprep.subr.mxu0 0.0
          %567 = vmatpush1.msra.mxu0 0.0
          %568 = vmatprep.subr.mxu0 0.0
          %569 = vmatpush1.msra.mxu0 0.0
          %570 = vmatprep.subr.mxu0 0.0
          %571 = vmatpush1.msra.mxu0 0.0
          %572 = vmatprep.subr.mxu0 0.0
          %573 = vmatpush1.msra.mxu0 0.0
          %574 = vmatprep.subr.mxu0 0.0
          %575 = vmatpush1.msra.mxu0 0.0
          %576 = vmatprep.subr.mxu0 0.0
          %577 = vmatpush1.msra.mxu0 0.0
          %578 = vmatprep.subr.mxu0 0.0
          %579 = vmatpush1.msra.mxu0 0.0
          %580 = vmatprep.subr.mxu0 0.0
          %581 = vmatpush1.msra.mxu0 0.0
          %582 = vmatprep.subr.mxu0 0.0
          %583 = vmatpush1.msra.mxu0 0.0
          %584 = vmatprep.subr.mxu0 0.0
          %585 = vmatpush1.msra.mxu0 0.0
          %586 = vmatprep.subr.mxu0 0.0
          %587 = vmatpush1.msra.mxu0 0.0
          %588 = vmatprep.subr.mxu0 0.0
          %589 = vmatpush1.msra.mxu0 0.0
          %590 = vmatprep.subr.mxu0 0.0
          %591 = vmatpush1.msra.mxu0 0.0
          %592 = vmatprep.subr.mxu0 0.0
          %593 = vmatpush1.msra.mxu0 0.0
          %594 = vmatprep.subr.mxu0 0.0
          %595 = vmatpush1.msra.mxu0 0.0
          %596 = vmatprep.subr.mxu0 0.0
          %597 = vmatpush1.msra.mxu0 0.0
          %598 = vmatprep.subr.mxu0 0.0
          %599 = vmatpush1.msra.mxu0 0.0
          %600 = vmatprep.subr.mxu0 0.0
          %601 = vmatpush1.msra.mxu0 0.0
          %602 = vmatprep.subr.mxu0 0.0
          %603 = vmatpush1.msra.mxu0 0.0
          %604 = vmatprep.subr.mxu0 0.0
          %605 = vmatpush1.msra.mxu0 0.0
          %606 = vmatprep.subr.mxu0 0.0
          %607 = vmatpush1.msra.mxu0 0.0
          %608 = vmatprep.subr.mxu0 0.0
          %609 = vmatpush1.msra.mxu0 0.0
          %610 = vmatprep.subr.mxu0 0.0
          %611 = vmatpush1.msra.mxu0 0.0
          %612 = vmatprep.subr.mxu0 0.0
          %613 = vmatpush1.msra.mxu0 0.0
          %614 = vmatprep.subr.mxu0 0.0
          %615 = vmatpush1.msra.mxu0 0.0
          %616 = vmatprep.mubr.f32.mxu0 0.0
          %617 = vmatmul.mubr.f32.gmra.mrb[0].mxu0 %v478
          %v618 = vpop.f32.mrb[0].mxu0
          %v619 = vadd.f32 %v402, %v618
          %v620 = vpop.f32.mrb[0].mxu0
          %621 = vdwg.mxu0
          %s622 = scalar_lea.vmem [#allocation3], 8
          %623 = vst.msk [vmem:[%s622] sm:$0xff] %vm396, %v619
        $region56: #{tpu_custom_call.1} parent=51 // pred_fallthru
          _
        %v624 = vld [vmem:[%s8] sm:$0x1]
        %v625 = vlaneseq
        %v626 = vshrl.u32 %v625, 7
        %s627 = sld [smem:[#allocation5]]
        %v628 = vld [vmem:[#allocation2] sm:$0xff]
        %v629 = vld [vmem:[#allocation3] sm:$0xff]
        %v630 = vld [vmem:[%s6] sm:$0xff]
        %v631 = vld [vmem:[%s6 + $0x8] sm:$0xff]
        %v632 = vld [vmem:[%s6 + $0x10] sm:$0xff]
        %v633 = vld [vmem:[%s6 + $0x18] sm:$0xff]
        %v634 = vld [vmem:[%s6 + $0x20] sm:$0xff]
        %v635 = vld [vmem:[%s6 + $0x28] sm:$0xff]
        %v636 = vld [vmem:[%s6 + $0x30] sm:$0xff]
        %v637 = vld [vmem:[%s6 + $0x38] sm:$0xff]
        %v639 = vrot.slane %v628, 1
        %vm640 = vcmask 261120
        %v641 = vsel %vm640, %v639, 0
        %643 = vmatprep.subr.mxu0 0.0
        %644 = vmatpush1.msra.mxu0 %v634
        %645 = vmatprep.subr.mxu0 0.0
        %646 = vmatpush1.msra.mxu0 %v635
        %647 = vmatprep.subr.mxu0 0.0
        %648 = vmatpush1.msra.mxu0 %v636
        %649 = vmatprep.subr.mxu0 0.0
        %650 = vmatpush1.msra.mxu0 %v637
        %651 = vmatprep.subr.mxu0 0.0
        %652 = vmatpush1.msra.mxu0 0.0
        %653 = vmatprep.subr.mxu0 0.0
        %654 = vmatpush1.msra.mxu0 0.0
        %655 = vmatprep.subr.mxu0 0.0
        %656 = vmatpush1.msra.mxu0 0.0
        %657 = vmatprep.subr.mxu0 0.0
        %658 = vmatpush1.msra.mxu0 0.0
        %659 = vmatprep.subr.mxu0 0.0
        %660 = vmatpush1.msra.mxu0 0.0
        %661 = vmatprep.subr.mxu0 0.0
        %662 = vmatpush1.msra.mxu0 0.0
        %663 = vmatprep.subr.mxu0 0.0
        %664 = vmatpush1.msra.mxu0 0.0
        %665 = vmatprep.subr.mxu0 0.0
        %666 = vmatpush1.msra.mxu0 0.0
        %667 = vmatprep.subr.mxu0 0.0
        %668 = vmatpush1.msra.mxu0 0.0
        %669 = vmatprep.subr.mxu0 0.0
        %670 = vmatpush1.msra.mxu0 0.0
        %671 = vmatprep.subr.mxu0 0.0
        %672 = vmatpush1.msra.mxu0 0.0
        %673 = vmatprep.subr.mxu0 0.0
        %674 = vmatpush1.msra.mxu0 0.0
        %675 = vmatprep.subr.mxu0 0.0
        %676 = vmatpush1.msra.mxu0 0.0
        %677 = vmatprep.subr.mxu0 0.0
        %678 = vmatpush1.msra.mxu0 0.0
        %679 = vmatprep.subr.mxu0 0.0
        %680 = vmatpush1.msra.mxu0 0.0
        %681 = vmatprep.subr.mxu0 0.0
        %682 = vmatpush1.msra.mxu0 0.0
        %683 = vmatprep.subr.mxu0 0.0
        %684 = vmatpush1.msra.mxu0 0.0
        %685 = vmatprep.subr.mxu0 0.0
        %686 = vmatpush1.msra.mxu0 0.0
        %687 = vmatprep.subr.mxu0 0.0
        %688 = vmatpush1.msra.mxu0 0.0
        %689 = vmatprep.subr.mxu0 0.0
        %690 = vmatpush1.msra.mxu0 0.0
        %691 = vmatprep.subr.mxu0 0.0
        %692 = vmatpush1.msra.mxu0 0.0
        %693 = vmatprep.subr.mxu0 0.0
        %694 = vmatpush1.msra.mxu0 0.0
        %695 = vmatprep.subr.mxu0 0.0
        %696 = vmatpush1.msra.mxu0 0.0
        %697 = vmatprep.subr.mxu0 0.0
        %698 = vmatpush1.msra.mxu0 0.0
        %699 = vmatprep.subr.mxu0 0.0
        %700 = vmatpush1.msra.mxu0 0.0
        %701 = vmatprep.subr.mxu0 0.0
        %702 = vmatpush1.msra.mxu0 0.0
        %703 = vmatprep.subr.mxu0 0.0
        %704 = vmatpush1.msra.mxu0 0.0
        %705 = vmatprep.subr.mxu0 0.0
        %706 = vmatpush1.msra.mxu0 0.0
        %707 = vmatprep.mubr.f32.mxu0 0.0
        %708 = vmatmul.mubr.f32.gmra.mrb[0].mxu0 %v641
        %v709 = vpop.f32.mrb[0].mxu0
        %v710 = vadd.f32 0.0, %v709
        %v711 = vpop.f32.mrb[0].mxu0
        %712 = vdwg.mxu0
        %v713 = vsel %vm640, %v628, 0
        %715 = vmatprep.subr.mxu0 0.0
        %716 = vmatpush1.msra.mxu0 %v630
        %717 = vmatprep.subr.mxu0 0.0
        %718 = vmatpush1.msra.mxu0 %v631
        %719 = vmatprep.subr.mxu0 0.0
        %720 = vmatpush1.msra.mxu0 %v632
        %721 = vmatprep.subr.mxu0 0.0
        %722 = vmatpush1.msra.mxu0 %v633
        %723 = vmatprep.subr.mxu0 0.0
        %724 = vmatpush1.msra.mxu0 0.0
        %725 = vmatprep.subr.mxu0 0.0
        %726 = vmatpush1.msra.mxu0 0.0
        %727 = vmatprep.subr.mxu0 0.0
        %728 = vmatpush1.msra.mxu0 0.0
        %729 = vmatprep.subr.mxu0 0.0
        %730 = vmatpush1.msra.mxu0 0.0
        %731 = vmatprep.subr.mxu0 0.0
        %732 = vmatpush1.msra.mxu0 0.0
        %733 = vmatprep.subr.mxu0 0.0
        %734 = vmatpush1.msra.mxu0 0.0
        %735 = vmatprep.subr.mxu0 0.0
        %736 = vmatpush1.msra.mxu0 0.0
        %737 = vmatprep.subr.mxu0 0.0
        %738 = vmatpush1.msra.mxu0 0.0
        %739 = vmatprep.subr.mxu0 0.0
        %740 = vmatpush1.msra.mxu0 0.0
        %741 = vmatprep.subr.mxu0 0.0
        %742 = vmatpush1.msra.mxu0 0.0
        %743 = vmatprep.subr.mxu0 0.0
        %744 = vmatpush1.msra.mxu0 0.0
        %745 = vmatprep.subr.mxu0 0.0
        %746 = vmatpush1.msra.mxu0 0.0
        %747 = vmatprep.subr.mxu0 0.0
        %748 = vmatpush1.msra.mxu0 0.0
        %749 = vmatprep.subr.mxu0 0.0
        %750 = vmatpush1.msra.mxu0 0.0
        %751 = vmatprep.subr.mxu0 0.0
        %752 = vmatpush1.msra.mxu0 0.0
        %753 = vmatprep.subr.mxu0 0.0
        %754 = vmatpush1.msra.mxu0 0.0
        %755 = vmatprep.subr.mxu0 0.0
        %756 = vmatpush1.msra.mxu0 0.0
        %757 = vmatprep.subr.mxu0 0.0
        %758 = vmatpush1.msra.mxu0 0.0
        %759 = vmatprep.subr.mxu0 0.0
        %760 = vmatpush1.msra.mxu0 0.0
        %761 = vmatprep.subr.mxu0 0.0
        %762 = vmatpush1.msra.mxu0 0.0
        %763 = vmatprep.subr.mxu0 0.0
        %764 = vmatpush1.msra.mxu0 0.0
        %765 = vmatprep.subr.mxu0 0.0
        %766 = vmatpush1.msra.mxu0 0.0
        %767 = vmatprep.subr.mxu0 0.0
        %768 = vmatpush1.msra.mxu0 0.0
        %769 = vmatprep.subr.mxu0 0.0
        %770 = vmatpush1.msra.mxu0 0.0
        %771 = vmatprep.subr.mxu0 0.0
        %772 = vmatpush1.msra.mxu0 0.0
        %773 = vmatprep.subr.mxu0 0.0
        %774 = vmatpush1.msra.mxu0 0.0
        %775 = vmatprep.subr.mxu0 0.0
        %776 = vmatpush1.msra.mxu0 0.0
        %777 = vmatprep.subr.mxu0 0.0
        %778 = vmatpush1.msra.mxu0 0.0
        %779 = vmatprep.mubr.f32.mxu0 0.0
        %780 = vmatmul.mubr.f32.gmra.mrb[0].mxu0 %v713
        %v781 = vpop.f32.mrb[0].mxu0
        %v782 = vadd.f32 %v710, %v781
        %v783 = vpop.f32.mrb[0].mxu0
        %784 = vdwg.mxu0
        %v785 = vld [vmem:[%s7] sm:$0x1]
        %v787 = vlaneseq
        %v788 = vshrl.u32 %v787, 7
        %v789 = vsub.s32 0, %v788
        %v790 = vrot.slane %v785, %v789
        %v792 = vadd.f32 %v782, %v790
        %s793 = scalar_lea.vmem %s6, 64
        %v794 = vld [vmem:[%s793] sm:$0xff]
        %v795 = vld [vmem:[%s793 + $0x8] sm:$0xff]
        %v796 = vld [vmem:[%s793 + $0x10] sm:$0xff]
        %v797 = vld [vmem:[%s793 + $0x18] sm:$0xff]
        %v798 = vld [vmem:[%s793 + $0x20] sm:$0xff]
        %v799 = vld [vmem:[%s793 + $0x28] sm:$0xff]
        %v800 = vld [vmem:[%s793 + $0x30] sm:$0xff]
        %v801 = vld [vmem:[%s793 + $0x38] sm:$0xff]
        %802 = vmatprep.subr.mxu0 0.0
        %803 = vmatpush1.msra.mxu0 %v798
        %804 = vmatprep.subr.mxu0 0.0
        %805 = vmatpush1.msra.mxu0 %v799
        %806 = vmatprep.subr.mxu0 0.0
        %807 = vmatpush1.msra.mxu0 %v800
        %808 = vmatprep.subr.mxu0 0.0
        %809 = vmatpush1.msra.mxu0 %v801
        %810 = vmatprep.subr.mxu0 0.0
        %811 = vmatpush1.msra.mxu0 0.0
        %812 = vmatprep.subr.mxu0 0.0
        %813 = vmatpush1.msra.mxu0 0.0
        %814 = vmatprep.subr.mxu0 0.0
        %815 = vmatpush1.msra.mxu0 0.0
        %816 = vmatprep.subr.mxu0 0.0
        %817 = vmatpush1.msra.mxu0 0.0
        %818 = vmatprep.subr.mxu0 0.0
        %819 = vmatpush1.msra.mxu0 0.0
        %820 = vmatprep.subr.mxu0 0.0
        %821 = vmatpush1.msra.mxu0 0.0
        %822 = vmatprep.subr.mxu0 0.0
        %823 = vmatpush1.msra.mxu0 0.0
        %824 = vmatprep.subr.mxu0 0.0
        %825 = vmatpush1.msra.mxu0 0.0
        %826 = vmatprep.subr.mxu0 0.0
        %827 = vmatpush1.msra.mxu0 0.0
        %828 = vmatprep.subr.mxu0 0.0
        %829 = vmatpush1.msra.mxu0 0.0
        %830 = vmatprep.subr.mxu0 0.0
        %831 = vmatpush1.msra.mxu0 0.0
        %832 = vmatprep.subr.mxu0 0.0
        %833 = vmatpush1.msra.mxu0 0.0
        %834 = vmatprep.subr.mxu0 0.0
        %835 = vmatpush1.msra.mxu0 0.0
        %836 = vmatprep.subr.mxu0 0.0
        %837 = vmatpush1.msra.mxu0 0.0
        %838 = vmatprep.subr.mxu0 0.0
        %839 = vmatpush1.msra.mxu0 0.0
        %840 = vmatprep.subr.mxu0 0.0
        %841 = vmatpush1.msra.mxu0 0.0
        %842 = vmatprep.subr.mxu0 0.0
        %843 = vmatpush1.msra.mxu0 0.0
        %844 = vmatprep.subr.mxu0 0.0
        %845 = vmatpush1.msra.mxu0 0.0
        %846 = vmatprep.subr.mxu0 0.0
        %847 = vmatpush1.msra.mxu0 0.0
        %848 = vmatprep.subr.mxu0 0.0
        %849 = vmatpush1.msra.mxu0 0.0
        %850 = vmatprep.subr.mxu0 0.0
        %851 = vmatpush1.msra.mxu0 0.0
        %852 = vmatprep.subr.mxu0 0.0
        %853 = vmatpush1.msra.mxu0 0.0
        %854 = vmatprep.subr.mxu0 0.0
        %855 = vmatpush1.msra.mxu0 0.0
        %856 = vmatprep.subr.mxu0 0.0
        %857 = vmatpush1.msra.mxu0 0.0
        %858 = vmatprep.subr.mxu0 0.0
        %859 = vmatpush1.msra.mxu0 0.0
        %860 = vmatprep.subr.mxu0 0.0
        %861 = vmatpush1.msra.mxu0 0.0
        %862 = vmatprep.subr.mxu0 0.0
        %863 = vmatpush1.msra.mxu0 0.0
        %864 = vmatprep.subr.mxu0 0.0
        %865 = vmatpush1.msra.mxu0 0.0
        %866 = vmatprep.mubr.f32.mxu0 0.0
        %867 = vmatmul.mubr.f32.gmra.mrb[0].mxu0 %v641
        %v868 = vpop.f32.mrb[0].mxu0
        %v869 = vadd.f32 0.0, %v868
        %v870 = vpop.f32.mrb[0].mxu0
        %871 = vdwg.mxu0
        %872 = vmatprep.subr.mxu0 0.0
        %873 = vmatpush1.msra.mxu0 %v794
        %874 = vmatprep.subr.mxu0 0.0
        %875 = vmatpush1.msra.mxu0 %v795
        %876 = vmatprep.subr.mxu0 0.0
        %877 = vmatpush1.msra.mxu0 %v796
        %878 = vmatprep.subr.mxu0 0.0
        %879 = vmatpush1.msra.mxu0 %v797
        %880 = vmatprep.subr.mxu0 0.0
        %881 = vmatpush1.msra.mxu0 0.0
        %882 = vmatprep.subr.mxu0 0.0
        %883 = vmatpush1.msra.mxu0 0.0
        %884 = vmatprep.subr.mxu0 0.0
        %885 = vmatpush1.msra.mxu0 0.0
        %886 = vmatprep.subr.mxu0 0.0
        %887 = vmatpush1.msra.mxu0 0.0
        %888 = vmatprep.subr.mxu0 0.0
        %889 = vmatpush1.msra.mxu0 0.0
        %890 = vmatprep.subr.mxu0 0.0
        %891 = vmatpush1.msra.mxu0 0.0
        %892 = vmatprep.subr.mxu0 0.0
        %893 = vmatpush1.msra.mxu0 0.0
        %894 = vmatprep.subr.mxu0 0.0
        %895 = vmatpush1.msra.mxu0 0.0
        %896 = vmatprep.subr.mxu0 0.0
        %897 = vmatpush1.msra.mxu0 0.0
        %898 = vmatprep.subr.mxu0 0.0
        %899 = vmatpush1.msra.mxu0 0.0
        %900 = vmatprep.subr.mxu0 0.0
        %901 = vmatpush1.msra.mxu0 0.0
        %902 = vmatprep.subr.mxu0 0.0
        %903 = vmatpush1.msra.mxu0 0.0
        %904 = vmatprep.subr.mxu0 0.0
        %905 = vmatpush1.msra.mxu0 0.0
        %906 = vmatprep.subr.mxu0 0.0
        %907 = vmatpush1.msra.mxu0 0.0
        %908 = vmatprep.subr.mxu0 0.0
        %909 = vmatpush1.msra.mxu0 0.0
        %910 = vmatprep.subr.mxu0 0.0
        %911 = vmatpush1.msra.mxu0 0.0
        %912 = vmatprep.subr.mxu0 0.0
        %913 = vmatpush1.msra.mxu0 0.0
        %914 = vmatprep.subr.mxu0 0.0
        %915 = vmatpush1.msra.mxu0 0.0
        %916 = vmatprep.subr.mxu0 0.0
        %917 = vmatpush1.msra.mxu0 0.0
        %918 = vmatprep.subr.mxu0 0.0
        %919 = vmatpush1.msra.mxu0 0.0
        %920 = vmatprep.subr.mxu0 0.0
        %921 = vmatpush1.msra.mxu0 0.0
        %922 = vmatprep.subr.mxu0 0.0
        %923 = vmatpush1.msra.mxu0 0.0
        %924 = vmatprep.subr.mxu0 0.0
        %925 = vmatpush1.msra.mxu0 0.0
        %926 = vmatprep.subr.mxu0 0.0
        %927 = vmatpush1.msra.mxu0 0.0
        %928 = vmatprep.subr.mxu0 0.0
        %929 = vmatpush1.msra.mxu0 0.0
        %930 = vmatprep.subr.mxu0 0.0
        %931 = vmatpush1.msra.mxu0 0.0
        %932 = vmatprep.subr.mxu0 0.0
        %933 = vmatpush1.msra.mxu0 0.0
        %934 = vmatprep.subr.mxu0 0.0
        %935 = vmatpush1.msra.mxu0 0.0
        %936 = vmatprep.mubr.f32.mxu0 0.0
        %937 = vmatmul.mubr.f32.gmra.mrb[0].mxu0 %v713
        %v938 = vpop.f32.mrb[0].mxu0
        %v939 = vadd.f32 %v869, %v938
        %v940 = vpop.f32.mrb[0].mxu0
        %941 = vdwg.mxu0
        %s942 = scalar_lea.vmem %s7, 1
        %v943 = vld [vmem:[%s942] sm:$0x1]
        %v945 = vlaneseq
        %v946 = vshrl.u32 %v945, 7
        %v947 = vsub.s32 0, %v946
        %v948 = vrot.slane %v943, %v947
        %v950 = vadd.f32 %v939, %v948
        %s951 = scalar_lea.vmem %s6, 128
        %v952 = vld [vmem:[%s951] sm:$0xff]
        %v953 = vld [vmem:[%s951 + $0x8] sm:$0xff]
        %v954 = vld [vmem:[%s951 + $0x10] sm:$0xff]
        %v955 = vld [vmem:[%s951 + $0x18] sm:$0xff]
        %v956 = vld [vmem:[%s951 + $0x20] sm:$0xff]
        %v957 = vld [vmem:[%s951 + $0x28] sm:$0xff]
        %v958 = vld [vmem:[%s951 + $0x30] sm:$0xff]
        %v959 = vld [vmem:[%s951 + $0x38] sm:$0xff]
        %960 = vmatprep.subr.mxu0 0.0
        %961 = vmatpush1.msra.mxu0 %v956
        %962 = vmatprep.subr.mxu0 0.0
        %963 = vmatpush1.msra.mxu0 %v957
        %964 = vmatprep.subr.mxu0 0.0
        %965 = vmatpush1.msra.mxu0 %v958
        %966 = vmatprep.subr.mxu0 0.0
        %967 = vmatpush1.msra.mxu0 %v959
        %968 = vmatprep.subr.mxu0 0.0
        %969 = vmatpush1.msra.mxu0 0.0
        %970 = vmatprep.subr.mxu0 0.0
        %971 = vmatpush1.msra.mxu0 0.0
        %972 = vmatprep.subr.mxu0 0.0
        %973 = vmatpush1.msra.mxu0 0.0
        %974 = vmatprep.subr.mxu0 0.0
        %975 = vmatpush1.msra.mxu0 0.0
        %976 = vmatprep.subr.mxu0 0.0
        %977 = vmatpush1.msra.mxu0 0.0
        %978 = vmatprep.subr.mxu0 0.0
        %979 = vmatpush1.msra.mxu0 0.0
        %980 = vmatprep.subr.mxu0 0.0
        %981 = vmatpush1.msra.mxu0 0.0
        %982 = vmatprep.subr.mxu0 0.0
        %983 = vmatpush1.msra.mxu0 0.0
        %984 = vmatprep.subr.mxu0 0.0
        %985 = vmatpush1.msra.mxu0 0.0
        %986 = vmatprep.subr.mxu0 0.0
        %987 = vmatpush1.msra.mxu0 0.0
        %988 = vmatprep.subr.mxu0 0.0
        %989 = vmatpush1.msra.mxu0 0.0
        %990 = vmatprep.subr.mxu0 0.0
        %991 = vmatpush1.msra.mxu0 0.0
        %992 = vmatprep.subr.mxu0 0.0
        %993 = vmatpush1.msra.mxu0 0.0
        %994 = vmatprep.subr.mxu0 0.0
        %995 = vmatpush1.msra.mxu0 0.0
        %996 = vmatprep.subr.mxu0 0.0
        %997 = vmatpush1.msra.mxu0 0.0
        %998 = vmatprep.subr.mxu0 0.0
        %999 = vmatpush1.msra.mxu0 0.0
        %1000 = vmatprep.subr.mxu0 0.0
        %1001 = vmatpush1.msra.mxu0 0.0
        %1002 = vmatprep.subr.mxu0 0.0
        %1003 = vmatpush1.msra.mxu0 0.0
        %1004 = vmatprep.subr.mxu0 0.0
        %1005 = vmatpush1.msra.mxu0 0.0
        %1006 = vmatprep.subr.mxu0 0.0
        %1007 = vmatpush1.msra.mxu0 0.0
        %1008 = vmatprep.subr.mxu0 0.0
        %1009 = vmatpush1.msra.mxu0 0.0
        %1010 = vmatprep.subr.mxu0 0.0
        %1011 = vmatpush1.msra.mxu0 0.0
        %1012 = vmatprep.subr.mxu0 0.0
        %1013 = vmatpush1.msra.mxu0 0.0
        %1014 = vmatprep.subr.mxu0 0.0
        %1015 = vmatpush1.msra.mxu0 0.0
        %1016 = vmatprep.subr.mxu0 0.0
        %1017 = vmatpush1.msra.mxu0 0.0
        %1018 = vmatprep.subr.mxu0 0.0
        %1019 = vmatpush1.msra.mxu0 0.0
        %1020 = vmatprep.subr.mxu0 0.0
        %1021 = vmatpush1.msra.mxu0 0.0
        %1022 = vmatprep.subr.mxu0 0.0
        %1023 = vmatpush1.msra.mxu0 0.0
        %1024 = vmatprep.mubr.f32.mxu0 0.0
        %1025 = vmatmul.mubr.f32.gmra.mrb[0].mxu0 %v641
        %v1026 = vpop.f32.mrb[0].mxu0
        %v1027 = vadd.f32 0.0, %v1026
        %v1028 = vpop.f32.mrb[0].mxu0
        %1029 = vdwg.mxu0
        %1030 = vmatprep.subr.mxu0 0.0
        %1031 = vmatpush1.msra.mxu0 %v952
        %1032 = vmatprep.subr.mxu0 0.0
        %1033 = vmatpush1.msra.mxu0 %v953
        %1034 = vmatprep.subr.mxu0 0.0
        %1035 = vmatpush1.msra.mxu0 %v954
        %1036 = vmatprep.subr.mxu0 0.0
        %1037 = vmatpush1.msra.mxu0 %v955
        %1038 = vmatprep.subr.mxu0 0.0
        %1039 = vmatpush1.msra.mxu0 0.0
        %1040 = vmatprep.subr.mxu0 0.0
        %1041 = vmatpush1.msra.mxu0 0.0
        %1042 = vmatprep.subr.mxu0 0.0
        %1043 = vmatpush1.msra.mxu0 0.0
        %1044 = vmatprep.subr.mxu0 0.0
        %1045 = vmatpush1.msra.mxu0 0.0
        %1046 = vmatprep.subr.mxu0 0.0
        %1047 = vmatpush1.msra.mxu0 0.0
        %1048 = vmatprep.subr.mxu0 0.0
        %1049 = vmatpush1.msra.mxu0 0.0
        %1050 = vmatprep.subr.mxu0 0.0
        %1051 = vmatpush1.msra.mxu0 0.0
        %1052 = vmatprep.subr.mxu0 0.0
        %1053 = vmatpush1.msra.mxu0 0.0
        %1054 = vmatprep.subr.mxu0 0.0
        %1055 = vmatpush1.msra.mxu0 0.0
        %1056 = vmatprep.subr.mxu0 0.0
        %1057 = vmatpush1.msra.mxu0 0.0
        %1058 = vmatprep.subr.mxu0 0.0
        %1059 = vmatpush1.msra.mxu0 0.0
        %1060 = vmatprep.subr.mxu0 0.0
        %1061 = vmatpush1.msra.mxu0 0.0
        %1062 = vmatprep.subr.mxu0 0.0
        %1063 = vmatpush1.msra.mxu0 0.0
        %1064 = vmatprep.subr.mxu0 0.0
        %1065 = vmatpush1.msra.mxu0 0.0
        %1066 = vmatprep.subr.mxu0 0.0
        %1067 = vmatpush1.msra.mxu0 0.0
        %1068 = vmatprep.subr.mxu0 0.0
        %1069 = vmatpush1.msra.mxu0 0.0
        %1070 = vmatprep.subr.mxu0 0.0
        %1071 = vmatpush1.msra.mxu0 0.0
        %1072 = vmatprep.subr.mxu0 0.0
        %1073 = vmatpush1.msra.mxu0 0.0
        %1074 = vmatprep.subr.mxu0 0.0
        %1075 = vmatpush1.msra.mxu0 0.0
        %1076 = vmatprep.subr.mxu0 0.0
        %1077 = vmatpush1.msra.mxu0 0.0
        %1078 = vmatprep.subr.mxu0 0.0
        %1079 = vmatpush1.msra.mxu0 0.0
        %1080 = vmatprep.subr.mxu0 0.0
        %1081 = vmatpush1.msra.mxu0 0.0
        %1082 = vmatprep.subr.mxu0 0.0
        %1083 = vmatpush1.msra.mxu0 0.0
        %1084 = vmatprep.subr.mxu0 0.0
        %1085 = vmatpush1.msra.mxu0 0.0
        %1086 = vmatprep.subr.mxu0 0.0
        %1087 = vmatpush1.msra.mxu0 0.0
        %1088 = vmatprep.subr.mxu0 0.0
        %1089 = vmatpush1.msra.mxu0 0.0
        %1090 = vmatprep.subr.mxu0 0.0
        %1091 = vmatpush1.msra.mxu0 0.0
        %1092 = vmatprep.subr.mxu0 0.0
        %1093 = vmatpush1.msra.mxu0 0.0
        %1094 = vmatprep.mubr.f32.mxu0 0.0
        %1095 = vmatmul.mubr.f32.gmra.mrb[0].mxu0 %v713
        %v1096 = vpop.f32.mrb[0].mxu0
        %v1097 = vadd.f32 %v1027, %v1096
        %v1098 = vpop.f32.mrb[0].mxu0
        %1099 = vdwg.mxu0
        %s1100 = scalar_lea.vmem %s7, 2
        %v1101 = vld [vmem:[%s1100] sm:$0x1]
        %v1103 = vlaneseq
        %v1104 = vshrl.u32 %v1103, 7
        %v1105 = vsub.s32 0, %v1104
        %v1106 = vrot.slane %v1101, %v1105
        %v1108 = vadd.f32 %v1097, %v1106
        %s1109 = scalar_lea.vmem %s6, 192
        %v1110 = vld [vmem:[%s1109] sm:$0xff]
        %v1111 = vld [vmem:[%s1109 + $0x8] sm:$0xff]
        %v1112 = vld [vmem:[%s1109 + $0x10] sm:$0xff]
        %v1113 = vld [vmem:[%s1109 + $0x18] sm:$0xff]
        %v1114 = vld [vmem:[%s1109 + $0x20] sm:$0xff]
        %v1115 = vld [vmem:[%s1109 + $0x28] sm:$0xff]
        %v1116 = vld [vmem:[%s1109 + $0x30] sm:$0xff]
        %v1117 = vld [vmem:[%s1109 + $0x38] sm:$0xff]
        %1118 = vmatprep.subr.mxu0 0.0
        %1119 = vmatpush1.msra.mxu0 %v1114
        %1120 = vmatprep.subr.mxu0 0.0
        %1121 = vmatpush1.msra.mxu0 %v1115
        %1122 = vmatprep.subr.mxu0 0.0
        %1123 = vmatpush1.msra.mxu0 %v1116
        %1124 = vmatprep.subr.mxu0 0.0
        %1125 = vmatpush1.msra.mxu0 %v1117
        %1126 = vmatprep.subr.mxu0 0.0
        %1127 = vmatpush1.msra.mxu0 0.0
        %1128 = vmatprep.subr.mxu0 0.0
        %1129 = vmatpush1.msra.mxu0 0.0
        %1130 = vmatprep.subr.mxu0 0.0
        %1131 = vmatpush1.msra.mxu0 0.0
        %1132 = vmatprep.subr.mxu0 0.0
        %1133 = vmatpush1.msra.mxu0 0.0
        %1134 = vmatprep.subr.mxu0 0.0
        %1135 = vmatpush1.msra.mxu0 0.0
        %1136 = vmatprep.subr.mxu0 0.0
        %1137 = vmatpush1.msra.mxu0 0.0
        %1138 = vmatprep.subr.mxu0 0.0
        %1139 = vmatpush1.msra.mxu0 0.0
        %1140 = vmatprep.subr.mxu0 0.0
        %1141 = vmatpush1.msra.mxu0 0.0
        %1142 = vmatprep.subr.mxu0 0.0
        %1143 = vmatpush1.msra.mxu0 0.0
        %1144 = vmatprep.subr.mxu0 0.0
        %1145 = vmatpush1.msra.mxu0 0.0
        %1146 = vmatprep.subr.mxu0 0.0
        %1147 = vmatpush1.msra.mxu0 0.0
        %1148 = vmatprep.subr.mxu0 0.0
        %1149 = vmatpush1.msra.mxu0 0.0
        %1150 = vmatprep.subr.mxu0 0.0
        %1151 = vmatpush1.msra.mxu0 0.0
        %1152 = vmatprep.subr.mxu0 0.0
        %1153 = vmatpush1.msra.mxu0 0.0
        %1154 = vmatprep.subr.mxu0 0.0
        %1155 = vmatpush1.msra.mxu0 0.0
        %1156 = vmatprep.subr.mxu0 0.0
        %1157 = vmatpush1.msra.mxu0 0.0
        %1158 = vmatprep.subr.mxu0 0.0
        %1159 = vmatpush1.msra.mxu0 0.0
        %1160 = vmatprep.subr.mxu0 0.0
        %1161 = vmatpush1.msra.mxu0 0.0
        %1162 = vmatprep.subr.mxu0 0.0
        %1163 = vmatpush1.msra.mxu0 0.0
        %1164 = vmatprep.subr.mxu0 0.0
        %1165 = vmatpush1.msra.mxu0 0.0
        %1166 = vmatprep.subr.mxu0 0.0
        %1167 = vmatpush1.msra.mxu0 0.0
        %1168 = vmatprep.subr.mxu0 0.0
        %1169 = vmatpush1.msra.mxu0 0.0
        %1170 = vmatprep.subr.mxu0 0.0
        %1171 = vmatpush1.msra.mxu0 0.0
        %1172 = vmatprep.subr.mxu0 0.0
        %1173 = vmatpush1.msra.mxu0 0.0
        %1174 = vmatprep.subr.mxu0 0.0
        %1175 = vmatpush1.msra.mxu0 0.0
        %1176 = vmatprep.subr.mxu0 0.0
        %1177 = vmatpush1.msra.mxu0 0.0
        %1178 = vmatprep.subr.mxu0 0.0
        %1179 = vmatpush1.msra.mxu0 0.0
        %1180 = vmatprep.subr.mxu0 0.0
        %1181 = vmatpush1.msra.mxu0 0.0
        %1182 = vmatprep.mubr.f32.mxu0 0.0
        %1183 = vmatmul.mubr.f32.gmra.mrb[0].mxu0 %v641
        %v1184 = vpop.f32.mrb[0].mxu0
        %v1185 = vadd.f32 0.0, %v1184
        %v1186 = vpop.f32.mrb[0].mxu0
        %1187 = vdwg.mxu0
        %1188 = vmatprep.subr.mxu0 0.0
        %1189 = vmatpush1.msra.mxu0 %v1110
        %1190 = vmatprep.subr.mxu0 0.0
        %1191 = vmatpush1.msra.mxu0 %v1111
        %1192 = vmatprep.subr.mxu0 0.0
        %1193 = vmatpush1.msra.mxu0 %v1112
        %1194 = vmatprep.subr.mxu0 0.0
        %1195 = vmatpush1.msra.mxu0 %v1113
        %1196 = vmatprep.subr.mxu0 0.0
        %1197 = vmatpush1.msra.mxu0 0.0
        %1198 = vmatprep.subr.mxu0 0.0
        %1199 = vmatpush1.msra.mxu0 0.0
        %1200 = vmatprep.subr.mxu0 0.0
        %1201 = vmatpush1.msra.mxu0 0.0
        %1202 = vmatprep.subr.mxu0 0.0
        %1203 = vmatpush1.msra.mxu0 0.0
        %1204 = vmatprep.subr.mxu0 0.0
        %1205 = vmatpush1.msra.mxu0 0.0
        %1206 = vmatprep.subr.mxu0 0.0
        %1207 = vmatpush1.msra.mxu0 0.0
        %1208 = vmatprep.subr.mxu0 0.0
        %1209 = vmatpush1.msra.mxu0 0.0
        %1210 = vmatprep.subr.mxu0 0.0
        %1211 = vmatpush1.msra.mxu0 0.0
        %1212 = vmatprep.subr.mxu0 0.0
        %1213 = vmatpush1.msra.mxu0 0.0
        %1214 = vmatprep.subr.mxu0 0.0
        %1215 = vmatpush1.msra.mxu0 0.0
        %1216 = vmatprep.subr.mxu0 0.0
        %1217 = vmatpush1.msra.mxu0 0.0
        %1218 = vmatprep.subr.mxu0 0.0
        %1219 = vmatpush1.msra.mxu0 0.0
        %1220 = vmatprep.subr.mxu0 0.0
        %1221 = vmatpush1.msra.mxu0 0.0
        %1222 = vmatprep.subr.mxu0 0.0
        %1223 = vmatpush1.msra.mxu0 0.0
        %1224 = vmatprep.subr.mxu0 0.0
        %1225 = vmatpush1.msra.mxu0 0.0
        %1226 = vmatprep.subr.mxu0 0.0
        %1227 = vmatpush1.msra.mxu0 0.0
        %1228 = vmatprep.subr.mxu0 0.0
        %1229 = vmatpush1.msra.mxu0 0.0
        %1230 = vmatprep.subr.mxu0 0.0
        %1231 = vmatpush1.msra.mxu0 0.0
        %1232 = vmatprep.subr.mxu0 0.0
        %1233 = vmatpush1.msra.mxu0 0.0
        %1234 = vmatprep.subr.mxu0 0.0
        %1235 = vmatpush1.msra.mxu0 0.0
        %1236 = vmatprep.subr.mxu0 0.0
        %1237 = vmatpush1.msra.mxu0 0.0
        %1238 = vmatprep.subr.mxu0 0.0
        %1239 = vmatpush1.msra.mxu0 0.0
        %1240 = vmatprep.subr.mxu0 0.0
        %1241 = vmatpush1.msra.mxu0 0.0
        %1242 = vmatprep.subr.mxu0 0.0
        %1243 = vmatpush1.msra.mxu0 0.0
        %1244 = vmatprep.subr.mxu0 0.0
        %1245 = vmatpush1.msra.mxu0 0.0
        %1246 = vmatprep.subr.mxu0 0.0
        %1247 = vmatpush1.msra.mxu0 0.0
        %1248 = vmatprep.subr.mxu0 0.0
        %1249 = vmatpush1.msra.mxu0 0.0
        %1250 = vmatprep.subr.mxu0 0.0
        %1251 = vmatpush1.msra.mxu0 0.0
        %1252 = vmatprep.mubr.f32.mxu0 0.0
        %1253 = vmatmul.mubr.f32.gmra.mrb[0].mxu0 %v713
        %v1254 = vpop.f32.mrb[0].mxu0
        %v1255 = vadd.f32 %v1185, %v1254
        %v1256 = vpop.f32.mrb[0].mxu0
        %1257 = vdwg.mxu0
        %s1258 = scalar_lea.vmem %s7, 3
        %v1259 = vld [vmem:[%s1258] sm:$0x1]
        %v1261 = vlaneseq
        %v1262 = vshrl.u32 %v1261, 7
        %v1263 = vsub.s32 0, %v1262
        %v1264 = vrot.slane %v1259, %v1263
        %v1266 = vadd.f32 %v1255, %v1264
        %s1267 = scalar_lea.vmem %s6, 256
        %v1268 = vld [vmem:[%s1267] sm:$0xff]
        %v1269 = vld [vmem:[%s1267 + $0x8] sm:$0xff]
        %v1270 = vld [vmem:[%s1267 + $0x10] sm:$0xff]
        %v1271 = vld [vmem:[%s1267 + $0x18] sm:$0xff]
        %v1272 = vld [vmem:[%s1267 + $0x20] sm:$0xff]
        %v1273 = vld [vmem:[%s1267 + $0x28] sm:$0xff]
        %v1274 = vld [vmem:[%s1267 + $0x30] sm:$0xff]
        %v1275 = vld [vmem:[%s1267 + $0x38] sm:$0xff]
        %1276 = vmatprep.subr.mxu0 0.0
        %1277 = vmatpush1.msra.mxu0 %v1272
        %1278 = vmatprep.subr.mxu0 0.0
        %1279 = vmatpush1.msra.mxu0 %v1273
        %1280 = vmatprep.subr.mxu0 0.0
        %1281 = vmatpush1.msra.mxu0 %v1274
        %1282 = vmatprep.subr.mxu0 0.0
        %1283 = vmatpush1.msra.mxu0 %v1275
        %1284 = vmatprep.subr.mxu0 0.0
        %1285 = vmatpush1.msra.mxu0 0.0
        %1286 = vmatprep.subr.mxu0 0.0
        %1287 = vmatpush1.msra.mxu0 0.0
        %1288 = vmatprep.subr.mxu0 0.0
        %1289 = vmatpush1.msra.mxu0 0.0
        %1290 = vmatprep.subr.mxu0 0.0
        %1291 = vmatpush1.msra.mxu0 0.0
        %1292 = vmatprep.subr.mxu0 0.0
        %1293 = vmatpush1.msra.mxu0 0.0
        %1294 = vmatprep.subr.mxu0 0.0
        %1295 = vmatpush1.msra.mxu0 0.0
        %1296 = vmatprep.subr.mxu0 0.0
        %1297 = vmatpush1.msra.mxu0 0.0
        %1298 = vmatprep.subr.mxu0 0.0
        %1299 = vmatpush1.msra.mxu0 0.0
        %1300 = vmatprep.subr.mxu0 0.0
        %1301 = vmatpush1.msra.mxu0 0.0
        %1302 = vmatprep.subr.mxu0 0.0
        %1303 = vmatpush1.msra.mxu0 0.0
        %1304 = vmatprep.subr.mxu0 0.0
        %1305 = vmatpush1.msra.mxu0 0.0
        %1306 = vmatprep.subr.mxu0 0.0
        %1307 = vmatpush1.msra.mxu0 0.0
        %1308 = vmatprep.subr.mxu0 0.0
        %1309 = vmatpush1.msra.mxu0 0.0
        %1310 = vmatprep.subr.mxu0 0.0
        %1311 = vmatpush1.msra.mxu0 0.0
        %1312 = vmatprep.subr.mxu0 0.0
        %1313 = vmatpush1.msra.mxu0 0.0
        %1314 = vmatprep.subr.mxu0 0.0
        %1315 = vmatpush1.msra.mxu0 0.0
        %1316 = vmatprep.subr.mxu0 0.0
        %1317 = vmatpush1.msra.mxu0 0.0
        %1318 = vmatprep.subr.mxu0 0.0
        %1319 = vmatpush1.msra.mxu0 0.0
        %1320 = vmatprep.subr.mxu0 0.0
        %1321 = vmatpush1.msra.mxu0 0.0
        %1322 = vmatprep.subr.mxu0 0.0
        %1323 = vmatpush1.msra.mxu0 0.0
        %1324 = vmatprep.subr.mxu0 0.0
        %1325 = vmatpush1.msra.mxu0 0.0
        %1326 = vmatprep.subr.mxu0 0.0
        %1327 = vmatpush1.msra.mxu0 0.0
        %1328 = vmatprep.subr.mxu0 0.0
        %1329 = vmatpush1.msra.mxu0 0.0
        %1330 = vmatprep.subr.mxu0 0.0
        %1331 = vmatpush1.msra.mxu0 0.0
        %1332 = vmatprep.subr.mxu0 0.0
        %1333 = vmatpush1.msra.mxu0 0.0
        %1334 = vmatprep.subr.mxu0 0.0
        %1335 = vmatpush1.msra.mxu0 0.0
        %1336 = vmatprep.subr.mxu0 0.0
        %1337 = vmatpush1.msra.mxu0 0.0
        %1338 = vmatprep.subr.mxu0 0.0
        %1339 = vmatpush1.msra.mxu0 0.0
        %1340 = vmatprep.mubr.f32.mxu0 0.0
        %1341 = vmatmul.mubr.f32.gmra.mrb[0].mxu0 %v641
        %v1342 = vpop.f32.mrb[0].mxu0
        %v1343 = vadd.f32 0.0, %v1342
        %v1344 = vpop.f32.mrb[0].mxu0
        %1345 = vdwg.mxu0
        %1346 = vmatprep.subr.mxu0 0.0
        %1347 = vmatpush1.msra.mxu0 %v1268
        %1348 = vmatprep.subr.mxu0 0.0
        %1349 = vmatpush1.msra.mxu0 %v1269
        %1350 = vmatprep.subr.mxu0 0.0
        %1351 = vmatpush1.msra.mxu0 %v1270
        %1352 = vmatprep.subr.mxu0 0.0
        %1353 = vmatpush1.msra.mxu0 %v1271
        %1354 = vmatprep.subr.mxu0 0.0
        %1355 = vmatpush1.msra.mxu0 0.0
        %1356 = vmatprep.subr.mxu0 0.0
        %1357 = vmatpush1.msra.mxu0 0.0
        %1358 = vmatprep.subr.mxu0 0.0
        %1359 = vmatpush1.msra.mxu0 0.0
        %1360 = vmatprep.subr.mxu0 0.0
        %1361 = vmatpush1.msra.mxu0 0.0
        %1362 = vmatprep.subr.mxu0 0.0
        %1363 = vmatpush1.msra.mxu0 0.0
        %1364 = vmatprep.subr.mxu0 0.0
        %1365 = vmatpush1.msra.mxu0 0.0
        %1366 = vmatprep.subr.mxu0 0.0
        %1367 = vmatpush1.msra.mxu0 0.0
        %1368 = vmatprep.subr.mxu0 0.0
        %1369 = vmatpush1.msra.mxu0 0.0
        %1370 = vmatprep.subr.mxu0 0.0
        %1371 = vmatpush1.msra.mxu0 0.0
        %1372 = vmatprep.subr.mxu0 0.0
        %1373 = vmatpush1.msra.mxu0 0.0
        %1374 = vmatprep.subr.mxu0 0.0
        %1375 = vmatpush1.msra.mxu0 0.0
        %1376 = vmatprep.subr.mxu0 0.0
        %1377 = vmatpush1.msra.mxu0 0.0
        %1378 = vmatprep.subr.mxu0 0.0
        %1379 = vmatpush1.msra.mxu0 0.0
        %1380 = vmatprep.subr.mxu0 0.0
        %1381 = vmatpush1.msra.mxu0 0.0
        %1382 = vmatprep.subr.mxu0 0.0
        %1383 = vmatpush1.msra.mxu0 0.0
        %1384 = vmatprep.subr.mxu0 0.0
        %1385 = vmatpush1.msra.mxu0 0.0
        %1386 = vmatprep.subr.mxu0 0.0
        %1387 = vmatpush1.msra.mxu0 0.0
        %1388 = vmatprep.subr.mxu0 0.0
        %1389 = vmatpush1.msra.mxu0 0.0
        %1390 = vmatprep.subr.mxu0 0.0
        %1391 = vmatpush1.msra.mxu0 0.0
        %1392 = vmatprep.subr.mxu0 0.0
        %1393 = vmatpush1.msra.mxu0 0.0
        %1394 = vmatprep.subr.mxu0 0.0
        %1395 = vmatpush1.msra.mxu0 0.0
        %1396 = vmatprep.subr.mxu0 0.0
        %1397 = vmatpush1.msra.mxu0 0.0
        %1398 = vmatprep.subr.mxu0 0.0
        %1399 = vmatpush1.msra.mxu0 0.0
        %1400 = vmatprep.subr.mxu0 0.0
        %1401 = vmatpush1.msra.mxu0 0.0
        %1402 = vmatprep.subr.mxu0 0.0
        %1403 = vmatpush1.msra.mxu0 0.0
        %1404 = vmatprep.subr.mxu0 0.0
        %1405 = vmatpush1.msra.mxu0 0.0
        %1406 = vmatprep.subr.mxu0 0.0
        %1407 = vmatpush1.msra.mxu0 0.0
        %1408 = vmatprep.subr.mxu0 0.0
        %1409 = vmatpush1.msra.mxu0 0.0
        %1410 = vmatprep.mubr.f32.mxu0 0.0
        %1411 = vmatmul.mubr.f32.gmra.mrb[0].mxu0 %v713
        %v1412 = vpop.f32.mrb[0].mxu0
        %v1413 = vadd.f32 %v1343, %v1412
        %v1414 = vpop.f32.mrb[0].mxu0
        %1415 = vdwg.mxu0
        %s1416 = scalar_lea.vmem %s7, 4
        %v1417 = vld [vmem:[%s1416] sm:$0x1]
        %v1419 = vlaneseq
        %v1420 = vshrl.u32 %v1419, 7
        %v1421 = vsub.s32 0, %v1420
        %v1422 = vrot.slane %v1417, %v1421
        %v1424 = vadd.f32 %v1413, %v1422
        %v1425 = vadd.f32 %v950, 1.0
        %v1426 = vxor.u32 %v1425, 2147483648
        %v1427 = vmul.f32 %v1426, 1.442695
        %v1428 = vpow.pop %v1427
        %v1429 = vadd.f32 %v1428, 1.0
        %v1430 = vrcp.pop %v1429
        %v1431 = vmul.f32 1.0, %v1430
        %v1432 = vmul.f32 %v629, %v1431
        %v1433 = vadd.f32 %v1108, 1.0
        %v1434 = vxor.u32 %v1433, 2147483648
        %v1435 = vmul.f32 %v1434, 1.442695
        %v1436 = vpow.pop %v1435
        %v1437 = vadd.f32 %v1436, 1.0
        %v1438 = vrcp.pop %v1437
        %v1439 = vmul.f32 1.0, %v1438
        %v1441 = vrot.slane %v1439, 7
        %v1443 = vmul.f32 %v629, %v1441
        %v1445 = vrot.slane %v1443, 1
        %v1447 = vadd.f32 %v1432, %v1445
        %v1448 = vtanh.pop %v1266
        %v1449 = vxor.u32 %v792, 2147483648
        %v1450 = vmul.f32 %v1449, 1.442695
        %v1451 = vpow.pop %v1450
        %v1452 = vadd.f32 %v1451, 1.0
        %v1453 = vrcp.pop %v1452
        %v1454 = vmul.f32 1.0, %v1453
        %v1455 = vmul.f32 %v1448, %v1454
        %v1456 = vadd.f32 %v1447, %v1455
        %v1457 = vxor.u32 %v1424, 2147483648
        %v1458 = vmul.f32 %v1457, 1.442695
        %v1459 = vpow.pop %v1458
        %v1460 = vadd.f32 %v1459, 1.0
        %v1461 = vrcp.pop %v1460
        %v1462 = vmul.f32 1.0, %v1461
        %v1463 = vtanh.pop %v1456
        %v1464 = vmul.f32 %v1462, %v1463
        %v1466 = vlaneseq
        %v1467 = vshrl.u32 %v1466, 7
        %v1468 = vsub.s32 0, %v1467
        %v1469 = vrot.slane %v624, %v1468
        %v1471 = vmul.f32 %v1464, %v1469
        %vm1472 = vcmask 260096
        %v1473 = vsel %vm1472, %v1471, 0.0
        %1474 = vadd.xlane.f32.xlu0 %v1473
        %v1475 = vpop.xlane.xlu0 %1474
        %s1476 = sadd.s32 %s30, 1
        %v1477 = vstv %s1476
        %v1478 = vadd.s32 %v626, %v1477
        %v1479 = vstv %s627
        %vm1480 = vcmp.lt.s32.totalorder %v1478, %v1479
        %v1481 = vsel %vm1480, %v1475, -1e+09
        %vm1482 = vcmask 1046528
        %v1483 = vsel %vm1482, %v1481, -inf
        %v1484 = vrot.slane %v1483, 4
        %v1485 = vmax.f32 %v1483, %v1484
        %v1486 = vrot.slane %v1485, 2
        %v1487 = vmax.f32 %v1485, %v1486
        %v1488 = vrot.slane %v1487, 1
        %v1489 = vmax.f32 %v1487, %v1488
        %s1490 = vtos %v1489
        %v1491 = vstv %s1490
        %vm1492 = vcmp.eq.f32.partialorder %v1481, %v1491
        %v1493 = vsel %vm1492, %v626, 7
        %v1494 = vsel %vm1482, %v1493, 2147483647
        %v1495 = vrot.slane %v1494, 4
        %vm1496 = vcmp.lt.s32.totalorder %v1494, %v1495
        %v1497 = vsel %vm1496, %v1494, %v1495
        %v1498 = vrot.slane %v1497, 2
        %vm1499 = vcmp.lt.s32.totalorder %v1497, %v1498
        %v1500 = vsel %vm1499, %v1497, %v1498
        %v1501 = vrot.slane %v1500, 1
        %vm1502 = vcmp.lt.s32.totalorder %v1500, %v1501
        %v1503 = vsel %vm1502, %v1500, %v1501
        %s1504 = vtos %v1503
        %v1505 = vstv %s1504
        %vm1506 = vcmp.lt.s32.totalorder %v626, %v1505
        %vm1507 = vcmp.eq.s32.totalorder %v626, %v1505
        %v1509 = vsel %vm1507, %v1464, %v639
        %v1510 = vsel %vm1506, %v628, %v1509
        %v1512 = vrot.slane %v629, 1
        %v1514 = vsel %vm1507, %v1456, %v1512
        %v1515 = vsel %vm1506, %v629, %v1514
        %p1516 = scmp.lt.s32.totalorder %s1476, %s627
        %s1517 = scalar_select %p1516, 1, 0
        %v1518 = vstv %s1517
        %vm1519 = vcmp.eq.s32.totalorder %v1518, 1
        %v1520 = vsel %vm1519, %v1510, %v628
        %v1521 = vsel %vm1519, %v1515, %v629
        %1522 = vst.msk [vmem:[#allocation2] sm:$0x7f] %vm1472, %v1520
        %1523 = vst.msk [vmem:[#allocation3] sm:$0x7f] %vm1472, %v1521
        %vm1524 = vcmask 253952
        %1525 = vst.msk [vmem:[#allocation6] sm:$0x1] %vm1524, %v1520
        %1526 = vst.msk [vmem:[#allocation8] sm:$0x1] %vm1524, %v1521
        %s1527 = sld [smem:[#allocation5 + $0x1]]
        %s1528 = scalar_lea.vmem [#allocation2], 8
        %v1529 = vld [vmem:[%s1528] sm:$0xff]
        %s1530 = scalar_lea.vmem [#allocation3], 8
        %v1531 = vld [vmem:[%s1530] sm:$0xff]
        %v1532 = vld [vmem:[%s6] sm:$0xff]
        %v1533 = vld [vmem:[%s6 + $0x8] sm:$0xff]
        %v1534 = vld [vmem:[%s6 + $0x10] sm:$0xff]
        %v1535 = vld [vmem:[%s6 + $0x18] sm:$0xff]
        %v1536 = vld [vmem:[%s6 + $0x20] sm:$0xff]
        %v1537 = vld [vmem:[%s6 + $0x28] sm:$0xff]
        %v1538 = vld [vmem:[%s6 + $0x30] sm:$0xff]
        %v1539 = vld [vmem:[%s6 + $0x38] sm:$0xff]
        %v1541 = vrot.slane %v1529, 1
        %v1542 = vsel %vm640, %v1541, 0
        %1544 = vmatprep.subr.mxu0 0.0
        %1545 = vmatpush1.msra.mxu0 %v1536
        %1546 = vmatprep.subr.mxu0 0.0
        %1547 = vmatpush1.msra.mxu0 %v1537
        %1548 = vmatprep.subr.mxu0 0.0
        %1549 = vmatpush1.msra.mxu0 %v1538
        %1550 = vmatprep.subr.mxu0 0.0
        %1551 = vmatpush1.msra.mxu0 %v1539
        %1552 = vmatprep.subr.mxu0 0.0
        %1553 = vmatpush1.msra.mxu0 0.0
        %1554 = vmatprep.subr.mxu0 0.0
        %1555 = vmatpush1.msra.mxu0 0.0
        %1556 = vmatprep.subr.mxu0 0.0
        %1557 = vmatpush1.msra.mxu0 0.0
        %1558 = vmatprep.subr.mxu0 0.0
        %1559 = vmatpush1.msra.mxu0 0.0
        %1560 = vmatprep.subr.mxu0 0.0
        %1561 = vmatpush1.msra.mxu0 0.0
        %1562 = vmatprep.subr.mxu0 0.0
        %1563 = vmatpush1.msra.mxu0 0.0
        %1564 = vmatprep.subr.mxu0 0.0
        %1565 = vmatpush1.msra.mxu0 0.0
        %1566 = vmatprep.subr.mxu0 0.0
        %1567 = vmatpush1.msra.mxu0 0.0
        %1568 = vmatprep.subr.mxu0 0.0
        %1569 = vmatpush1.msra.mxu0 0.0
        %1570 = vmatprep.subr.mxu0 0.0
        %1571 = vmatpush1.msra.mxu0 0.0
        %1572 = vmatprep.subr.mxu0 0.0
        %1573 = vmatpush1.msra.mxu0 0.0
        %1574 = vmatprep.subr.mxu0 0.0
        %1575 = vmatpush1.msra.mxu0 0.0
        %1576 = vmatprep.subr.mxu0 0.0
        %1577 = vmatpush1.msra.mxu0 0.0
        %1578 = vmatprep.subr.mxu0 0.0
        %1579 = vmatpush1.msra.mxu0 0.0
        %1580 = vmatprep.subr.mxu0 0.0
        %1581 = vmatpush1.msra.mxu0 0.0
        %1582 = vmatprep.subr.mxu0 0.0
        %1583 = vmatpush1.msra.mxu0 0.0
        %1584 = vmatprep.subr.mxu0 0.0
        %1585 = vmatpush1.msra.mxu0 0.0
        %1586 = vmatprep.subr.mxu0 0.0
        %1587 = vmatpush1.msra.mxu0 0.0
        %1588 = vmatprep.subr.mxu0 0.0
        %1589 = vmatpush1.msra.mxu0 0.0
        %1590 = vmatprep.subr.mxu0 0.0
        %1591 = vmatpush1.msra.mxu0 0.0
        %1592 = vmatprep.subr.mxu0 0.0
        %1593 = vmatpush1.msra.mxu0 0.0
        %1594 = vmatprep.subr.mxu0 0.0
        %1595 = vmatpush1.msra.mxu0 0.0
        %1596 = vmatprep.subr.mxu0 0.0
        %1597 = vmatpush1.msra.mxu0 0.0
        %1598 = vmatprep.subr.mxu0 0.0
        %1599 = vmatpush1.msra.mxu0 0.0
        %1600 = vmatprep.subr.mxu0 0.0
        %1601 = vmatpush1.msra.mxu0 0.0
        %1602 = vmatprep.subr.mxu0 0.0
        %1603 = vmatpush1.msra.mxu0 0.0
        %1604 = vmatprep.subr.mxu0 0.0
        %1605 = vmatpush1.msra.mxu0 0.0
        %1606 = vmatprep.subr.mxu0 0.0
        %1607 = vmatpush1.msra.mxu0 0.0
        %1608 = vmatprep.mubr.f32.mxu0 0.0
        %1609 = vmatmul.mubr.f32.gmra.mrb[0].mxu0 %v1542
        %v1610 = vpop.f32.mrb[0].mxu0
        %v1611 = vadd.f32 0.0, %v1610
        %v1612 = vpop.f32.mrb[0].mxu0
        %1613 = vdwg.mxu0
        %v1614 = vsel %vm640, %v1529, 0
        %1616 = vmatprep.subr.mxu0 0.0
        %1617 = vmatpush1.msra.mxu0 %v1532
        %1618 = vmatprep.subr.mxu0 0.0
        %1619 = vmatpush1.msra.mxu0 %v1533
        %1620 = vmatprep.subr.mxu0 0.0
        %1621 = vmatpush1.msra.mxu0 %v1534
        %1622 = vmatprep.subr.mxu0 0.0
        %1623 = vmatpush1.msra.mxu0 %v1535
        %1624 = vmatprep.subr.mxu0 0.0
        %1625 = vmatpush1.msra.mxu0 0.0
        %1626 = vmatprep.subr.mxu0 0.0
        %1627 = vmatpush1.msra.mxu0 0.0
        %1628 = vmatprep.subr.mxu0 0.0
        %1629 = vmatpush1.msra.mxu0 0.0
        %1630 = vmatprep.subr.mxu0 0.0
        %1631 = vmatpush1.msra.mxu0 0.0
        %1632 = vmatprep.subr.mxu0 0.0
        %1633 = vmatpush1.msra.mxu0 0.0
        %1634 = vmatprep.subr.mxu0 0.0
        %1635 = vmatpush1.msra.mxu0 0.0
        %1636 = vmatprep.subr.mxu0 0.0
        %1637 = vmatpush1.msra.mxu0 0.0
        %1638 = vmatprep.subr.mxu0 0.0
        %1639 = vmatpush1.msra.mxu0 0.0
        %1640 = vmatprep.subr.mxu0 0.0
        %1641 = vmatpush1.msra.mxu0 0.0
        %1642 = vmatprep.subr.mxu0 0.0
        %1643 = vmatpush1.msra.mxu0 0.0
        %1644 = vmatprep.subr.mxu0 0.0
        %1645 = vmatpush1.msra.mxu0 0.0
        %1646 = vmatprep.subr.mxu0 0.0
        %1647 = vmatpush1.msra.mxu0 0.0
        %1648 = vmatprep.subr.mxu0 0.0
        %1649 = vmatpush1.msra.mxu0 0.0
        %1650 = vmatprep.subr.mxu0 0.0
        %1651 = vmatpush1.msra.mxu0 0.0
        %1652 = vmatprep.subr.mxu0 0.0
        %1653 = vmatpush1.msra.mxu0 0.0
        %1654 = vmatprep.subr.mxu0 0.0
        %1655 = vmatpush1.msra.mxu0 0.0
        %1656 = vmatprep.subr.mxu0 0.0
        %1657 = vmatpush1.msra.mxu0 0.0
        %1658 = vmatprep.subr.mxu0 0.0
        %1659 = vmatpush1.msra.mxu0 0.0
        %1660 = vmatprep.subr.mxu0 0.0
        %1661 = vmatpush1.msra.mxu0 0.0
        %1662 = vmatprep.subr.mxu0 0.0
        %1663 = vmatpush1.msra.mxu0 0.0
        %1664 = vmatprep.subr.mxu0 0.0
        %1665 = vmatpush1.msra.mxu0 0.0
        %1666 = vmatprep.subr.mxu0 0.0
        %1667 = vmatpush1.msra.mxu0 0.0
        %1668 = vmatprep.subr.mxu0 0.0
        %1669 = vmatpush1.msra.mxu0 0.0
        %1670 = vmatprep.subr.mxu0 0.0
        %1671 = vmatpush1.msra.mxu0 0.0
        %1672 = vmatprep.subr.mxu0 0.0
        %1673 = vmatpush1.msra.mxu0 0.0
        %1674 = vmatprep.subr.mxu0 0.0
        %1675 = vmatpush1.msra.mxu0 0.0
        %1676 = vmatprep.subr.mxu0 0.0
        %1677 = vmatpush1.msra.mxu0 0.0
        %1678 = vmatprep.subr.mxu0 0.0
        %1679 = vmatpush1.msra.mxu0 0.0
        %1680 = vmatprep.mubr.f32.mxu0 0.0
        %1681 = vmatmul.mubr.f32.gmra.mrb[0].mxu0 %v1614
        %v1682 = vpop.f32.mrb[0].mxu0
        %v1683 = vadd.f32 %v1611, %v1682
        %v1684 = vpop.f32.mrb[0].mxu0
        %1685 = vdwg.mxu0
        %v1686 = vld [vmem:[%s7] sm:$0x1]
        %v1688 = vlaneseq
        %v1689 = vshrl.u32 %v1688, 7
        %v1690 = vsub.s32 0, %v1689
        %v1691 = vrot.slane %v1686, %v1690
        %v1693 = vadd.f32 %v1683, %v1691
        %v1694 = vld [vmem:[%s793] sm:$0xff]
        %v1695 = vld [vmem:[%s793 + $0x8] sm:$0xff]
        %v1696 = vld [vmem:[%s793 + $0x10] sm:$0xff]
        %v1697 = vld [vmem:[%s793 + $0x18] sm:$0xff]
        %v1698 = vld [vmem:[%s793 + $0x20] sm:$0xff]
        %v1699 = vld [vmem:[%s793 + $0x28] sm:$0xff]
        %v1700 = vld [vmem:[%s793 + $0x30] sm:$0xff]
        %v1701 = vld [vmem:[%s793 + $0x38] sm:$0xff]
        %1702 = vmatprep.subr.mxu0 0.0
        %1703 = vmatpush1.msra.mxu0 %v1698
        %1704 = vmatprep.subr.mxu0 0.0
        %1705 = vmatpush1.msra.mxu0 %v1699
        %1706 = vmatprep.subr.mxu0 0.0
        %1707 = vmatpush1.msra.mxu0 %v1700
        %1708 = vmatprep.subr.mxu0 0.0
        %1709 = vmatpush1.msra.mxu0 %v1701
        %1710 = vmatprep.subr.mxu0 0.0
        %1711 = vmatpush1.msra.mxu0 0.0
        %1712 = vmatprep.subr.mxu0 0.0
        %1713 = vmatpush1.msra.mxu0 0.0
        %1714 = vmatprep.subr.mxu0 0.0
        %1715 = vmatpush1.msra.mxu0 0.0
        %1716 = vmatprep.subr.mxu0 0.0
        %1717 = vmatpush1.msra.mxu0 0.0
        %1718 = vmatprep.subr.mxu0 0.0
        %1719 = vmatpush1.msra.mxu0 0.0
        %1720 = vmatprep.subr.mxu0 0.0
        %1721 = vmatpush1.msra.mxu0 0.0
        %1722 = vmatprep.subr.mxu0 0.0
        %1723 = vmatpush1.msra.mxu0 0.0
        %1724 = vmatprep.subr.mxu0 0.0
        %1725 = vmatpush1.msra.mxu0 0.0
        %1726 = vmatprep.subr.mxu0 0.0
        %1727 = vmatpush1.msra.mxu0 0.0
        %1728 = vmatprep.subr.mxu0 0.0
        %1729 = vmatpush1.msra.mxu0 0.0
        %1730 = vmatprep.subr.mxu0 0.0
        %1731 = vmatpush1.msra.mxu0 0.0
        %1732 = vmatprep.subr.mxu0 0.0
        %1733 = vmatpush1.msra.mxu0 0.0
        %1734 = vmatprep.subr.mxu0 0.0
        %1735 = vmatpush1.msra.mxu0 0.0
        %1736 = vmatprep.subr.mxu0 0.0
        %1737 = vmatpush1.msra.mxu0 0.0
        %1738 = vmatprep.subr.mxu0 0.0
        %1739 = vmatpush1.msra.mxu0 0.0
        %1740 = vmatprep.subr.mxu0 0.0
        %1741 = vmatpush1.msra.mxu0 0.0
        %1742 = vmatprep.subr.mxu0 0.0
        %1743 = vmatpush1.msra.mxu0 0.0
        %1744 = vmatprep.subr.mxu0 0.0
        %1745 = vmatpush1.msra.mxu0 0.0
        %1746 = vmatprep.subr.mxu0 0.0
        %1747 = vmatpush1.msra.mxu0 0.0
        %1748 = vmatprep.subr.mxu0 0.0
        %1749 = vmatpush1.msra.mxu0 0.0
        %1750 = vmatprep.subr.mxu0 0.0
        %1751 = vmatpush1.msra.mxu0 0.0
        %1752 = vmatprep.subr.mxu0 0.0
        %1753 = vmatpush1.msra.mxu0 0.0
        %1754 = vmatprep.subr.mxu0 0.0
        %1755 = vmatpush1.msra.mxu0 0.0
        %1756 = vmatprep.subr.mxu0 0.0
        %1757 = vmatpush1.msra.mxu0 0.0
        %1758 = vmatprep.subr.mxu0 0.0
        %1759 = vmatpush1.msra.mxu0 0.0
        %1760 = vmatprep.subr.mxu0 0.0
        %1761 = vmatpush1.msra.mxu0 0.0
        %1762 = vmatprep.subr.mxu0 0.0
        %1763 = vmatpush1.msra.mxu0 0.0
        %1764 = vmatprep.subr.mxu0 0.0
        %1765 = vmatpush1.msra.mxu0 0.0
        %1766 = vmatprep.mubr.f32.mxu0 0.0
        %1767 = vmatmul.mubr.f32.gmra.mrb[0].mxu0 %v1542
        %v1768 = vpop.f32.mrb[0].mxu0
        %v1769 = vadd.f32 0.0, %v1768
        %v1770 = vpop.f32.mrb[0].mxu0
        %1771 = vdwg.mxu0
        %1772 = vmatprep.subr.mxu0 0.0
        %1773 = vmatpush1.msra.mxu0 %v1694
        %1774 = vmatprep.subr.mxu0 0.0
        %1775 = vmatpush1.msra.mxu0 %v1695
        %1776 = vmatprep.subr.mxu0 0.0
        %1777 = vmatpush1.msra.mxu0 %v1696
        %1778 = vmatprep.subr.mxu0 0.0
        %1779 = vmatpush1.msra.mxu0 %v1697
        %1780 = vmatprep.subr.mxu0 0.0
        %1781 = vmatpush1.msra.mxu0 0.0
        %1782 = vmatprep.subr.mxu0 0.0
        %1783 = vmatpush1.msra.mxu0 0.0
        %1784 = vmatprep.subr.mxu0 0.0
        %1785 = vmatpush1.msra.mxu0 0.0
        %1786 = vmatprep.subr.mxu0 0.0
        %1787 = vmatpush1.msra.mxu0 0.0
        %1788 = vmatprep.subr.mxu0 0.0
        %1789 = vmatpush1.msra.mxu0 0.0
        %1790 = vmatprep.subr.mxu0 0.0
        %1791 = vmatpush1.msra.mxu0 0.0
        %1792 = vmatprep.subr.mxu0 0.0
        %1793 = vmatpush1.msra.mxu0 0.0
        %1794 = vmatprep.subr.mxu0 0.0
        %1795 = vmatpush1.msra.mxu0 0.0
        %1796 = vmatprep.subr.mxu0 0.0
        %1797 = vmatpush1.msra.mxu0 0.0
        %1798 = vmatprep.subr.mxu0 0.0
        %1799 = vmatpush1.msra.mxu0 0.0
        %1800 = vmatprep.subr.mxu0 0.0
        %1801 = vmatpush1.msra.mxu0 0.0
        %1802 = vmatprep.subr.mxu0 0.0
        %1803 = vmatpush1.msra.mxu0 0.0
        %1804 = vmatprep.subr.mxu0 0.0
        %1805 = vmatpush1.msra.mxu0 0.0
        %1806 = vmatprep.subr.mxu0 0.0
        %1807 = vmatpush1.msra.mxu0 0.0
        %1808 = vmatprep.subr.mxu0 0.0
        %1809 = vmatpush1.msra.mxu0 0.0
        %1810 = vmatprep.subr.mxu0 0.0
        %1811 = vmatpush1.msra.mxu0 0.0
        %1812 = vmatprep.subr.mxu0 0.0
        %1813 = vmatpush1.msra.mxu0 0.0
        %1814 = vmatprep.subr.mxu0 0.0
        %1815 = vmatpush1.msra.mxu0 0.0
        %1816 = vmatprep.subr.mxu0 0.0
        %1817 = vmatpush1.msra.mxu0 0.0
        %1818 = vmatprep.subr.mxu0 0.0
        %1819 = vmatpush1.msra.mxu0 0.0
        %1820 = vmatprep.subr.mxu0 0.0
        %1821 = vmatpush1.msra.mxu0 0.0
        %1822 = vmatprep.subr.mxu0 0.0
        %1823 = vmatpush1.msra.mxu0 0.0
        %1824 = vmatprep.subr.mxu0 0.0
        %1825 = vmatpush1.msra.mxu0 0.0
        %1826 = vmatprep.subr.mxu0 0.0
        %1827 = vmatpush1.msra.mxu0 0.0
        %1828 = vmatprep.subr.mxu0 0.0
        %1829 = vmatpush1.msra.mxu0 0.0
        %1830 = vmatprep.subr.mxu0 0.0
        %1831 = vmatpush1.msra.mxu0 0.0
        %1832 = vmatprep.subr.mxu0 0.0
        %1833 = vmatpush1.msra.mxu0 0.0
        %1834 = vmatprep.subr.mxu0 0.0
        %1835 = vmatpush1.msra.mxu0 0.0
        %1836 = vmatprep.mubr.f32.mxu0 0.0
        %1837 = vmatmul.mubr.f32.gmra.mrb[0].mxu0 %v1614
        %v1838 = vpop.f32.mrb[0].mxu0
        %v1839 = vadd.f32 %v1769, %v1838
        %v1840 = vpop.f32.mrb[0].mxu0
        %1841 = vdwg.mxu0
        %v1842 = vld [vmem:[%s942] sm:$0x1]
        %v1844 = vlaneseq
        %v1845 = vshrl.u32 %v1844, 7
        %v1846 = vsub.s32 0, %v1845
        %v1847 = vrot.slane %v1842, %v1846
        %v1849 = vadd.f32 %v1839, %v1847
        %v1850 = vld [vmem:[%s951] sm:$0xff]
        %v1851 = vld [vmem:[%s951 + $0x8] sm:$0xff]
        %v1852 = vld [vmem:[%s951 + $0x10] sm:$0xff]
        %v1853 = vld [vmem:[%s951 + $0x18] sm:$0xff]
        %v1854 = vld [vmem:[%s951 + $0x20] sm:$0xff]
        %v1855 = vld [vmem:[%s951 + $0x28] sm:$0xff]
        %v1856 = vld [vmem:[%s951 + $0x30] sm:$0xff]
        %v1857 = vld [vmem:[%s951 + $0x38] sm:$0xff]
        %1858 = vmatprep.subr.mxu0 0.0
        %1859 = vmatpush1.msra.mxu0 %v1854
        %1860 = vmatprep.subr.mxu0 0.0
        %1861 = vmatpush1.msra.mxu0 %v1855
        %1862 = vmatprep.subr.mxu0 0.0
        %1863 = vmatpush1.msra.mxu0 %v1856
        %1864 = vmatprep.subr.mxu0 0.0
        %1865 = vmatpush1.msra.mxu0 %v1857
        %1866 = vmatprep.subr.mxu0 0.0
        %1867 = vmatpush1.msra.mxu0 0.0
        %1868 = vmatprep.subr.mxu0 0.0
        %1869 = vmatpush1.msra.mxu0 0.0
        %1870 = vmatprep.subr.mxu0 0.0
        %1871 = vmatpush1.msra.mxu0 0.0
        %1872 = vmatprep.subr.mxu0 0.0
        %1873 = vmatpush1.msra.mxu0 0.0
        %1874 = vmatprep.subr.mxu0 0.0
        %1875 = vmatpush1.msra.mxu0 0.0
        %1876 = vmatprep.subr.mxu0 0.0
        %1877 = vmatpush1.msra.mxu0 0.0
        %1878 = vmatprep.subr.mxu0 0.0
        %1879 = vmatpush1.msra.mxu0 0.0
        %1880 = vmatprep.subr.mxu0 0.0
        %1881 = vmatpush1.msra.mxu0 0.0
        %1882 = vmatprep.subr.mxu0 0.0
        %1883 = vmatpush1.msra.mxu0 0.0
        %1884 = vmatprep.subr.mxu0 0.0
        %1885 = vmatpush1.msra.mxu0 0.0
        %1886 = vmatprep.subr.mxu0 0.0
        %1887 = vmatpush1.msra.mxu0 0.0
        %1888 = vmatprep.subr.mxu0 0.0
        %1889 = vmatpush1.msra.mxu0 0.0
        %1890 = vmatprep.subr.mxu0 0.0
        %1891 = vmatpush1.msra.mxu0 0.0
        %1892 = vmatprep.subr.mxu0 0.0
        %1893 = vmatpush1.msra.mxu0 0.0
        %1894 = vmatprep.subr.mxu0 0.0
        %1895 = vmatpush1.msra.mxu0 0.0
        %1896 = vmatprep.subr.mxu0 0.0
        %1897 = vmatpush1.msra.mxu0 0.0
        %1898 = vmatprep.subr.mxu0 0.0
        %1899 = vmatpush1.msra.mxu0 0.0
        %1900 = vmatprep.subr.mxu0 0.0
        %1901 = vmatpush1.msra.mxu0 0.0
        %1902 = vmatprep.subr.mxu0 0.0
        %1903 = vmatpush1.msra.mxu0 0.0
        %1904 = vmatprep.subr.mxu0 0.0
        %1905 = vmatpush1.msra.mxu0 0.0
        %1906 = vmatprep.subr.mxu0 0.0
        %1907 = vmatpush1.msra.mxu0 0.0
        %1908 = vmatprep.subr.mxu0 0.0
        %1909 = vmatpush1.msra.mxu0 0.0
        %1910 = vmatprep.subr.mxu0 0.0
        %1911 = vmatpush1.msra.mxu0 0.0
        %1912 = vmatprep.subr.mxu0 0.0
        %1913 = vmatpush1.msra.mxu0 0.0
        %1914 = vmatprep.subr.mxu0 0.0
        %1915 = vmatpush1.msra.mxu0 0.0
        %1916 = vmatprep.subr.mxu0 0.0
        %1917 = vmatpush1.msra.mxu0 0.0
        %1918 = vmatprep.subr.mxu0 0.0
        %1919 = vmatpush1.msra.mxu0 0.0
        %1920 = vmatprep.subr.mxu0 0.0
        %1921 = vmatpush1.msra.mxu0 0.0
        %1922 = vmatprep.mubr.f32.mxu0 0.0
        %1923 = vmatmul.mubr.f32.gmra.mrb[0].mxu0 %v1542
        %v1924 = vpop.f32.mrb[0].mxu0
        %v1925 = vadd.f32 0.0, %v1924
        %v1926 = vpop.f32.mrb[0].mxu0
        %1927 = vdwg.mxu0
        %1928 = vmatprep.subr.mxu0 0.0
        %1929 = vmatpush1.msra.mxu0 %v1850
        %1930 = vmatprep.subr.mxu0 0.0
        %1931 = vmatpush1.msra.mxu0 %v1851
        %1932 = vmatprep.subr.mxu0 0.0
        %1933 = vmatpush1.msra.mxu0 %v1852
        %1934 = vmatprep.subr.mxu0 0.0
        %1935 = vmatpush1.msra.mxu0 %v1853
        %1936 = vmatprep.subr.mxu0 0.0
        %1937 = vmatpush1.msra.mxu0 0.0
        %1938 = vmatprep.subr.mxu0 0.0
        %1939 = vmatpush1.msra.mxu0 0.0
        %1940 = vmatprep.subr.mxu0 0.0
        %1941 = vmatpush1.msra.mxu0 0.0
        %1942 = vmatprep.subr.mxu0 0.0
        %1943 = vmatpush1.msra.mxu0 0.0
        %1944 = vmatprep.subr.mxu0 0.0
        %1945 = vmatpush1.msra.mxu0 0.0
        %1946 = vmatprep.subr.mxu0 0.0
        %1947 = vmatpush1.msra.mxu0 0.0
        %1948 = vmatprep.subr.mxu0 0.0
        %1949 = vmatpush1.msra.mxu0 0.0
        %1950 = vmatprep.subr.mxu0 0.0
        %1951 = vmatpush1.msra.mxu0 0.0
        %1952 = vmatprep.subr.mxu0 0.0
        %1953 = vmatpush1.msra.mxu0 0.0
        %1954 = vmatprep.subr.mxu0 0.0
        %1955 = vmatpush1.msra.mxu0 0.0
        %1956 = vmatprep.subr.mxu0 0.0
        %1957 = vmatpush1.msra.mxu0 0.0
        %1958 = vmatprep.subr.mxu0 0.0
        %1959 = vmatpush1.msra.mxu0 0.0
        %1960 = vmatprep.subr.mxu0 0.0
        %1961 = vmatpush1.msra.mxu0 0.0
        %1962 = vmatprep.subr.mxu0 0.0
        %1963 = vmatpush1.msra.mxu0 0.0
        %1964 = vmatprep.subr.mxu0 0.0
        %1965 = vmatpush1.msra.mxu0 0.0
        %1966 = vmatprep.subr.mxu0 0.0
        %1967 = vmatpush1.msra.mxu0 0.0
        %1968 = vmatprep.subr.mxu0 0.0
        %1969 = vmatpush1.msra.mxu0 0.0
        %1970 = vmatprep.subr.mxu0 0.0
        %1971 = vmatpush1.msra.mxu0 0.0
        %1972 = vmatprep.subr.mxu0 0.0
        %1973 = vmatpush1.msra.mxu0 0.0
        %1974 = vmatprep.subr.mxu0 0.0
        %1975 = vmatpush1.msra.mxu0 0.0
        %1976 = vmatprep.subr.mxu0 0.0
        %1977 = vmatpush1.msra.mxu0 0.0
        %1978 = vmatprep.subr.mxu0 0.0
        %1979 = vmatpush1.msra.mxu0 0.0
        %1980 = vmatprep.subr.mxu0 0.0
        %1981 = vmatpush1.msra.mxu0 0.0
        %1982 = vmatprep.subr.mxu0 0.0
        %1983 = vmatpush1.msra.mxu0 0.0
        %1984 = vmatprep.subr.mxu0 0.0
        %1985 = vmatpush1.msra.mxu0 0.0
        %1986 = vmatprep.subr.mxu0 0.0
        %1987 = vmatpush1.msra.mxu0 0.0
        %1988 = vmatprep.subr.mxu0 0.0
        %1989 = vmatpush1.msra.mxu0 0.0
        %1990 = vmatprep.subr.mxu0 0.0
        %1991 = vmatpush1.msra.mxu0 0.0
        %1992 = vmatprep.mubr.f32.mxu0 0.0
        %1993 = vmatmul.mubr.f32.gmra.mrb[0].mxu0 %v1614
        %v1994 = vpop.f32.mrb[0].mxu0
        %v1995 = vadd.f32 %v1925, %v1994
        %v1996 = vpop.f32.mrb[0].mxu0
        %1997 = vdwg.mxu0
        %v1998 = vld [vmem:[%s1100] sm:$0x1]
        %v2000 = vlaneseq
        %v2001 = vshrl.u32 %v2000, 7
        %v2002 = vsub.s32 0, %v2001
        %v2003 = vrot.slane %v1998, %v2002
        %v2005 = vadd.f32 %v1995, %v2003
        %v2006 = vld [vmem:[%s1109] sm:$0xff]
        %v2007 = vld [vmem:[%s1109 + $0x8] sm:$0xff]
        %v2008 = vld [vmem:[%s1109 + $0x10] sm:$0xff]
        %v2009 = vld [vmem:[%s1109 + $0x18] sm:$0xff]
        %v2010 = vld [vmem:[%s1109 + $0x20] sm:$0xff]
        %v2011 = vld [vmem:[%s1109 + $0x28] sm:$0xff]
        %v2012 = vld [vmem:[%s1109 + $0x30] sm:$0xff]
        %v2013 = vld [vmem:[%s1109 + $0x38] sm:$0xff]
        %2014 = vmatprep.subr.mxu0 0.0
        %2015 = vmatpush1.msra.mxu0 %v2010
        %2016 = vmatprep.subr.mxu0 0.0
        %2017 = vmatpush1.msra.mxu0 %v2011
        %2018 = vmatprep.subr.mxu0 0.0
        %2019 = vmatpush1.msra.mxu0 %v2012
        %2020 = vmatprep.subr.mxu0 0.0
        %2021 = vmatpush1.msra.mxu0 %v2013
        %2022 = vmatprep.subr.mxu0 0.0
        %2023 = vmatpush1.msra.mxu0 0.0
        %2024 = vmatprep.subr.mxu0 0.0
        %2025 = vmatpush1.msra.mxu0 0.0
        %2026 = vmatprep.subr.mxu0 0.0
        %2027 = vmatpush1.msra.mxu0 0.0
        %2028 = vmatprep.subr.mxu0 0.0
        %2029 = vmatpush1.msra.mxu0 0.0
        %2030 = vmatprep.subr.mxu0 0.0
        %2031 = vmatpush1.msra.mxu0 0.0
        %2032 = vmatprep.subr.mxu0 0.0
        %2033 = vmatpush1.msra.mxu0 0.0
        %2034 = vmatprep.subr.mxu0 0.0
        %2035 = vmatpush1.msra.mxu0 0.0
        %2036 = vmatprep.subr.mxu0 0.0
        %2037 = vmatpush1.msra.mxu0 0.0
        %2038 = vmatprep.subr.mxu0 0.0
        %2039 = vmatpush1.msra.mxu0 0.0
        %2040 = vmatprep.subr.mxu0 0.0
        %2041 = vmatpush1.msra.mxu0 0.0
        %2042 = vmatprep.subr.mxu0 0.0
        %2043 = vmatpush1.msra.mxu0 0.0
        %2044 = vmatprep.subr.mxu0 0.0
        %2045 = vmatpush1.msra.mxu0 0.0
        %2046 = vmatprep.subr.mxu0 0.0
        %2047 = vmatpush1.msra.mxu0 0.0
        %2048 = vmatprep.subr.mxu0 0.0
        %2049 = vmatpush1.msra.mxu0 0.0
        %2050 = vmatprep.subr.mxu0 0.0
        %2051 = vmatpush1.msra.mxu0 0.0
        %2052 = vmatprep.subr.mxu0 0.0
        %2053 = vmatpush1.msra.mxu0 0.0
        %2054 = vmatprep.subr.mxu0 0.0
        %2055 = vmatpush1.msra.mxu0 0.0
        %2056 = vmatprep.subr.mxu0 0.0
        %2057 = vmatpush1.msra.mxu0 0.0
        %2058 = vmatprep.subr.mxu0 0.0
        %2059 = vmatpush1.msra.mxu0 0.0
        %2060 = vmatprep.subr.mxu0 0.0
        %2061 = vmatpush1.msra.mxu0 0.0
        %2062 = vmatprep.subr.mxu0 0.0
        %2063 = vmatpush1.msra.mxu0 0.0
        %2064 = vmatprep.subr.mxu0 0.0
        %2065 = vmatpush1.msra.mxu0 0.0
        %2066 = vmatprep.subr.mxu0 0.0
        %2067 = vmatpush1.msra.mxu0 0.0
        %2068 = vmatprep.subr.mxu0 0.0
        %2069 = vmatpush1.msra.mxu0 0.0
        %2070 = vmatprep.subr.mxu0 0.0
        %2071 = vmatpush1.msra.mxu0 0.0
        %2072 = vmatprep.subr.mxu0 0.0
        %2073 = vmatpush1.msra.mxu0 0.0
        %2074 = vmatprep.subr.mxu0 0.0
        %2075 = vmatpush1.msra.mxu0 0.0
        %2076 = vmatprep.subr.mxu0 0.0
        %2077 = vmatpush1.msra.mxu0 0.0
        %2078 = vmatprep.mubr.f32.mxu0 0.0
        %2079 = vmatmul.mubr.f32.gmra.mrb[0].mxu0 %v1542
        %v2080 = vpop.f32.mrb[0].mxu0
        %v2081 = vadd.f32 0.0, %v2080
        %v2082 = vpop.f32.mrb[0].mxu0
        %2083 = vdwg.mxu0
        %2084 = vmatprep.subr.mxu0 0.0
        %2085 = vmatpush1.msra.mxu0 %v2006
        %2086 = vmatprep.subr.mxu0 0.0
        %2087 = vmatpush1.msra.mxu0 %v2007
        %2088 = vmatprep.subr.mxu0 0.0
        %2089 = vmatpush1.msra.mxu0 %v2008
        %2090 = vmatprep.subr.mxu0 0.0
        %2091 = vmatpush1.msra.mxu0 %v2009
        %2092 = vmatprep.subr.mxu0 0.0
        %2093 = vmatpush1.msra.mxu0 0.0
        %2094 = vmatprep.subr.mxu0 0.0
        %2095 = vmatpush1.msra.mxu0 0.0
        %2096 = vmatprep.subr.mxu0 0.0
        %2097 = vmatpush1.msra.mxu0 0.0
        %2098 = vmatprep.subr.mxu0 0.0
        %2099 = vmatpush1.msra.mxu0 0.0
        %2100 = vmatprep.subr.mxu0 0.0
        %2101 = vmatpush1.msra.mxu0 0.0
        %2102 = vmatprep.subr.mxu0 0.0
        %2103 = vmatpush1.msra.mxu0 0.0
        %2104 = vmatprep.subr.mxu0 0.0
        %2105 = vmatpush1.msra.mxu0 0.0
        %2106 = vmatprep.subr.mxu0 0.0
        %2107 = vmatpush1.msra.mxu0 0.0
        %2108 = vmatprep.subr.mxu0 0.0
        %2109 = vmatpush1.msra.mxu0 0.0
        %2110 = vmatprep.subr.mxu0 0.0
        %2111 = vmatpush1.msra.mxu0 0.0
        %2112 = vmatprep.subr.mxu0 0.0
        %2113 = vmatpush1.msra.mxu0 0.0
        %2114 = vmatprep.subr.mxu0 0.0
        %2115 = vmatpush1.msra.mxu0 0.0
        %2116 = vmatprep.subr.mxu0 0.0
        %2117 = vmatpush1.msra.mxu0 0.0
        %2118 = vmatprep.subr.mxu0 0.0
        %2119 = vmatpush1.msra.mxu0 0.0
        %2120 = vmatprep.subr.mxu0 0.0
        %2121 = vmatpush1.msra.mxu0 0.0
        %2122 = vmatprep.subr.mxu0 0.0
        %2123 = vmatpush1.msra.mxu0 0.0
        %2124 = vmatprep.subr.mxu0 0.0
        %2125 = vmatpush1.msra.mxu0 0.0
        %2126 = vmatprep.subr.mxu0 0.0
        %2127 = vmatpush1.msra.mxu0 0.0
        %2128 = vmatprep.subr.mxu0 0.0
        %2129 = vmatpush1.msra.mxu0 0.0
        %2130 = vmatprep.subr.mxu0 0.0
        %2131 = vmatpush1.msra.mxu0 0.0
        %2132 = vmatprep.subr.mxu0 0.0
        %2133 = vmatpush1.msra.mxu0 0.0
        %2134 = vmatprep.subr.mxu0 0.0
        %2135 = vmatpush1.msra.mxu0 0.0
        %2136 = vmatprep.subr.mxu0 0.0
        %2137 = vmatpush1.msra.mxu0 0.0
        %2138 = vmatprep.subr.mxu0 0.0
        %2139 = vmatpush1.msra.mxu0 0.0
        %2140 = vmatprep.subr.mxu0 0.0
        %2141 = vmatpush1.msra.mxu0 0.0
        %2142 = vmatprep.subr.mxu0 0.0
        %2143 = vmatpush1.msra.mxu0 0.0
        %2144 = vmatprep.subr.mxu0 0.0
        %2145 = vmatpush1.msra.mxu0 0.0
        %2146 = vmatprep.subr.mxu0 0.0
        %2147 = vmatpush1.msra.mxu0 0.0
        %2148 = vmatprep.mubr.f32.mxu0 0.0
        %2149 = vmatmul.mubr.f32.gmra.mrb[0].mxu0 %v1614
        %v2150 = vpop.f32.mrb[0].mxu0
        %v2151 = vadd.f32 %v2081, %v2150
        %v2152 = vpop.f32.mrb[0].mxu0
        %2153 = vdwg.mxu0
        %v2154 = vld [vmem:[%s1258] sm:$0x1]
        %v2156 = vlaneseq
        %v2157 = vshrl.u32 %v2156, 7
        %v2158 = vsub.s32 0, %v2157
        %v2159 = vrot.slane %v2154, %v2158
        %v2161 = vadd.f32 %v2151, %v2159
        %v2162 = vld [vmem:[%s1267] sm:$0xff]
        %v2163 = vld [vmem:[%s1267 + $0x8] sm:$0xff]
        %v2164 = vld [vmem:[%s1267 + $0x10] sm:$0xff]
        %v2165 = vld [vmem:[%s1267 + $0x18] sm:$0xff]
        %v2166 = vld [vmem:[%s1267 + $0x20] sm:$0xff]
        %v2167 = vld [vmem:[%s1267 + $0x28] sm:$0xff]
        %v2168 = vld [vmem:[%s1267 + $0x30] sm:$0xff]
        %v2169 = vld [vmem:[%s1267 + $0x38] sm:$0xff]
        %2170 = vmatprep.subr.mxu0 0.0
        %2171 = vmatpush1.msra.mxu0 %v2166
        %2172 = vmatprep.subr.mxu0 0.0
        %2173 = vmatpush1.msra.mxu0 %v2167
        %2174 = vmatprep.subr.mxu0 0.0
        %2175 = vmatpush1.msra.mxu0 %v2168
        %2176 = vmatprep.subr.mxu0 0.0
        %2177 = vmatpush1.msra.mxu0 %v2169
        %2178 = vmatprep.subr.mxu0 0.0
        %2179 = vmatpush1.msra.mxu0 0.0
        %2180 = vmatprep.subr.mxu0 0.0
        %2181 = vmatpush1.msra.mxu0 0.0
        %2182 = vmatprep.subr.mxu0 0.0
        %2183 = vmatpush1.msra.mxu0 0.0
        %2184 = vmatprep.subr.mxu0 0.0
        %2185 = vmatpush1.msra.mxu0 0.0
        %2186 = vmatprep.subr.mxu0 0.0
        %2187 = vmatpush1.msra.mxu0 0.0
        %2188 = vmatprep.subr.mxu0 0.0
        %2189 = vmatpush1.msra.mxu0 0.0
        %2190 = vmatprep.subr.mxu0 0.0
        %2191 = vmatpush1.msra.mxu0 0.0
        %2192 = vmatprep.subr.mxu0 0.0
        %2193 = vmatpush1.msra.mxu0 0.0
        %2194 = vmatprep.subr.mxu0 0.0
        %2195 = vmatpush1.msra.mxu0 0.0
        %2196 = vmatprep.subr.mxu0 0.0
        %2197 = vmatpush1.msra.mxu0 0.0
        %2198 = vmatprep.subr.mxu0 0.0
        %2199 = vmatpush1.msra.mxu0 0.0
        %2200 = vmatprep.subr.mxu0 0.0
        %2201 = vmatpush1.msra.mxu0 0.0
        %2202 = vmatprep.subr.mxu0 0.0
        %2203 = vmatpush1.msra.mxu0 0.0
        %2204 = vmatprep.subr.mxu0 0.0
        %2205 = vmatpush1.msra.mxu0 0.0
        %2206 = vmatprep.subr.mxu0 0.0
        %2207 = vmatpush1.msra.mxu0 0.0
        %2208 = vmatprep.subr.mxu0 0.0
        %2209 = vmatpush1.msra.mxu0 0.0
        %2210 = vmatprep.subr.mxu0 0.0
        %2211 = vmatpush1.msra.mxu0 0.0
        %2212 = vmatprep.subr.mxu0 0.0
        %2213 = vmatpush1.msra.mxu0 0.0
        %2214 = vmatprep.subr.mxu0 0.0
        %2215 = vmatpush1.msra.mxu0 0.0
        %2216 = vmatprep.subr.mxu0 0.0
        %2217 = vmatpush1.msra.mxu0 0.0
        %2218 = vmatprep.subr.mxu0 0.0
        %2219 = vmatpush1.msra.mxu0 0.0
        %2220 = vmatprep.subr.mxu0 0.0
        %2221 = vmatpush1.msra.mxu0 0.0
        %2222 = vmatprep.subr.mxu0 0.0
        %2223 = vmatpush1.msra.mxu0 0.0
        %2224 = vmatprep.subr.mxu0 0.0
        %2225 = vmatpush1.msra.mxu0 0.0
        %2226 = vmatprep.subr.mxu0 0.0
        %2227 = vmatpush1.msra.mxu0 0.0
        %2228 = vmatprep.subr.mxu0 0.0
        %2229 = vmatpush1.msra.mxu0 0.0
        %2230 = vmatprep.subr.mxu0 0.0
        %2231 = vmatpush1.msra.mxu0 0.0
        %2232 = vmatprep.subr.mxu0 0.0
        %2233 = vmatpush1.msra.mxu0 0.0
        %2234 = vmatprep.mubr.f32.mxu0 0.0
        %2235 = vmatmul.mubr.f32.gmra.mrb[0].mxu0 %v1542
        %v2236 = vpop.f32.mrb[0].mxu0
        %v2237 = vadd.f32 0.0, %v2236
        %v2238 = vpop.f32.mrb[0].mxu0
        %2239 = vdwg.mxu0
        %2240 = vmatprep.subr.mxu0 0.0
        %2241 = vmatpush1.msra.mxu0 %v2162
        %2242 = vmatprep.subr.mxu0 0.0
        %2243 = vmatpush1.msra.mxu0 %v2163
        %2244 = vmatprep.subr.mxu0 0.0
        %2245 = vmatpush1.msra.mxu0 %v2164
        %2246 = vmatprep.subr.mxu0 0.0
        %2247 = vmatpush1.msra.mxu0 %v2165
        %2248 = vmatprep.subr.mxu0 0.0
        %2249 = vmatpush1.msra.mxu0 0.0
        %2250 = vmatprep.subr.mxu0 0.0
        %2251 = vmatpush1.msra.mxu0 0.0
        %2252 = vmatprep.subr.mxu0 0.0
        %2253 = vmatpush1.msra.mxu0 0.0
        %2254 = vmatprep.subr.mxu0 0.0
        %2255 = vmatpush1.msra.mxu0 0.0
        %2256 = vmatprep.subr.mxu0 0.0
        %2257 = vmatpush1.msra.mxu0 0.0
        %2258 = vmatprep.subr.mxu0 0.0
        %2259 = vmatpush1.msra.mxu0 0.0
        %2260 = vmatprep.subr.mxu0 0.0
        %2261 = vmatpush1.msra.mxu0 0.0
        %2262 = vmatprep.subr.mxu0 0.0
        %2263 = vmatpush1.msra.mxu0 0.0
        %2264 = vmatprep.subr.mxu0 0.0
        %2265 = vmatpush1.msra.mxu0 0.0
        %2266 = vmatprep.subr.mxu0 0.0
        %2267 = vmatpush1.msra.mxu0 0.0
        %2268 = vmatprep.subr.mxu0 0.0
        %2269 = vmatpush1.msra.mxu0 0.0
        %2270 = vmatprep.subr.mxu0 0.0
        %2271 = vmatpush1.msra.mxu0 0.0
        %2272 = vmatprep.subr.mxu0 0.0
        %2273 = vmatpush1.msra.mxu0 0.0
        %2274 = vmatprep.subr.mxu0 0.0
        %2275 = vmatpush1.msra.mxu0 0.0
        %2276 = vmatprep.subr.mxu0 0.0
        %2277 = vmatpush1.msra.mxu0 0.0
        %2278 = vmatprep.subr.mxu0 0.0
        %2279 = vmatpush1.msra.mxu0 0.0
        %2280 = vmatprep.subr.mxu0 0.0
        %2281 = vmatpush1.msra.mxu0 0.0
        %2282 = vmatprep.subr.mxu0 0.0
        %2283 = vmatpush1.msra.mxu0 0.0
        %2284 = vmatprep.subr.mxu0 0.0
        %2285 = vmatpush1.msra.mxu0 0.0
        %2286 = vmatprep.subr.mxu0 0.0
        %2287 = vmatpush1.msra.mxu0 0.0
        %2288 = vmatprep.subr.mxu0 0.0
        %2289 = vmatpush1.msra.mxu0 0.0
        %2290 = vmatprep.subr.mxu0 0.0
        %2291 = vmatpush1.msra.mxu0 0.0
        %2292 = vmatprep.subr.mxu0 0.0
        %2293 = vmatpush1.msra.mxu0 0.0
        %2294 = vmatprep.subr.mxu0 0.0
        %2295 = vmatpush1.msra.mxu0 0.0
        %2296 = vmatprep.subr.mxu0 0.0
        %2297 = vmatpush1.msra.mxu0 0.0
        %2298 = vmatprep.subr.mxu0 0.0
        %2299 = vmatpush1.msra.mxu0 0.0
        %2300 = vmatprep.subr.mxu0 0.0
        %2301 = vmatpush1.msra.mxu0 0.0
        %2302 = vmatprep.subr.mxu0 0.0
        %2303 = vmatpush1.msra.mxu0 0.0
        %2304 = vmatprep.mubr.f32.mxu0 0.0
        %2305 = vmatmul.mubr.f32.gmra.mrb[0].mxu0 %v1614
        %v2306 = vpop.f32.mrb[0].mxu0
        %v2307 = vadd.f32 %v2237, %v2306
        %v2308 = vpop.f32.mrb[0].mxu0
        %2309 = vdwg.mxu0
        %v2310 = vld [vmem:[%s1416] sm:$0x1]
        %v2312 = vlaneseq
        %v2313 = vshrl.u32 %v2312, 7
        %v2314 = vsub.s32 0, %v2313
        %v2315 = vrot.slane %v2310, %v2314
        %v2317 = vadd.f32 %v2307, %v2315
        %v2318 = vadd.f32 %v1849, 1.0
        %v2319 = vxor.u32 %v2318, 2147483648
        %v2320 = vmul.f32 %v2319, 1.442695
        %v2321 = vpow.pop %v2320
        %v2322 = vadd.f32 %v2321, 1.0
        %v2323 = vrcp.pop %v2322
        %v2324 = vmul.f32 1.0, %v2323
        %v2325 = vmul.f32 %v1531, %v2324
        %v2326 = vadd.f32 %v2005, 1.0
        %v2327 = vxor.u32 %v2326, 2147483648
        %v2328 = vmul.f32 %v2327, 1.442695
        %v2329 = vpow.pop %v2328
        %v2330 = vadd.f32 %v2329, 1.0
        %v2331 = vrcp.pop %v2330
        %v2332 = vmul.f32 1.0, %v2331
        %v2334 = vrot.slane %v2332, 7
        %v2336 = vmul.f32 %v1531, %v2334
        %v2338 = vrot.slane %v2336, 1
        %v2340 = vadd.f32 %v2325, %v2338
        %v2341 = vtanh.pop %v2161
        %v2342 = vxor.u32 %v1693, 2147483648
        %v2343 = vmul.f32 %v2342, 1.442695
        %v2344 = vpow.pop %v2343
        %v2345 = vadd.f32 %v2344, 1.0
        %v2346 = vrcp.pop %v2345
        %v2347 = vmul.f32 1.0, %v2346
        %v2348 = vmul.f32 %v2341, %v2347
        %v2349 = vadd.f32 %v2340, %v2348
        %v2350 = vxor.u32 %v2317, 2147483648
        %v2351 = vmul.f32 %v2350, 1.442695
        %v2352 = vpow.pop %v2351
        %v2353 = vadd.f32 %v2352, 1.0
        %v2354 = vrcp.pop %v2353
        %v2355 = vmul.f32 1.0, %v2354
        %v2356 = vtanh.pop %v2349
        %v2357 = vmul.f32 %v2355, %v2356
        %v2358 = vmul.f32 %v2357, %v1469
        %v2359 = vsel %vm1472, %v2358, 0.0
        %2360 = vadd.xlane.f32.xlu0 %v2359
        %v2361 = vpop.xlane.xlu0 %2360
        %v2362 = vstv %s1527
        %vm2363 = vcmp.lt.s32.totalorder %v1478, %v2362
        %v2364 = vsel %vm2363, %v2361, -1e+09
        %v2365 = vsel %vm1482, %v2364, -inf
        %v2366 = vrot.slane %v2365, 4
        %v2367 = vmax.f32 %v2365, %v2366
        %v2368 = vrot.slane %v2367, 2
        %v2369 = vmax.f32 %v2367, %v2368
        %v2370 = vrot.slane %v2369, 1
        %v2371 = vmax.f32 %v2369, %v2370
        %s2372 = vtos %v2371
        %v2373 = vstv %s2372
        %vm2374 = vcmp.eq.f32.partialorder %v2364, %v2373
        %v2375 = vsel %vm2374, %v626, 7
        %v2376 = vsel %vm1482, %v2375, 2147483647
        %v2377 = vrot.slane %v2376, 4
        %vm2378 = vcmp.lt.s32.totalorder %v2376, %v2377
        %v2379 = vsel %vm2378, %v2376, %v2377
        %v2380 = vrot.slane %v2379, 2
        %vm2381 = vcmp.lt.s32.totalorder %v2379, %v2380
        %v2382 = vsel %vm2381, %v2379, %v2380
        %v2383 = vrot.slane %v2382, 1
        %vm2384 = vcmp.lt.s32.totalorder %v2382, %v2383
        %v2385 = vsel %vm2384, %v2382, %v2383
        %s2386 = vtos %v2385
        %v2387 = vstv %s2386
        %vm2388 = vcmp.lt.s32.totalorder %v626, %v2387
        %vm2389 = vcmp.eq.s32.totalorder %v626, %v2387
        %v2391 = vsel %vm2389, %v2357, %v1541
        %v2392 = vsel %vm2388, %v1529, %v2391
        %v2394 = vrot.slane %v1531, 1
        %v2396 = vsel %vm2389, %v2349, %v2394
        %v2397 = vsel %vm2388, %v1531, %v2396
        %p2398 = scmp.lt.s32.totalorder %s1476, %s1527
        %s2399 = scalar_select %p2398, 1, 0
        %v2400 = vstv %s2399
        %vm2401 = vcmp.eq.s32.totalorder %v2400, 1
        %v2402 = vsel %vm2401, %v2392, %v1529
        %v2403 = vsel %vm2401, %v2397, %v1531
        %2404 = vst.msk [vmem:[%s1528] sm:$0x7f] %vm1472, %v2402
        %2405 = vst.msk [vmem:[%s1530] sm:$0x7f] %vm1472, %v2403
        %2406 = vst.msk [vmem:[#allocation6 + $0x1] sm:$0x1] %vm1524, %v2402
        %2407 = vst.msk [vmem:[#allocation8 + $0x1] sm:$0x1] %vm1524, %v2403
        // Predicated region
        $region57: #{tpu_custom_call.1} parent=51 // pred_check
          %p2408 = pneg %p211
        $region58: #{tpu_custom_call.1} parent=51 // pred_check_branch
          %2410 = sbr.rel (%p2408) target = $region60
        $region59: #{tpu_custom_call.1} parent=51 // pred_region
          %s2412 = ssub.s32 32, 32
          %2413 = vsyncadd [#allocation7], %s2412
          %s2415 = sshll.u32 [#allocation6], 4
          %s2416 = int_to_ptr.vmem [resolvable:$true] %s2415
          %2418 = dma.vmem_to_hbm [thread:$0]  %s2416, 32, %s9, [#allocation7]
        $region60: #{tpu_custom_call.1} parent=51 // pred_fallthru
          _
        // Predicated region
        $region61: #{tpu_custom_call.1} parent=51 // pred_check
          %p2419 = pneg %p232
        $region62: #{tpu_custom_call.1} parent=51 // pred_check_branch
          %2421 = sbr.rel (%p2419) target = $region64
        $region63: #{tpu_custom_call.1} parent=51 // pred_region
          %s2423 = ssub.s32 32, 32
          %2424 = vsyncadd [#allocation9], %s2423
          %s2426 = sshll.u32 [#allocation8], 4
          %s2427 = int_to_ptr.vmem [resolvable:$true] %s2426
          %2429 = dma.vmem_to_hbm [thread:$0]  %s2427, 32, %s10, [#allocation9]
        $region64: #{tpu_custom_call.1} parent=51 // pred_fallthru
          _
        // Predicated region
        $region65: #{tpu_custom_call.1} parent=51 // pred_check
          %p2430 = pneg %p211
        $region66: #{tpu_custom_call.1} parent=51 // pred_check_branch
          %2432 = sbr.rel (%p2430) target = $region68
        $region67: #{tpu_custom_call.1} parent=51 // pred_region
          %2433 = dma.done [#allocation7], 32
        $region68: #{tpu_custom_call.1} parent=51 // pred_fallthru
          _
        // Predicated region
        $region69: #{tpu_custom_call.1} parent=51 // pred_check
          %p2434 = pneg %p232
        $region70: #{tpu_custom_call.1} parent=51 // pred_check_branch
          %2436 = sbr.rel (%p2434) target = $region72
        $region71: #{tpu_custom_call.1} parent=51 // pred_region
          %2437 = dma.done [#allocation9], 32
        $region72: #{tpu_custom_call.1} parent=51 // pred_fallthru
          _
      $region52: #{tpu_custom_call.1} parent=5 // pred_fallthru
        _
      %p2438 = scmp.le.s32.totalorder 2, %s25
      // Predicated region
      $region73: #{tpu_custom_call.1} parent=5 // pred_check
        %p2439 = pneg %p2438
      $region74: #{tpu_custom_call.1} parent=5 // pred_check_branch
        %2441 = sbr.rel (%p2439) target = $region76
      $region75: #{tpu_custom_call.1} parent=5 // pred_region
        %s2442 = ssub.s32 %s25, 2
      $region76: #{tpu_custom_call.1} parent=5 // pred_fallthru
        _
    $region6: #{tpu_custom_call.1} parent=1 // loop_footer
      %s29 = sadd.s32 1, %s25
    $region7: #{tpu_custom_call.1} parent=1 // loop_footer_branch
      %24 = sbr.rel target = $region3
    $region8: #{tpu_custom_call.1} parent=1 // loop_exit
      _
    %2443 = vsyncpa [#allocation7], 1
    %s2444 = scalar_lea.sflag [#allocation7], 1
    %2445 = vsyncpa %s2444, 1
    %2446 = vsyncpa [#allocation9], 1

</llo_original>
